<compile_context>
chip_gen: v7x
topology: tpu7x:2x2x1
jax: 0.10.0
libtpu: 0.0.40
codegen_flags: <defaults>
</compile_context>

<pallas_src>
import jax
import jax.numpy as jnp
from jax import lax
from jax.experimental import pallas as pl
from jax.experimental.pallas import tpu as pltpu

# ----- scaled-down model config (consistent with the module's forward) -------
IMG = 32                      # image H = W
CIN = 3                       # input channels
PATCH = 16                    # ViT patch size
HIDDEN = 32                   # encoder hidden size (stand-in for 768)
HEADS = 2
HEAD_DIM = HIDDEN // HEADS
MLP = 4 * HIDDEN
LAYERS = 2
VOX = 16                      # output voxel side (stand-in for 128); fc out = VOX**3
NUM_PATCH = (IMG // PATCH) ** 2
TOKENS = NUM_PATCH + 1        # + CLS token
T_PAD = 8                     # tokens padded to a sublane multiple (5 -> 8)
PATCH_K = CIN * PATCH * PATCH
LN_EPS = 1e-12
ATTN_SCALE = 1.0 / float(HEAD_DIM) ** 0.5
NEG_INF = -1e30
TILE_N = 2048                 # fc output tile: lane-dense, multiple of 128


# ------------------------------ in-kernel helpers -----------------------------
def _layernorm(x, g, b):
    mean = jnp.mean(x, axis=-1, keepdims=True)
    var = jnp.mean(jnp.square(x - mean), axis=-1, keepdims=True)
    return (x - mean) * lax.rsqrt(var + LN_EPS) * g + b


def _gelu_tanh(y):
    # TODO(synk): HF ViT uses exact (erf) GELU; tanh approximation (~1e-3
    # deviation) is used for a Mosaic-friendly EUP tanh.
    c = jnp.float32(0.7978845608028654)  # sqrt(2/pi)
    return 0.5 * y * (1.0 + jnp.tanh(c * (y + 0.044715 * y * y * y)))


# --------------------------- fused ViT encoder kernel -------------------------
def _encoder_kernel(
    xp_ref, patch_wt_ref, patch_b_ref, cls_ref, pos_ref,
    ln1_g_ref, ln1_b_ref, wqkv_ref, bqkv_ref, wo_ref, bo_ref,
    ln2_g_ref, ln2_b_ref, w1_ref, b1_ref, w2_ref, b2_ref,
    lnf_g_ref, lnf_b_ref,
    o_ref):
    B = xp_ref.shape[0] // NUM_PATCH

    # ---- patch embedding + CLS + positional embedding (assembled as a VALUE) ----
    tok = jnp.dot(xp_ref[...].astype(jnp.bfloat16), patch_wt_ref[...],
                  preferred_element_type=jnp.float32) + patch_b_ref[...]
    cls_tok = cls_ref[...] + pos_ref[0:1, :]           # (1, H)
    pos_pat = pos_ref[1:TOKENS, :]                     # (NUM_PATCH, H)
    pad_rows = jnp.zeros((T_PAD - TOKENS, HIDDEN), jnp.float32)
    per_batch = []
    for b in range(B):
        hb = jnp.concatenate(
            [cls_tok,
             tok[b * NUM_PATCH:(b + 1) * NUM_PATCH, :] + pos_pat,
             pad_rows], axis=0)                        # (T_PAD, H)
        per_batch.append(hb)
    h = jnp.concatenate(per_batch, axis=0)             # (B*T_PAD, H), pad rows = 0

    # mask padded key slots out of the softmax (hoisted, reused by all layers)
    key_idx = lax.broadcasted_iota(jnp.int32, (1, T_PAD, T_PAD), 2)
    key_mask = jnp.where(key_idx < TOKENS, 0.0, NEG_INF).astype(jnp.float32)

    # ---- transformer encoder: fully unrolled, everything VMEM/vreg-resident ----
    for l in range(LAYERS):
        hn = _layernorm(h, ln1_g_ref[l], ln1_b_ref[l])
        # fused QKV: one MXU pass, bf16 operands, f32 accumulation
        qkv = jnp.dot(hn.astype(jnp.bfloat16), wqkv_ref[l],
                      preferred_element_type=jnp.float32) + bqkv_ref[l]
        qkv3 = qkv.reshape(B, T_PAD, 3 * HIDDEN)       # leading-dim split only
        ctx_heads = []
        for hh in range(HEADS):
            c0 = hh * HEAD_DIM
            q = qkv3[:, :, c0:c0 + HEAD_DIM]
            k = qkv3[:, :, HIDDEN + c0:HIDDEN + c0 + HEAD_DIM]
            v = qkv3[:, :, 2 * HIDDEN + c0:2 * HIDDEN + c0 + HEAD_DIM]
            s = jnp.einsum('bqd,bkd->bqk', q, k,
                           preferred_element_type=jnp.float32)
            s = s * ATTN_SCALE + key_mask
            m = jnp.max(s, axis=-1, keepdims=True)
            p = jnp.exp(s - m)
            p = p * pl.reciprocal(jnp.sum(p, axis=-1, keepdims=True),
                                  approx=True)
            ctx_heads.append(jnp.einsum('bqk,bkd->bqd', p, v,
                                        preferred_element_type=jnp.float32))
        ctx = jnp.concatenate(ctx_heads, axis=-1)      # (B, T_PAD, H), stays in vregs
        ctx = ctx.reshape(B * T_PAD, HIDDEN)
        ao = jnp.dot(ctx.astype(jnp.bfloat16), wo_ref[l],
                     preferred_element_type=jnp.float32) + bo_ref[l]
        h = h + ao

        hn2 = _layernorm(h, ln2_g_ref[l], ln2_b_ref[l])
        m1 = jnp.dot(hn2.astype(jnp.bfloat16), w1_ref[l],
                     preferred_element_type=jnp.float32) + b1_ref[l]
        m1 = _gelu_tanh(m1)
        m2 = jnp.dot(m1.astype(jnp.bfloat16), w2_ref[l],
                     preferred_element_type=jnp.float32) + b2_ref[l]
        h = h + m2

    # ---- final LN on the CLS rows only (LN is row-wise, identical result) ----
    cls_rows = jnp.concatenate(
        [h[b * T_PAD:b * T_PAD + 1, :] for b in range(B)], axis=0)   # (B, H)
    cls_h = _layernorm(cls_rows, lnf_g_ref[...], lnf_b_ref[...])
    o_ref[...] = cls_h.astype(o_ref.dtype)


# -------------------- fc kernel: N-tiled, weight-streaming --------------------
def _fc_kernel(cls_ref, fc_wt_ref, fc_b_ref, o_ref):
    o_ref[...] = (jnp.dot(cls_ref[...].astype(jnp.bfloat16), fc_wt_ref[...],
                          preferred_element_type=jnp.float32)
                  + fc_b_ref[...]).astype(o_ref.dtype)


# --------------------------- parameters (synthetic) ---------------------------
def init_params(key):
    def nrm(k, shape, s=0.02, dtype=jnp.bfloat16):
        return (s * jax.random.normal(k, shape, dtype=jnp.float32)).astype(dtype)

    keys = iter(jax.random.split(key, 4 * LAYERS + 8))

    pos = nrm(next(keys), (TOKENS, HIDDEN), dtype=jnp.float32)
    pos = jnp.concatenate(
        [pos, jnp.zeros((T_PAD - TOKENS, HIDDEN), jnp.float32)], axis=0)

    p = {
        # patch-embedding conv (kernel=stride=PATCH) as a linear over flattened
        # (C, ph, pw) patches; stored pre-transposed (K, N), bf16.
        "patch_wt": nrm(next(keys), (PATCH_K, HIDDEN)),
        "patch_b": jnp.zeros((1, HIDDEN), jnp.float32),
        "cls": nrm(next(keys), (1, HIDDEN), dtype=jnp.float32),
        "pos": pos,                                      # (T_PAD, HIDDEN), zero-padded
        "lnf_g": jnp.ones((1, HIDDEN), jnp.float32),
        "lnf_b": jnp.zeros((1, HIDDEN), jnp.float32),
        # self.fc = nn.Linear(768, 128**3), scaled down; pre-transposed (K, N), bf16.
        "fc_wt": nrm(next(keys), (HIDDEN, VOX ** 3)),
        "fc_b": jnp.zeros((1, VOX ** 3), jnp.float32),
    }

    wqkv, wo, w1, w2 = [], [], [], []
    for _ in range(LAYERS):
        wqkv.append(nrm(next(keys), (HIDDEN, 3 * HIDDEN)))   # fused Q|K|V, (K, 3N)
        wo.append(nrm(next(keys), (HIDDEN, HIDDEN)))
        w1.append(nrm(next(keys), (HIDDEN, MLP)))
        w2.append(nrm(next(keys), (MLP, HIDDEN)))
    p.update({
        "ln1_g": jnp.ones((LAYERS, 1, HIDDEN), jnp.float32),
        "ln1_b": jnp.zeros((LAYERS, 1, HIDDEN), jnp.float32),
        "wqkv_t": jnp.stack(wqkv),
        "bqkv": jnp.zeros((LAYERS, 1, 3 * HIDDEN), jnp.float32),
        "wo_t": jnp.stack(wo),
        "bo": jnp.zeros((LAYERS, 1, HIDDEN), jnp.float32),
        "ln2_g": jnp.ones((LAYERS, 1, HIDDEN), jnp.float32),
        "ln2_b": jnp.zeros((LAYERS, 1, HIDDEN), jnp.float32),
        "w1_t": jnp.stack(w1),
        "b1": jnp.zeros((LAYERS, 1, MLP), jnp.float32),
        "w2_t": jnp.stack(w2),
        "b2": jnp.zeros((LAYERS, 1, HIDDEN), jnp.float32),
    })
    return p


# --------------------------------- forward -----------------------------------
def forward(params, x):
    """x: (B, C, H, W) NCHW float32 -> (B, VOX, VOX, VOX)."""
    B = x.shape[0]
    # patchify (exact conv-with-stride=kernel equivalence): flatten (C, ph, pw)
    xp = x.reshape(B, CIN, IMG // PATCH, PATCH, IMG // PATCH, PATCH)
    xp = xp.transpose(0, 2, 4, 1, 3, 5).reshape(B * NUM_PATCH, PATCH_K)

    # Fused ViT encoder: everything VMEM-resident, output = CLS hidden states.
    cls_h = pl.pallas_call(
        _encoder_kernel,
        out_shape=jax.ShapeDtypeStruct((B, HIDDEN), jnp.float32),
    )(xp,
      params["patch_wt"], params["patch_b"], params["cls"], params["pos"],
      params["ln1_g"], params["ln1_b"], params["wqkv_t"], params["bqkv"],
      params["wo_t"], params["bo"], params["ln2_g"], params["ln2_b"],
      params["w1_t"], params["b1"], params["w2_t"], params["b2"],
      params["lnf_g"], params["lnf_b"])

    # fc: N-tiled grid, bf16 weight streaming auto double-buffered by BlockSpec,
    # N axis "parallel" so v7x's 2 TensorCores split the tiles.
    n_out = VOX ** 3
    grid_n = n_out // TILE_N
    out = pl.pallas_call(
        _fc_kernel,
        out_shape=jax.ShapeDtypeStruct((B, n_out), jnp.float32),
        grid_spec=pltpu.PrefetchScalarGridSpec(
            num_scalar_prefetch=0,
            grid=(grid_n,),
            in_specs=[
                pl.BlockSpec((B, HIDDEN), lambda j: (0, 0)),
                pl.BlockSpec((HIDDEN, TILE_N), lambda j: (0, j)),
                pl.BlockSpec((1, TILE_N), lambda j: (0, j)),
            ],
            out_specs=pl.BlockSpec((B, TILE_N), lambda j: (0, j)),
        ),
        compiler_params=pltpu.CompilerParams(
            dimension_semantics=("parallel",)),
    )(cls_h, params["fc_wt"], params["fc_b"])

    return out.reshape(-1, VOX, VOX, VOX)                # x.view(-1, D, D, D)


# ----------------------------------- main -------------------------------------
if __name__ == "__main__":
    key = jax.random.PRNGKey(0)
    pkey, xkey = jax.random.split(key)
    params = init_params(pkey)
    x = jax.random.normal(xkey, (2, CIN, IMG, IMG), dtype=jnp.float32)

    out = jax.jit(forward)(params, x)
    out = jax.block_until_ready(out)

    assert out.shape == (2, VOX, VOX, VOX), out.shape
    assert bool(jnp.all(jnp.isfinite(out)))
    print("KERNEL_OK")
</pallas_src>

<mosaic_0001>
module attributes {stable_mosaic.version = 11 : i64} {
  func.func @_encoder_kernel(%arg0: memref<8x768xf32, #tpu.memory_space<vmem>>, %arg1: memref<768x32xbf16, #tpu.memory_space<vmem>>, %arg2: memref<1x32xf32, #tpu.memory_space<vmem>>, %arg3: memref<1x32xf32, #tpu.memory_space<vmem>>, %arg4: memref<8x32xf32, #tpu.memory_space<vmem>>, %arg5: memref<2x1x32xf32, #tpu.memory_space<vmem>>, %arg6: memref<2x1x32xf32, #tpu.memory_space<vmem>>, %arg7: memref<2x32x96xbf16, #tpu.memory_space<vmem>>, %arg8: memref<2x1x96xf32, #tpu.memory_space<vmem>>, %arg9: memref<2x32x32xbf16, #tpu.memory_space<vmem>>, %arg10: memref<2x1x32xf32, #tpu.memory_space<vmem>>, %arg11: memref<2x1x32xf32, #tpu.memory_space<vmem>>, %arg12: memref<2x1x32xf32, #tpu.memory_space<vmem>>, %arg13: memref<2x32x128xbf16, #tpu.memory_space<vmem>>, %arg14: memref<2x1x128xf32, #tpu.memory_space<vmem>>, %arg15: memref<2x128x32xbf16, #tpu.memory_space<vmem>>, %arg16: memref<2x1x32xf32, #tpu.memory_space<vmem>>, %arg17: memref<1x32xf32, #tpu.memory_space<vmem>>, %arg18: memref<1x32xf32, #tpu.memory_space<vmem>>, %arg19: memref<2x32xf32, #tpu.memory_space<vmem>>) attributes {dimension_semantics = [], scalar_prefetch = 0 : i64, scratch_operands = 0 : i64, tpu.core_type = #tpu.core_type<tc>} {
    %c0 = arith.constant 0 : index
    %c0_0 = arith.constant 0 : index
    %0 = vector.load %arg0[%c0, %c0_0] : memref<8x768xf32, #tpu.memory_space<vmem>>, vector<8x768xf32>
    %1 = arith.truncf %0 : vector<8x768xf32> to vector<8x768xbf16>
    %c0_1 = arith.constant 0 : index
    %c0_2 = arith.constant 0 : index
    %2 = vector.load %arg1[%c0_1, %c0_2] : memref<768x32xbf16, #tpu.memory_space<vmem>>, vector<768x32xbf16>
    %cst = arith.constant dense<0.000000e+00> : vector<8x32xf32>
    %3 = tpu.matmul %1, %2, %cst {dimension_numbers = #tpu.dot_dimension_numbers<[1], [0], [0], [1], [0, 0, 1, 1], [], []>} : vector<8x768xbf16>, vector<768x32xbf16>, vector<8x32xf32> -> vector<8x32xf32>
    %c0_3 = arith.constant 0 : index
    %c0_4 = arith.constant 0 : index
    %4 = vector.load %arg2[%c0_3, %c0_4] : memref<1x32xf32, #tpu.memory_space<vmem>>, vector<1x32xf32>
    %5 = vector.broadcast %4 : vector<1x32xf32> to vector<8x32xf32>
    %6 = arith.addf %3, %5 : vector<8x32xf32>
    %c0_5 = arith.constant 0 : index
    %c0_6 = arith.constant 0 : index
    %7 = vector.load %arg3[%c0_5, %c0_6] : memref<1x32xf32, #tpu.memory_space<vmem>>, vector<1x32xf32>
    %c0_7 = arith.constant 0 : index
    %c0_8 = arith.constant 0 : index
    %8 = vector.load %arg4[%c0_7, %c0_8] : memref<8x32xf32, #tpu.memory_space<vmem>>, vector<1x32xf32>
    %9 = arith.addf %7, %8 : vector<1x32xf32>
    %c1 = arith.constant 1 : index
    %c0_9 = arith.constant 0 : index
    %10 = vector.load %arg4[%c1, %c0_9] : memref<8x32xf32, #tpu.memory_space<vmem>>, vector<4x32xf32>
    %cst_10 = arith.constant 0.000000e+00 : f32
    %11 = vector.broadcast %cst_10 : f32 to vector<3x32xf32>
    %12 = vector.extract_strided_slice %6 {offsets = [0, 0], sizes = [4, 32], strides = [1, 1]} : vector<8x32xf32> to vector<4x32xf32>
    %13 = arith.addf %12, %10 : vector<4x32xf32>
    %14 = tpu.concatenate %9, %13, %11 in 0 : vector<1x32xf32>, vector<4x32xf32>, vector<3x32xf32> -> vector<8x32xf32>
    %15 = vector.extract_strided_slice %6 {offsets = [4, 0], sizes = [4, 32], strides = [1, 1]} : vector<8x32xf32> to vector<4x32xf32>
    %16 = arith.addf %15, %10 : vector<4x32xf32>
    %17 = tpu.concatenate %9, %16, %11 in 0 : vector<1x32xf32>, vector<4x32xf32>, vector<3x32xf32> -> vector<8x32xf32>
    %18 = tpu.concatenate %14, %17 in 0 : vector<8x32xf32>, vector<8x32xf32> -> vector<16x32xf32>
    %19 = tpu.iota {dimensions = array<i32: 2>} : vector<1x8x8xi32>
    %c5_i32 = arith.constant 5 : i32
    %20 = vector.broadcast %c5_i32 : i32 to vector<1x8x8xi32>
    %21 = arith.cmpi slt, %19, %20 : vector<1x8x8xi32>
    %cst_11 = arith.constant 0.000000e+00 : f32
    %cst_12 = arith.constant -1.000000e+30 : f32
    %22 = vector.broadcast %cst_11 : f32 to vector<1x8x8xf32>
    %23 = vector.broadcast %cst_12 : f32 to vector<1x8x8xf32>
    %24 = arith.select %21, %22, %23 : vector<1x8x8xi1>, vector<1x8x8xf32>
    %c0_13 = arith.constant 0 : index
    %c0_14 = arith.constant 0 : index
    %c0_15 = arith.constant 0 : index
    %25 = vector.load %arg5[%c0_13, %c0_14, %c0_15] : memref<2x1x32xf32, #tpu.memory_space<vmem>>, vector<1x1x32xf32>
    %26 = vector.shape_cast %25 : vector<1x1x32xf32> to vector<1x32xf32>
    %c0_16 = arith.constant 0 : index
    %c0_17 = arith.constant 0 : index
    %c0_18 = arith.constant 0 : index
    %27 = vector.load %arg6[%c0_16, %c0_17, %c0_18] : memref<2x1x32xf32, #tpu.memory_space<vmem>>, vector<1x1x32xf32>
    %28 = vector.shape_cast %27 : vector<1x1x32xf32> to vector<1x32xf32>
    %cst_19 = arith.constant dense<0.000000e+00> : vector<16xf32>
    %29 = vector.multi_reduction <add>, %18, %cst_19 [1] : vector<16x32xf32> to vector<16xf32>
    %30 = vector.shape_cast %29 : vector<16xf32> to vector<16x1xf32>
    %cst_20 = arith.constant 3.200000e+01 : f32
    %31 = vector.broadcast %cst_20 : f32 to vector<16x1xf32>
    %32 = arith.divf %30, %31 : vector<16x1xf32>
    %33 = vector.broadcast %32 : vector<16x1xf32> to vector<16x32xf32>
    %34 = arith.subf %18, %33 : vector<16x32xf32>
    %35 = arith.mulf %34, %34 : vector<16x32xf32>
    %cst_21 = arith.constant dense<0.000000e+00> : vector<16xf32>
    %36 = vector.multi_reduction <add>, %35, %cst_21 [1] : vector<16x32xf32> to vector<16xf32>
    %37 = vector.shape_cast %36 : vector<16xf32> to vector<16x1xf32>
    %cst_22 = arith.constant 3.200000e+01 : f32
    %38 = vector.broadcast %cst_22 : f32 to vector<16x1xf32>
    %39 = arith.divf %37, %38 : vector<16x1xf32>
    %40 = vector.broadcast %32 : vector<16x1xf32> to vector<16x32xf32>
    %41 = arith.subf %18, %40 : vector<16x32xf32>
    %cst_23 = arith.constant 9.99999996E-13 : f32
    %42 = vector.broadcast %cst_23 : f32 to vector<16x1xf32>
    %43 = arith.addf %39, %42 : vector<16x1xf32>
    %44 = math.rsqrt %43 : vector<16x1xf32>
    %45 = vector.broadcast %44 : vector<16x1xf32> to vector<16x32xf32>
    %46 = arith.mulf %41, %45 : vector<16x32xf32>
    %47 = vector.broadcast %26 : vector<1x32xf32> to vector<16x32xf32>
    %48 = arith.mulf %46, %47 : vector<16x32xf32>
    %49 = vector.broadcast %28 : vector<1x32xf32> to vector<16x32xf32>
    %50 = arith.addf %48, %49 : vector<16x32xf32>
    %51 = arith.truncf %50 : vector<16x32xf32> to vector<16x32xbf16>
    %c0_24 = arith.constant 0 : index
    %c0_25 = arith.constant 0 : index
    %c0_26 = arith.constant 0 : index
    %52 = vector.load %arg7[%c0_24, %c0_25, %c0_26] : memref<2x32x96xbf16, #tpu.memory_space<vmem>>, vector<1x32x96xbf16>
    %53 = vector.shape_cast %52 : vector<1x32x96xbf16> to vector<32x96xbf16>
    %cst_27 = arith.constant dense<0.000000e+00> : vector<16x96xf32>
    %54 = tpu.matmul %51, %53, %cst_27 {dimension_numbers = #tpu.dot_dimension_numbers<[1], [0], [0], [1], [0, 0, 1, 1], [], []>} : vector<16x32xbf16>, vector<32x96xbf16>, vector<16x96xf32> -> vector<16x96xf32>
    %c0_28 = arith.constant 0 : index
    %c0_29 = arith.constant 0 : index
    %c0_30 = arith.constant 0 : index
    %55 = vector.load %arg8[%c0_28, %c0_29, %c0_30] : memref<2x1x96xf32, #tpu.memory_space<vmem>>, vector<1x1x96xf32>
    %56 = vector.shape_cast %55 : vector<1x1x96xf32> to vector<1x96xf32>
    %57 = vector.broadcast %56 : vector<1x96xf32> to vector<16x96xf32>
    %58 = arith.addf %54, %57 : vector<16x96xf32>
    %59 = vector.shape_cast %58 : vector<16x96xf32> to vector<2x8x96xf32>
    %60 = vector.extract_strided_slice %59 {offsets = [0, 0, 0], sizes = [2, 8, 16], strides = [1, 1, 1]} : vector<2x8x96xf32> to vector<2x8x16xf32>
    %61 = vector.extract_strided_slice %59 {offsets = [0, 0, 32], sizes = [2, 8, 16], strides = [1, 1, 1]} : vector<2x8x96xf32> to vector<2x8x16xf32>
    %62 = vector.extract_strided_slice %59 {offsets = [0, 0, 64], sizes = [2, 8, 16], strides = [1, 1, 1]} : vector<2x8x96xf32> to vector<2x8x16xf32>
    "tpu.trace_start"() <{level = 10 : i32, message = "bqd,bkd->bqk"}> : () -> ()
    %cst_31 = arith.constant dense<0.000000e+00> : vector<2x8x8xf32>
    %63 = tpu.matmul %60, %61, %cst_31 {dimension_numbers = #tpu.dot_dimension_numbers<[2], [2], [1], [1], [0, 0, 0, 1, 1, 1], [0], [0]>} : vector<2x8x16xf32>, vector<2x8x16xf32>, vector<2x8x8xf32> -> vector<2x8x8xf32>
    "tpu.trace_stop"() : () -> ()
    %cst_32 = arith.constant 2.500000e-01 : f32
    %64 = vector.broadcast %cst_32 : f32 to vector<2x8x8xf32>
    %65 = arith.mulf %63, %64 : vector<2x8x8xf32>
    %66 = vector.broadcast %24 : vector<1x8x8xf32> to vector<2x8x8xf32>
    %67 = arith.addf %65, %66 : vector<2x8x8xf32>
    %cst_33 = arith.constant dense<0xFF800000> : vector<2x8xf32>
    %68 = vector.multi_reduction <maximumf>, %67, %cst_33 [2] : vector<2x8x8xf32> to vector<2x8xf32>
    %69 = vector.shape_cast %68 : vector<2x8xf32> to vector<2x8x1xf32>
    %70 = vector.broadcast %69 : vector<2x8x1xf32> to vector<2x8x8xf32>
    %71 = arith.subf %67, %70 : vector<2x8x8xf32>
    %72 = math.exp %71 : vector<2x8x8xf32>
    %cst_34 = arith.constant dense<0.000000e+00> : vector<2x8xf32>
    %73 = vector.multi_reduction <add>, %72, %cst_34 [2] : vector<2x8x8xf32> to vector<2x8xf32>
    %74 = vector.shape_cast %73 : vector<2x8xf32> to vector<2x8x1xf32>
    %75 = tpu.reciprocal %74 {approx = true} : vector<2x8x1xf32> -> vector<2x8x1xf32>
    %76 = vector.broadcast %75 : vector<2x8x1xf32> to vector<2x8x8xf32>
    %77 = arith.mulf %72, %76 : vector<2x8x8xf32>
    "tpu.trace_start"() <{level = 10 : i32, message = "bqk,bkd->bqd"}> : () -> ()
    %cst_35 = arith.constant dense<0.000000e+00> : vector<2x8x16xf32>
    %78 = tpu.matmul %77, %62, %cst_35 {dimension_numbers = #tpu.dot_dimension_numbers<[2], [1], [1], [2], [0, 0, 0, 1, 1, 2], [0], [0]>} : vector<2x8x8xf32>, vector<2x8x16xf32>, vector<2x8x16xf32> -> vector<2x8x16xf32>
    "tpu.trace_stop"() : () -> ()
    %79 = vector.extract_strided_slice %59 {offsets = [0, 0, 16], sizes = [2, 8, 16], strides = [1, 1, 1]} : vector<2x8x96xf32> to vector<2x8x16xf32>
    %80 = vector.extract_strided_slice %59 {offsets = [0, 0, 48], sizes = [2, 8, 16], strides = [1, 1, 1]} : vector<2x8x96xf32> to vector<2x8x16xf32>
    %81 = vector.extract_strided_slice %59 {offsets = [0, 0, 80], sizes = [2, 8, 16], strides = [1, 1, 1]} : vector<2x8x96xf32> to vector<2x8x16xf32>
    "tpu.trace_start"() <{level = 10 : i32, message = "bqd,bkd->bqk"}> : () -> ()
    %cst_36 = arith.constant dense<0.000000e+00> : vector<2x8x8xf32>
    %82 = tpu.matmul %79, %80, %cst_36 {dimension_numbers = #tpu.dot_dimension_numbers<[2], [2], [1], [1], [0, 0, 0, 1, 1, 1], [0], [0]>} : vector<2x8x16xf32>, vector<2x8x16xf32>, vector<2x8x8xf32> -> vector<2x8x8xf32>
    "tpu.trace_stop"() : () -> ()
    %cst_37 = arith.constant 2.500000e-01 : f32
    %83 = vector.broadcast %cst_37 : f32 to vector<2x8x8xf32>
    %84 = arith.mulf %82, %83 : vector<2x8x8xf32>
    %85 = vector.broadcast %24 : vector<1x8x8xf32> to vector<2x8x8xf32>
    %86 = arith.addf %84, %85 : vector<2x8x8xf32>
    %cst_38 = arith.constant dense<0xFF800000> : vector<2x8xf32>
    %87 = vector.multi_reduction <maximumf>, %86, %cst_38 [2] : vector<2x8x8xf32> to vector<2x8xf32>
    %88 = vector.shape_cast %87 : vector<2x8xf32> to vector<2x8x1xf32>
    %89 = vector.broadcast %88 : vector<2x8x1xf32> to vector<2x8x8xf32>
    %90 = arith.subf %86, %89 : vector<2x8x8xf32>
    %91 = math.exp %90 : vector<2x8x8xf32>
    %cst_39 = arith.constant dense<0.000000e+00> : vector<2x8xf32>
    %92 = vector.multi_reduction <add>, %91, %cst_39 [2] : vector<2x8x8xf32> to vector<2x8xf32>
    %93 = vector.shape_cast %92 : vector<2x8xf32> to vector<2x8x1xf32>
    %94 = tpu.reciprocal %93 {approx = true} : vector<2x8x1xf32> -> vector<2x8x1xf32>
    %95 = vector.broadcast %94 : vector<2x8x1xf32> to vector<2x8x8xf32>
    %96 = arith.mulf %91, %95 : vector<2x8x8xf32>
    "tpu.trace_start"() <{level = 10 : i32, message = "bqk,bkd->bqd"}> : () -> ()
    %cst_40 = arith.constant dense<0.000000e+00> : vector<2x8x16xf32>
    %97 = tpu.matmul %96, %81, %cst_40 {dimension_numbers = #tpu.dot_dimension_numbers<[2], [1], [1], [2], [0, 0, 0, 1, 1, 2], [0], [0]>} : vector<2x8x8xf32>, vector<2x8x16xf32>, vector<2x8x16xf32> -> vector<2x8x16xf32>
    "tpu.trace_stop"() : () -> ()
    %98 = tpu.concatenate %78, %97 in 2 : vector<2x8x16xf32>, vector<2x8x16xf32> -> vector<2x8x32xf32>
    %99 = vector.shape_cast %98 : vector<2x8x32xf32> to vector<16x32xf32>
    %100 = arith.truncf %99 : vector<16x32xf32> to vector<16x32xbf16>
    %c0_41 = arith.constant 0 : index
    %c0_42 = arith.constant 0 : index
    %c0_43 = arith.constant 0 : index
    %101 = vector.load %arg9[%c0_41, %c0_42, %c0_43] : memref<2x32x32xbf16, #tpu.memory_space<vmem>>, vector<1x32x32xbf16>
    %102 = vector.shape_cast %101 : vector<1x32x32xbf16> to vector<32x32xbf16>
    %cst_44 = arith.constant dense<0.000000e+00> : vector<16x32xf32>
    %103 = tpu.matmul %100, %102, %cst_44 {dimension_numbers = #tpu.dot_dimension_numbers<[1], [0], [0], [1], [0, 0, 1, 1], [], []>} : vector<16x32xbf16>, vector<32x32xbf16>, vector<16x32xf32> -> vector<16x32xf32>
    %c0_45 = arith.constant 0 : index
    %c0_46 = arith.constant 0 : index
    %c0_47 = arith.constant 0 : index
    %104 = vector.load %arg10[%c0_45, %c0_46, %c0_47] : memref<2x1x32xf32, #tpu.memory_space<vmem>>, vector<1x1x32xf32>
    %105 = vector.shape_cast %104 : vector<1x1x32xf32> to vector<1x32xf32>
    %106 = vector.broadcast %105 : vector<1x32xf32> to vector<16x32xf32>
    %107 = arith.addf %103, %106 : vector<16x32xf32>
    %108 = arith.addf %18, %107 : vector<16x32xf32>
    %c0_48 = arith.constant 0 : index
    %c0_49 = arith.constant 0 : index
    %c0_50 = arith.constant 0 : index
    %109 = vector.load %arg11[%c0_48, %c0_49, %c0_50] : memref<2x1x32xf32, #tpu.memory_space<vmem>>, vector<1x1x32xf32>
    %110 = vector.shape_cast %109 : vector<1x1x32xf32> to vector<1x32xf32>
    %c0_51 = arith.constant 0 : index
    %c0_52 = arith.constant 0 : index
    %c0_53 = arith.constant 0 : index
    %111 = vector.load %arg12[%c0_51, %c0_52, %c0_53] : memref<2x1x32xf32, #tpu.memory_space<vmem>>, vector<1x1x32xf32>
    %112 = vector.shape_cast %111 : vector<1x1x32xf32> to vector<1x32xf32>
    %cst_54 = arith.constant dense<0.000000e+00> : vector<16xf32>
    %113 = vector.multi_reduction <add>, %108, %cst_54 [1] : vector<16x32xf32> to vector<16xf32>
    %114 = vector.shape_cast %113 : vector<16xf32> to vector<16x1xf32>
    %cst_55 = arith.constant 3.200000e+01 : f32
    %115 = vector.broadcast %cst_55 : f32 to vector<16x1xf32>
    %116 = arith.divf %114, %115 : vector<16x1xf32>
    %117 = vector.broadcast %116 : vector<16x1xf32> to vector<16x32xf32>
    %118 = arith.subf %108, %117 : vector<16x32xf32>
    %119 = arith.mulf %118, %118 : vector<16x32xf32>
    %cst_56 = arith.constant dense<0.000000e+00> : vector<16xf32>
    %120 = vector.multi_reduction <add>, %119, %cst_56 [1] : vector<16x32xf32> to vector<16xf32>
    %121 = vector.shape_cast %120 : vector<16xf32> to vector<16x1xf32>
    %cst_57 = arith.constant 3.200000e+01 : f32
    %122 = vector.broadcast %cst_57 : f32 to vector<16x1xf32>
    %123 = arith.divf %121, %122 : vector<16x1xf32>
    %124 = vector.broadcast %116 : vector<16x1xf32> to vector<16x32xf32>
    %125 = arith.subf %108, %124 : vector<16x32xf32>
    %cst_58 = arith.constant 9.99999996E-13 : f32
    %126 = vector.broadcast %cst_58 : f32 to vector<16x1xf32>
    %127 = arith.addf %123, %126 : vector<16x1xf32>
    %128 = math.rsqrt %127 : vector<16x1xf32>
    %129 = vector.broadcast %128 : vector<16x1xf32> to vector<16x32xf32>
    %130 = arith.mulf %125, %129 : vector<16x32xf32>
    %131 = vector.broadcast %110 : vector<1x32xf32> to vector<16x32xf32>
    %132 = arith.mulf %130, %131 : vector<16x32xf32>
    %133 = vector.broadcast %112 : vector<1x32xf32> to vector<16x32xf32>
    %134 = arith.addf %132, %133 : vector<16x32xf32>
    %135 = arith.truncf %134 : vector<16x32xf32> to vector<16x32xbf16>
    %c0_59 = arith.constant 0 : index
    %c0_60 = arith.constant 0 : index
    %c0_61 = arith.constant 0 : index
    %136 = vector.load %arg13[%c0_59, %c0_60, %c0_61] : memref<2x32x128xbf16, #tpu.memory_space<vmem>>, vector<1x32x128xbf16>
    %137 = vector.shape_cast %136 : vector<1x32x128xbf16> to vector<32x128xbf16>
    %cst_62 = arith.constant dense<0.000000e+00> : vector<16x128xf32>
    %138 = tpu.matmul %135, %137, %cst_62 {dimension_numbers = #tpu.dot_dimension_numbers<[1], [0], [0], [1], [0, 0, 1, 1], [], []>} : vector<16x32xbf16>, vector<32x128xbf16>, vector<16x128xf32> -> vector<16x128xf32>
    %c0_63 = arith.constant 0 : index
    %c0_64 = arith.constant 0 : index
    %c0_65 = arith.constant 0 : index
    %139 = vector.load %arg14[%c0_63, %c0_64, %c0_65] : memref<2x1x128xf32, #tpu.memory_space<vmem>>, vector<1x1x128xf32>
    %140 = vector.shape_cast %139 : vector<1x1x128xf32> to vector<1x128xf32>
    %141 = vector.broadcast %140 : vector<1x128xf32> to vector<16x128xf32>
    %142 = arith.addf %138, %141 : vector<16x128xf32>
    %cst_66 = arith.constant 5.000000e-01 : f32
    %143 = vector.broadcast %cst_66 : f32 to vector<16x128xf32>
    %144 = arith.mulf %143, %142 : vector<16x128xf32>
    %cst_67 = arith.constant 4.471500e-02 : f32
    %145 = vector.broadcast %cst_67 : f32 to vector<16x128xf32>
    %146 = arith.mulf %145, %142 : vector<16x128xf32>
    %147 = arith.mulf %146, %142 : vector<16x128xf32>
    %148 = arith.mulf %147, %142 : vector<16x128xf32>
    %149 = arith.addf %142, %148 : vector<16x128xf32>
    %cst_68 = arith.constant 0.797884583 : f32
    %150 = vector.broadcast %cst_68 : f32 to vector<16x128xf32>
    %151 = arith.mulf %150, %149 : vector<16x128xf32>
    %152 = math.tanh %151 : vector<16x128xf32>
    %cst_69 = arith.constant 1.000000e+00 : f32
    %153 = vector.broadcast %cst_69 : f32 to vector<16x128xf32>
    %154 = arith.addf %153, %152 : vector<16x128xf32>
    %155 = arith.mulf %144, %154 : vector<16x128xf32>
    %156 = arith.truncf %155 : vector<16x128xf32> to vector<16x128xbf16>
    %c0_70 = arith.constant 0 : index
    %c0_71 = arith.constant 0 : index
    %c0_72 = arith.constant 0 : index
    %157 = vector.load %arg15[%c0_70, %c0_71, %c0_72] : memref<2x128x32xbf16, #tpu.memory_space<vmem>>, vector<1x128x32xbf16>
    %158 = vector.shape_cast %157 : vector<1x128x32xbf16> to vector<128x32xbf16>
    %cst_73 = arith.constant dense<0.000000e+00> : vector<16x32xf32>
    %159 = tpu.matmul %156, %158, %cst_73 {dimension_numbers = #tpu.dot_dimension_numbers<[1], [0], [0], [1], [0, 0, 1, 1], [], []>} : vector<16x128xbf16>, vector<128x32xbf16>, vector<16x32xf32> -> vector<16x32xf32>
    %c0_74 = arith.constant 0 : index
    %c0_75 = arith.constant 0 : index
    %c0_76 = arith.constant 0 : index
    %160 = vector.load %arg16[%c0_74, %c0_75, %c0_76] : memref<2x1x32xf32, #tpu.memory_space<vmem>>, vector<1x1x32xf32>
    %161 = vector.shape_cast %160 : vector<1x1x32xf32> to vector<1x32xf32>
    %162 = vector.broadcast %161 : vector<1x32xf32> to vector<16x32xf32>
    %163 = arith.addf %159, %162 : vector<16x32xf32>
    %164 = arith.addf %108, %163 : vector<16x32xf32>
    %c1_77 = arith.constant 1 : index
    %c0_78 = arith.constant 0 : index
    %c0_79 = arith.constant 0 : index
    %165 = vector.load %arg5[%c1_77, %c0_78, %c0_79] : memref<2x1x32xf32, #tpu.memory_space<vmem>>, vector<1x1x32xf32>
    %166 = vector.shape_cast %165 : vector<1x1x32xf32> to vector<1x32xf32>
    %c1_80 = arith.constant 1 : index
    %c0_81 = arith.constant 0 : index
    %c0_82 = arith.constant 0 : index
    %167 = vector.load %arg6[%c1_80, %c0_81, %c0_82] : memref<2x1x32xf32, #tpu.memory_space<vmem>>, vector<1x1x32xf32>
    %168 = vector.shape_cast %167 : vector<1x1x32xf32> to vector<1x32xf32>
    %cst_83 = arith.constant dense<0.000000e+00> : vector<16xf32>
    %169 = vector.multi_reduction <add>, %164, %cst_83 [1] : vector<16x32xf32> to vector<16xf32>
    %170 = vector.shape_cast %169 : vector<16xf32> to vector<16x1xf32>
    %cst_84 = arith.constant 3.200000e+01 : f32
    %171 = vector.broadcast %cst_84 : f32 to vector<16x1xf32>
    %172 = arith.divf %170, %171 : vector<16x1xf32>
    %173 = vector.broadcast %172 : vector<16x1xf32> to vector<16x32xf32>
    %174 = arith.subf %164, %173 : vector<16x32xf32>
    %175 = arith.mulf %174, %174 : vector<16x32xf32>
    %cst_85 = arith.constant dense<0.000000e+00> : vector<16xf32>
    %176 = vector.multi_reduction <add>, %175, %cst_85 [1] : vector<16x32xf32> to vector<16xf32>
    %177 = vector.shape_cast %176 : vector<16xf32> to vector<16x1xf32>
    %cst_86 = arith.constant 3.200000e+01 : f32
    %178 = vector.broadcast %cst_86 : f32 to vector<16x1xf32>
    %179 = arith.divf %177, %178 : vector<16x1xf32>
    %180 = vector.broadcast %172 : vector<16x1xf32> to vector<16x32xf32>
    %181 = arith.subf %164, %180 : vector<16x32xf32>
    %cst_87 = arith.constant 9.99999996E-13 : f32
    %182 = vector.broadcast %cst_87 : f32 to vector<16x1xf32>
    %183 = arith.addf %179, %182 : vector<16x1xf32>
    %184 = math.rsqrt %183 : vector<16x1xf32>
    %185 = vector.broadcast %184 : vector<16x1xf32> to vector<16x32xf32>
    %186 = arith.mulf %181, %185 : vector<16x32xf32>
    %187 = vector.broadcast %166 : vector<1x32xf32> to vector<16x32xf32>
    %188 = arith.mulf %186, %187 : vector<16x32xf32>
    %189 = vector.broadcast %168 : vector<1x32xf32> to vector<16x32xf32>
    %190 = arith.addf %188, %189 : vector<16x32xf32>
    %191 = arith.truncf %190 : vector<16x32xf32> to vector<16x32xbf16>
    %c1_88 = arith.constant 1 : index
    %c0_89 = arith.constant 0 : index
    %c0_90 = arith.constant 0 : index
    %192 = vector.load %arg7[%c1_88, %c0_89, %c0_90] : memref<2x32x96xbf16, #tpu.memory_space<vmem>>, vector<1x32x96xbf16>
    %193 = vector.shape_cast %192 : vector<1x32x96xbf16> to vector<32x96xbf16>
    %cst_91 = arith.constant dense<0.000000e+00> : vector<16x96xf32>
    %194 = tpu.matmul %191, %193, %cst_91 {dimension_numbers = #tpu.dot_dimension_numbers<[1], [0], [0], [1], [0, 0, 1, 1], [], []>} : vector<16x32xbf16>, vector<32x96xbf16>, vector<16x96xf32> -> vector<16x96xf32>
    %c1_92 = arith.constant 1 : index
    %c0_93 = arith.constant 0 : index
    %c0_94 = arith.constant 0 : index
    %195 = vector.load %arg8[%c1_92, %c0_93, %c0_94] : memref<2x1x96xf32, #tpu.memory_space<vmem>>, vector<1x1x96xf32>
    %196 = vector.shape_cast %195 : vector<1x1x96xf32> to vector<1x96xf32>
    %197 = vector.broadcast %196 : vector<1x96xf32> to vector<16x96xf32>
    %198 = arith.addf %194, %197 : vector<16x96xf32>
    %199 = vector.shape_cast %198 : vector<16x96xf32> to vector<2x8x96xf32>
    %200 = vector.extract_strided_slice %199 {offsets = [0, 0, 0], sizes = [2, 8, 16], strides = [1, 1, 1]} : vector<2x8x96xf32> to vector<2x8x16xf32>
    %201 = vector.extract_strided_slice %199 {offsets = [0, 0, 32], sizes = [2, 8, 16], strides = [1, 1, 1]} : vector<2x8x96xf32> to vector<2x8x16xf32>
    %202 = vector.extract_strided_slice %199 {offsets = [0, 0, 64], sizes = [2, 8, 16], strides = [1, 1, 1]} : vector<2x8x96xf32> to vector<2x8x16xf32>
    "tpu.trace_start"() <{level = 10 : i32, message = "bqd,bkd->bqk"}> : () -> ()
    %cst_95 = arith.constant dense<0.000000e+00> : vector<2x8x8xf32>
    %203 = tpu.matmul %200, %201, %cst_95 {dimension_numbers = #tpu.dot_dimension_numbers<[2], [2], [1], [1], [0, 0, 0, 1, 1, 1], [0], [0]>} : vector<2x8x16xf32>, vector<2x8x16xf32>, vector<2x8x8xf32> -> vector<2x8x8xf32>
    "tpu.trace_stop"() : () -> ()
    %cst_96 = arith.constant 2.500000e-01 : f32
    %204 = vector.broadcast %cst_96 : f32 to vector<2x8x8xf32>
    %205 = arith.mulf %203, %204 : vector<2x8x8xf32>
    %206 = vector.broadcast %24 : vector<1x8x8xf32> to vector<2x8x8xf32>
    %207 = arith.addf %205, %206 : vector<2x8x8xf32>
    %cst_97 = arith.constant dense<0xFF800000> : vector<2x8xf32>
    %208 = vector.multi_reduction <maximumf>, %207, %cst_97 [2] : vector<2x8x8xf32> to vector<2x8xf32>
    %209 = vector.shape_cast %208 : vector<2x8xf32> to vector<2x8x1xf32>
    %210 = vector.broadcast %209 : vector<2x8x1xf32> to vector<2x8x8xf32>
    %211 = arith.subf %207, %210 : vector<2x8x8xf32>
    %212 = math.exp %211 : vector<2x8x8xf32>
    %cst_98 = arith.constant dense<0.000000e+00> : vector<2x8xf32>
    %213 = vector.multi_reduction <add>, %212, %cst_98 [2] : vector<2x8x8xf32> to vector<2x8xf32>
    %214 = vector.shape_cast %213 : vector<2x8xf32> to vector<2x8x1xf32>
    %215 = tpu.reciprocal %214 {approx = true} : vector<2x8x1xf32> -> vector<2x8x1xf32>
    %216 = vector.broadcast %215 : vector<2x8x1xf32> to vector<2x8x8xf32>
    %217 = arith.mulf %212, %216 : vector<2x8x8xf32>
    "tpu.trace_start"() <{level = 10 : i32, message = "bqk,bkd->bqd"}> : () -> ()
    %cst_99 = arith.constant dense<0.000000e+00> : vector<2x8x16xf32>
    %218 = tpu.matmul %217, %202, %cst_99 {dimension_numbers = #tpu.dot_dimension_numbers<[2], [1], [1], [2], [0, 0, 0, 1, 1, 2], [0], [0]>} : vector<2x8x8xf32>, vector<2x8x16xf32>, vector<2x8x16xf32> -> vector<2x8x16xf32>
    "tpu.trace_stop"() : () -> ()
    %219 = vector.extract_strided_slice %199 {offsets = [0, 0, 16], sizes = [2, 8, 16], strides = [1, 1, 1]} : vector<2x8x96xf32> to vector<2x8x16xf32>
    %220 = vector.extract_strided_slice %199 {offsets = [0, 0, 48], sizes = [2, 8, 16], strides = [1, 1, 1]} : vector<2x8x96xf32> to vector<2x8x16xf32>
    %221 = vector.extract_strided_slice %199 {offsets = [0, 0, 80], sizes = [2, 8, 16], strides = [1, 1, 1]} : vector<2x8x96xf32> to vector<2x8x16xf32>
    "tpu.trace_start"() <{level = 10 : i32, message = "bqd,bkd->bqk"}> : () -> ()
    %cst_100 = arith.constant dense<0.000000e+00> : vector<2x8x8xf32>
    %222 = tpu.matmul %219, %220, %cst_100 {dimension_numbers = #tpu.dot_dimension_numbers<[2], [2], [1], [1], [0, 0, 0, 1, 1, 1], [0], [0]>} : vector<2x8x16xf32>, vector<2x8x16xf32>, vector<2x8x8xf32> -> vector<2x8x8xf32>
    "tpu.trace_stop"() : () -> ()
    %cst_101 = arith.constant 2.500000e-01 : f32
    %223 = vector.broadcast %cst_101 : f32 to vector<2x8x8xf32>
    %224 = arith.mulf %222, %223 : vector<2x8x8xf32>
    %225 = vector.broadcast %24 : vector<1x8x8xf32> to vector<2x8x8xf32>
    %226 = arith.addf %224, %225 : vector<2x8x8xf32>
    %cst_102 = arith.constant dense<0xFF800000> : vector<2x8xf32>
    %227 = vector.multi_reduction <maximumf>, %226, %cst_102 [2] : vector<2x8x8xf32> to vector<2x8xf32>
    %228 = vector.shape_cast %227 : vector<2x8xf32> to vector<2x8x1xf32>
    %229 = vector.broadcast %228 : vector<2x8x1xf32> to vector<2x8x8xf32>
    %230 = arith.subf %226, %229 : vector<2x8x8xf32>
    %231 = math.exp %230 : vector<2x8x8xf32>
    %cst_103 = arith.constant dense<0.000000e+00> : vector<2x8xf32>
    %232 = vector.multi_reduction <add>, %231, %cst_103 [2] : vector<2x8x8xf32> to vector<2x8xf32>
    %233 = vector.shape_cast %232 : vector<2x8xf32> to vector<2x8x1xf32>
    %234 = tpu.reciprocal %233 {approx = true} : vector<2x8x1xf32> -> vector<2x8x1xf32>
    %235 = vector.broadcast %234 : vector<2x8x1xf32> to vector<2x8x8xf32>
    %236 = arith.mulf %231, %235 : vector<2x8x8xf32>
    "tpu.trace_start"() <{level = 10 : i32, message = "bqk,bkd->bqd"}> : () -> ()
    %cst_104 = arith.constant dense<0.000000e+00> : vector<2x8x16xf32>
    %237 = tpu.matmul %236, %221, %cst_104 {dimension_numbers = #tpu.dot_dimension_numbers<[2], [1], [1], [2], [0, 0, 0, 1, 1, 2], [0], [0]>} : vector<2x8x8xf32>, vector<2x8x16xf32>, vector<2x8x16xf32> -> vector<2x8x16xf32>
    "tpu.trace_stop"() : () -> ()
    %238 = tpu.concatenate %218, %237 in 2 : vector<2x8x16xf32>, vector<2x8x16xf32> -> vector<2x8x32xf32>
    %239 = vector.shape_cast %238 : vector<2x8x32xf32> to vector<16x32xf32>
    %240 = arith.truncf %239 : vector<16x32xf32> to vector<16x32xbf16>
    %c1_105 = arith.constant 1 : index
    %c0_106 = arith.constant 0 : index
    %c0_107 = arith.constant 0 : index
    %241 = vector.load %arg9[%c1_105, %c0_106, %c0_107] : memref<2x32x32xbf16, #tpu.memory_space<vmem>>, vector<1x32x32xbf16>
    %242 = vector.shape_cast %241 : vector<1x32x32xbf16> to vector<32x32xbf16>
    %cst_108 = arith.constant dense<0.000000e+00> : vector<16x32xf32>
    %243 = tpu.matmul %240, %242, %cst_108 {dimension_numbers = #tpu.dot_dimension_numbers<[1], [0], [0], [1], [0, 0, 1, 1], [], []>} : vector<16x32xbf16>, vector<32x32xbf16>, vector<16x32xf32> -> vector<16x32xf32>
    %c1_109 = arith.constant 1 : index
    %c0_110 = arith.constant 0 : index
    %c0_111 = arith.constant 0 : index
    %244 = vector.load %arg10[%c1_109, %c0_110, %c0_111] : memref<2x1x32xf32, #tpu.memory_space<vmem>>, vector<1x1x32xf32>
    %245 = vector.shape_cast %244 : vector<1x1x32xf32> to vector<1x32xf32>
    %246 = vector.broadcast %245 : vector<1x32xf32> to vector<16x32xf32>
    %247 = arith.addf %243, %246 : vector<16x32xf32>
    %248 = arith.addf %164, %247 : vector<16x32xf32>
    %c1_112 = arith.constant 1 : index
    %c0_113 = arith.constant 0 : index
    %c0_114 = arith.constant 0 : index
    %249 = vector.load %arg11[%c1_112, %c0_113, %c0_114] : memref<2x1x32xf32, #tpu.memory_space<vmem>>, vector<1x1x32xf32>
    %250 = vector.shape_cast %249 : vector<1x1x32xf32> to vector<1x32xf32>
    %c1_115 = arith.constant 1 : index
    %c0_116 = arith.constant 0 : index
    %c0_117 = arith.constant 0 : index
    %251 = vector.load %arg12[%c1_115, %c0_116, %c0_117] : memref<2x1x32xf32, #tpu.memory_space<vmem>>, vector<1x1x32xf32>
    %252 = vector.shape_cast %251 : vector<1x1x32xf32> to vector<1x32xf32>
    %cst_118 = arith.constant dense<0.000000e+00> : vector<16xf32>
    %253 = vector.multi_reduction <add>, %248, %cst_118 [1] : vector<16x32xf32> to vector<16xf32>
    %254 = vector.shape_cast %253 : vector<16xf32> to vector<16x1xf32>
    %cst_119 = arith.constant 3.200000e+01 : f32
    %255 = vector.broadcast %cst_119 : f32 to vector<16x1xf32>
    %256 = arith.divf %254, %255 : vector<16x1xf32>
    %257 = vector.broadcast %256 : vector<16x1xf32> to vector<16x32xf32>
    %258 = arith.subf %248, %257 : vector<16x32xf32>
    %259 = arith.mulf %258, %258 : vector<16x32xf32>
    %cst_120 = arith.constant dense<0.000000e+00> : vector<16xf32>
    %260 = vector.multi_reduction <add>, %259, %cst_120 [1] : vector<16x32xf32> to vector<16xf32>
    %261 = vector.shape_cast %260 : vector<16xf32> to vector<16x1xf32>
    %cst_121 = arith.constant 3.200000e+01 : f32
    %262 = vector.broadcast %cst_121 : f32 to vector<16x1xf32>
    %263 = arith.divf %261, %262 : vector<16x1xf32>
    %264 = vector.broadcast %256 : vector<16x1xf32> to vector<16x32xf32>
    %265 = arith.subf %248, %264 : vector<16x32xf32>
    %cst_122 = arith.constant 9.99999996E-13 : f32
    %266 = vector.broadcast %cst_122 : f32 to vector<16x1xf32>
    %267 = arith.addf %263, %266 : vector<16x1xf32>
    %268 = math.rsqrt %267 : vector<16x1xf32>
    %269 = vector.broadcast %268 : vector<16x1xf32> to vector<16x32xf32>
    %270 = arith.mulf %265, %269 : vector<16x32xf32>
    %271 = vector.broadcast %250 : vector<1x32xf32> to vector<16x32xf32>
    %272 = arith.mulf %270, %271 : vector<16x32xf32>
    %273 = vector.broadcast %252 : vector<1x32xf32> to vector<16x32xf32>
    %274 = arith.addf %272, %273 : vector<16x32xf32>
    %275 = arith.truncf %274 : vector<16x32xf32> to vector<16x32xbf16>
    %c1_123 = arith.constant 1 : index
    %c0_124 = arith.constant 0 : index
    %c0_125 = arith.constant 0 : index
    %276 = vector.load %arg13[%c1_123, %c0_124, %c0_125] : memref<2x32x128xbf16, #tpu.memory_space<vmem>>, vector<1x32x128xbf16>
    %277 = vector.shape_cast %276 : vector<1x32x128xbf16> to vector<32x128xbf16>
    %cst_126 = arith.constant dense<0.000000e+00> : vector<16x128xf32>
    %278 = tpu.matmul %275, %277, %cst_126 {dimension_numbers = #tpu.dot_dimension_numbers<[1], [0], [0], [1], [0, 0, 1, 1], [], []>} : vector<16x32xbf16>, vector<32x128xbf16>, vector<16x128xf32> -> vector<16x128xf32>
    %c1_127 = arith.constant 1 : index
    %c0_128 = arith.constant 0 : index
    %c0_129 = arith.constant 0 : index
    %279 = vector.load %arg14[%c1_127, %c0_128, %c0_129] : memref<2x1x128xf32, #tpu.memory_space<vmem>>, vector<1x1x128xf32>
    %280 = vector.shape_cast %279 : vector<1x1x128xf32> to vector<1x128xf32>
    %281 = vector.broadcast %280 : vector<1x128xf32> to vector<16x128xf32>
    %282 = arith.addf %278, %281 : vector<16x128xf32>
    %cst_130 = arith.constant 5.000000e-01 : f32
    %283 = vector.broadcast %cst_130 : f32 to vector<16x128xf32>
    %284 = arith.mulf %283, %282 : vector<16x128xf32>
    %cst_131 = arith.constant 4.471500e-02 : f32
    %285 = vector.broadcast %cst_131 : f32 to vector<16x128xf32>
    %286 = arith.mulf %285, %282 : vector<16x128xf32>
    %287 = arith.mulf %286, %282 : vector<16x128xf32>
    %288 = arith.mulf %287, %282 : vector<16x128xf32>
    %289 = arith.addf %282, %288 : vector<16x128xf32>
    %cst_132 = arith.constant 0.797884583 : f32
    %290 = vector.broadcast %cst_132 : f32 to vector<16x128xf32>
    %291 = arith.mulf %290, %289 : vector<16x128xf32>
    %292 = math.tanh %291 : vector<16x128xf32>
    %cst_133 = arith.constant 1.000000e+00 : f32
    %293 = vector.broadcast %cst_133 : f32 to vector<16x128xf32>
    %294 = arith.addf %293, %292 : vector<16x128xf32>
    %295 = arith.mulf %284, %294 : vector<16x128xf32>
    %296 = arith.truncf %295 : vector<16x128xf32> to vector<16x128xbf16>
    %c1_134 = arith.constant 1 : index
    %c0_135 = arith.constant 0 : index
    %c0_136 = arith.constant 0 : index
    %297 = vector.load %arg15[%c1_134, %c0_135, %c0_136] : memref<2x128x32xbf16, #tpu.memory_space<vmem>>, vector<1x128x32xbf16>
    %298 = vector.shape_cast %297 : vector<1x128x32xbf16> to vector<128x32xbf16>
    %cst_137 = arith.constant dense<0.000000e+00> : vector<16x32xf32>
    %299 = tpu.matmul %296, %298, %cst_137 {dimension_numbers = #tpu.dot_dimension_numbers<[1], [0], [0], [1], [0, 0, 1, 1], [], []>} : vector<16x128xbf16>, vector<128x32xbf16>, vector<16x32xf32> -> vector<16x32xf32>
    %c1_138 = arith.constant 1 : index
    %c0_139 = arith.constant 0 : index
    %c0_140 = arith.constant 0 : index
    %300 = vector.load %arg16[%c1_138, %c0_139, %c0_140] : memref<2x1x32xf32, #tpu.memory_space<vmem>>, vector<1x1x32xf32>
    %301 = vector.shape_cast %300 : vector<1x1x32xf32> to vector<1x32xf32>
    %302 = vector.broadcast %301 : vector<1x32xf32> to vector<16x32xf32>
    %303 = arith.addf %299, %302 : vector<16x32xf32>
    %304 = arith.addf %248, %303 : vector<16x32xf32>
    %305 = vector.extract_strided_slice %304 {offsets = [0, 0], sizes = [1, 32], strides = [1, 1]} : vector<16x32xf32> to vector<1x32xf32>
    %306 = vector.extract_strided_slice %304 {offsets = [8, 0], sizes = [1, 32], strides = [1, 1]} : vector<16x32xf32> to vector<1x32xf32>
    %307 = tpu.concatenate %305, %306 in 0 : vector<1x32xf32>, vector<1x32xf32> -> vector<2x32xf32>
    %c0_141 = arith.constant 0 : index
    %c0_142 = arith.constant 0 : index
    %308 = vector.load %arg17[%c0_141, %c0_142] : memref<1x32xf32, #tpu.memory_space<vmem>>, vector<1x32xf32>
    %c0_143 = arith.constant 0 : index
    %c0_144 = arith.constant 0 : index
    %309 = vector.load %arg18[%c0_143, %c0_144] : memref<1x32xf32, #tpu.memory_space<vmem>>, vector<1x32xf32>
    %cst_145 = arith.constant dense<0.000000e+00> : vector<2xf32>
    %310 = vector.multi_reduction <add>, %307, %cst_145 [1] : vector<2x32xf32> to vector<2xf32>
    %311 = vector.shape_cast %310 : vector<2xf32> to vector<2x1xf32>
    %cst_146 = arith.constant 3.200000e+01 : f32
    %312 = vector.broadcast %cst_146 : f32 to vector<2x1xf32>
    %313 = arith.divf %311, %312 : vector<2x1xf32>
    %314 = vector.broadcast %313 : vector<2x1xf32> to vector<2x32xf32>
    %315 = arith.subf %307, %314 : vector<2x32xf32>
    %316 = arith.mulf %315, %315 : vector<2x32xf32>
    %cst_147 = arith.constant dense<0.000000e+00> : vector<2xf32>
    %317 = vector.multi_reduction <add>, %316, %cst_147 [1] : vector<2x32xf32> to vector<2xf32>
    %318 = vector.shape_cast %317 : vector<2xf32> to vector<2x1xf32>
    %cst_148 = arith.constant 3.200000e+01 : f32
    %319 = vector.broadcast %cst_148 : f32 to vector<2x1xf32>
    %320 = arith.divf %318, %319 : vector<2x1xf32>
    %321 = vector.broadcast %313 : vector<2x1xf32> to vector<2x32xf32>
    %322 = arith.subf %307, %321 : vector<2x32xf32>
    %cst_149 = arith.constant 9.99999996E-13 : f32
    %323 = vector.broadcast %cst_149 : f32 to vector<2x1xf32>
    %324 = arith.addf %320, %323 : vector<2x1xf32>
    %325 = math.rsqrt %324 : vector<2x1xf32>
    %326 = vector.broadcast %325 : vector<2x1xf32> to vector<2x32xf32>
    %327 = arith.mulf %322, %326 : vector<2x32xf32>
    %328 = vector.broadcast %308 : vector<1x32xf32> to vector<2x32xf32>
    %329 = arith.mulf %327, %328 : vector<2x32xf32>
    %330 = vector.broadcast %309 : vector<1x32xf32> to vector<2x32xf32>
    %331 = arith.addf %329, %330 : vector<2x32xf32>
    %c0_150 = arith.constant 0 : index
    %c0_151 = arith.constant 0 : index
    %332 = vector.load %arg19[%c0_150, %c0_151] : memref<2x32xf32, #tpu.memory_space<vmem>>, vector<2x32xf32>
    tpu.vector_store %arg19[%c0_150, %c0_151], %331 {strides = array<i32>} : memref<2x32xf32, #tpu.memory_space<vmem>>, vector<2x32xf32>,
    return
  }
}

module attributes {stable_mosaic.version = 11 : i64} {
  func.func @_fc_kernel(%arg0: i32, %arg1: memref<2x32xf32, #tpu.memory_space<vmem>>, %arg2: memref<32x2048xbf16, #tpu.memory_space<vmem>>, %arg3: memref<1x2048xf32, #tpu.memory_space<vmem>>, %arg4: memref<2x2048xf32, #tpu.memory_space<vmem>>) attributes {dimension_semantics = [#tpu.dimension_semantics<parallel>], iteration_bounds = array<i64: 2>, scalar_prefetch = 0 : i64, scratch_operands = 0 : i64, tpu.core_type = #tpu.core_type<tc>, window_params = [{pipeline_mode = #tpu.pipeline_mode<synchronous>, transform_indices = @transform_0, window_bounds = array<i64: 2, 32>}, {transform_indices = @transform_1, window_bounds = array<i64: 32, 2048>}, {transform_indices = @transform_2, window_bounds = array<i64: 1, 2048>}, {transform_indices = @transform_3, window_bounds = array<i64: 2, 2048>}]} {
    %c0 = arith.constant 0 : index
    %c0_0 = arith.constant 0 : index
    %0 = vector.load %arg1[%c0, %c0_0] : memref<2x32xf32, #tpu.memory_space<vmem>>, vector<2x32xf32>
    %1 = arith.truncf %0 : vector<2x32xf32> to vector<2x32xbf16>
    %c0_1 = arith.constant 0 : index
    %c0_2 = arith.constant 0 : index
    %2 = vector.load %arg2[%c0_1, %c0_2] : memref<32x2048xbf16, #tpu.memory_space<vmem>>, vector<32x2048xbf16>
    %cst = arith.constant dense<0.000000e+00> : vector<2x2048xf32>
    %3 = tpu.matmul %1, %2, %cst {dimension_numbers = #tpu.dot_dimension_numbers<[1], [0], [0], [1], [0, 0, 1, 1], [], []>} : vector<2x32xbf16>, vector<32x2048xbf16>, vector<2x2048xf32> -> vector<2x2048xf32>
    %c0_3 = arith.constant 0 : index
    %c0_4 = arith.constant 0 : index
    %4 = vector.load %arg3[%c0_3, %c0_4] : memref<1x2048xf32, #tpu.memory_space<vmem>>, vector<1x2048xf32>
    %5 = vector.broadcast %4 : vector<1x2048xf32> to vector<2x2048xf32>
    %6 = arith.addf %3, %5 : vector<2x2048xf32>
    %c0_5 = arith.constant 0 : index
    %c0_6 = arith.constant 0 : index
    %7 = vector.load %arg4[%c0_5, %c0_6] : memref<2x2048xf32, #tpu.memory_space<vmem>>, vector<2x2048xf32>
    tpu.vector_store %arg4[%c0_5, %c0_6], %6 {strides = array<i32>} : memref<2x2048xf32, #tpu.memory_space<vmem>>, vector<2x2048xf32>,
    return
  }
  func.func @transform_0(%arg0: i32) -> (i32, i32) {
    %c0_i32 = arith.constant 0 : i32
    %c0_i32_0 = arith.constant 0 : i32
    %c0_i32_1 = arith.constant 0 : i32
    return %c0_i32, %c0_i32_0 : i32, i32
  }
  func.func @transform_1(%arg0: i32) -> (i32, i32) {
    %c0_i32 = arith.constant 0 : i32
    %c0_i32_0 = arith.constant 0 : i32
    return %c0_i32, %arg0 : i32, i32
  }
  func.func @transform_2(%arg0: i32) -> (i32, i32) {
    %c0_i32 = arith.constant 0 : i32
    %c0_i32_0 = arith.constant 0 : i32
    return %c0_i32, %arg0 : i32, i32
  }
  func.func @transform_3(%arg0: i32) -> (i32, i32) {
    %c0_i32 = arith.constant 0 : i32
    %c0_i32_0 = arith.constant 0 : i32
    return %c0_i32, %arg0 : i32, i32
  }
}

</mosaic_0001>

<llo_original>
// kernel: forward.3
$region0: #{forward.3}
  #allocation0 [shape = 'u32[]', space=smem, size = 0x4, offset = 0x4, fixed_abs, tag = 'smem constant byte address 0x4 - core index']
  #allocation1 [shape = 'u32[144,128]{1,0:T(1,128)}', space=vmem, size = 0x12000, scoped, tag = 'internal scratch']
  %s0 = inlined_call_operand.vmem [shape: f32[2,32], index: 0, kind: input, shape index: {}]
  %s1 = inlined_call_operand.vmem [shape: bf16[32,4096], index: 1, kind: input, shape index: {}]
  %s2 = inlined_call_operand.vmem [shape: f32[1,4096], index: 2, kind: input, shape index: {}]
  %s3 = inlined_call_operand.vmem [shape: f32[2,4096], index: 3, kind: output, shape index: {}]
  %s4 = sld [smem:[#allocation0]]
  $region68: #{forward.3} parent=0
    _
  %s6 = ssub.s32 1, %s4
  %s7 = scalar_select 0, %s6, %s4
  $region1: #{forward.3} parent=0
    #allocation2 [shape = 'u8[262144]{0}', space=vmem, size = 0x40000, scoped, tag = 'input window, operand 1']
    loop: start=0, step=1, limit=4
    $region2: #{forward.3} parent=1 // loop_pre_header
      _
    $region3: #{forward.3} parent=1 // loop_header
      %s9 = sphi 0, %s13
      %p10 = scmp.ge.s32.totalorder %s9, 4
      %s17 = sphi 0, %s17
      %s19 = sphi 0, %s17
      %s20 = sphi 0, %s19
      %s34 = sphi 0, %s20
      %s40 = sphi 0, %s42
      %s43 = sphi 0, %s40
      %s44 = sphi 0, %s43
      %s60 = sphi 0, %s44
      %s66 = sphi 0, %s68
      %s69 = sphi 0, %s66
      %s70 = sphi 0, %s69
      %s86 = sphi 0, %s70
      %s92 = sphi 0, %s94
      %s95 = sphi 0, %s92
      %s96 = sphi 0, %s95
      %s112 = sphi 0, %s96
    $region4: #{forward.3} parent=1 // loop_header_branch
      %12 = sbr.rel (%p10) target = $region8
    $region5: #{forward.3} parent=1 // loop_body
      %s14 = ssub.s32 %s9, 1
      %s15 = ssub.s32 %s9, 2
      %s16 = sadd.s32 %s9, 1
      %s18 = sadd.s32 %s17, 1
      %p21 = scmp.eq.s32.totalorder %s9, 1
      %p22 = scmp.ne.s32.totalorder %s17, %s19
      %p23 = scmp.eq.s32.totalorder %s9, 0
      %p24 = por %p22, %p23
      %p25 = scmp.ne.s32.totalorder %s17, %s19
      %p26 = scmp.eq.s32.totalorder %s14, 1
      %p27 = por %p25, %p26
      %p28 = scmp.ne.s32.totalorder %s19, %s20
      %p29 = scmp.eq.s32.totalorder %s14, 0
      %p30 = por %p28, %p29
      %p31 = scmp.ne.s32.totalorder %s19, %s20
      %p32 = scmp.eq.s32.totalorder %s15, 1
      %p33 = por %p31, %p32
      %p35 = scmp.ne.s32.totalorder %s20, %s34
      %p36 = scmp.eq.s32.totalorder %s15, 0
      %p37 = por %p35, %p36
      %s38 = ssub.s32 %s9, %s16
      %p39 = scmp.eq.s32.totalorder %s38, 0
      %s41 = sadd.s32 %s40, 1
      %s42 = scalar_select %p39, %s40, %s41
      %p45 = pneg %p39
      %p46 = scmp.eq.s32.totalorder %s9, 1
      %p47 = por %p45, %p46
      %p48 = scmp.ne.s32.totalorder %s40, %s43
      %p49 = scmp.eq.s32.totalorder %s9, 0
      %p50 = por %p48, %p49
      %p51 = scmp.ne.s32.totalorder %s40, %s43
      %p52 = scmp.eq.s32.totalorder %s14, 1
      %p53 = por %p51, %p52
      %p54 = scmp.ne.s32.totalorder %s43, %s44
      %p55 = scmp.eq.s32.totalorder %s14, 0
      %p56 = por %p54, %p55
      %p57 = scmp.ne.s32.totalorder %s43, %s44
      %p58 = scmp.eq.s32.totalorder %s15, 1
      %p59 = por %p57, %p58
      %p61 = scmp.ne.s32.totalorder %s44, %s60
      %p62 = scmp.eq.s32.totalorder %s15, 0
      %p63 = por %p61, %p62
      %s64 = ssub.s32 %s9, %s16
      %p65 = scmp.eq.s32.totalorder %s64, 0
      %s67 = sadd.s32 %s66, 1
      %s68 = scalar_select %p65, %s66, %s67
      %p71 = pneg %p65
      %p72 = scmp.eq.s32.totalorder %s9, 1
      %p73 = por %p71, %p72
      %p74 = scmp.ne.s32.totalorder %s66, %s69
      %p75 = scmp.eq.s32.totalorder %s9, 0
      %p76 = por %p74, %p75
      %p77 = scmp.ne.s32.totalorder %s66, %s69
      %p78 = scmp.eq.s32.totalorder %s14, 1
      %p79 = por %p77, %p78
      %p80 = scmp.ne.s32.totalorder %s69, %s70
      %p81 = scmp.eq.s32.totalorder %s14, 0
      %p82 = por %p80, %p81
      %p83 = scmp.ne.s32.totalorder %s69, %s70
      %p84 = scmp.eq.s32.totalorder %s15, 1
      %p85 = por %p83, %p84
      %p87 = scmp.ne.s32.totalorder %s70, %s86
      %p88 = scmp.eq.s32.totalorder %s15, 0
      %p89 = por %p87, %p88
      %s90 = ssub.s32 %s9, %s16
      %p91 = scmp.eq.s32.totalorder %s90, 0
      %s93 = sadd.s32 %s92, 1
      %s94 = scalar_select %p91, %s92, %s93
      %p97 = pneg %p91
      %p98 = scmp.eq.s32.totalorder %s9, 1
      %p99 = por %p97, %p98
      %p100 = scmp.ne.s32.totalorder %s92, %s95
      %p101 = scmp.eq.s32.totalorder %s9, 0
      %p102 = por %p100, %p101
      %p103 = scmp.ne.s32.totalorder %s92, %s95
      %p104 = scmp.eq.s32.totalorder %s14, 1
      %p105 = por %p103, %p104
      %p106 = scmp.ne.s32.totalorder %s95, %s96
      %p107 = scmp.eq.s32.totalorder %s14, 0
      %p108 = por %p106, %p107
      %p109 = scmp.ne.s32.totalorder %s95, %s96
      %p110 = scmp.eq.s32.totalorder %s15, 1
      %p111 = por %p109, %p110
      %p113 = scmp.ne.s32.totalorder %s96, %s112
      %p114 = scmp.eq.s32.totalorder %s15, 0
      %p115 = por %p113, %p114
      %p116 = scmp.le.s32.totalorder 1, %s9
      %p117 = scmp.lt.s32.totalorder %s9, 3
      %p118 = pnand %p116, %p117
      %p119 = pneg %p118
      // Predicated region
      $region9: #{forward.3} parent=5 // pred_check
        _
      $region10: #{forward.3} parent=5 // pred_check_branch
        %121 = sbr.rel (%p118) target = $region12
      $region11: #{forward.3} parent=5 // pred_region
        %s122 = ssub.s32 %s9, 1
        // Predicated region
        $region13: #{forward.3} parent=11 // pred_check
          %p123 = pneg %p30
        $region14: #{forward.3} parent=11 // pred_check_branch
          %125 = sbr.rel (%p123) target = $region16
        $region15: #{forward.3} parent=11 // pred_region
          _
        $region16: #{forward.3} parent=11 // pred_fallthru
          _
      $region12: #{forward.3} parent=5 // pred_fallthru
        _
      %p126 = scmp.lt.s32.totalorder %s9, 2
      // Predicated region
      $region17: #{forward.3} parent=5 // pred_check
        %p127 = pneg %p126
      $region18: #{forward.3} parent=5 // pred_check_branch
        %129 = sbr.rel (%p127) target = $region20
      $region19: #{forward.3} parent=5 // pred_region
        // Predicated region
        $region21: #{forward.3} parent=19 // pred_check
          %p130 = pneg %p50
        $region22: #{forward.3} parent=19 // pred_check_branch
          %132 = sbr.rel (%p130) target = $region24
        $region23: #{forward.3} parent=19 // pred_region
          %s133 = sand.u32 %s40, 1
          %s134 = sand.u32 %s40, 1
          %s135 = smul.addr %s134, 256
          %s136 = scalar_lea.vmem [#allocation2], %s135
          %s137 = smul.u32 16, %s9
          %s138 = smul.addr %s137, 4
          %s139 = scalar_lea.vmem %s1, %s138
          // Predicated region
          $region25: #{forward.3} parent=23 // pred_check
            _
          $region26: #{forward.3} parent=23 // pred_check_branch
            %141 = sbr.rel (0) target = $region28
          $region27: #{forward.3} parent=23 // pred_region
            // Predicated region
            $region29: #{forward.3} parent=27 // pred_check
              _
            $region30: #{forward.3} parent=27 // pred_check_branch
              %143 = sbr.rel (0) target = $region32
            $region31: #{forward.3} parent=27 // pred_region
              loop: start=0, step=1, limit=1
              $region33: #{forward.3} parent=31 // loop_pre_header
                _
              $region34: #{forward.3} parent=31 // loop_header
                %s145 = sphi 0, %s149
                %p146 = scmp.ge.s32.totalorder %s145, 1
                %s150 = sphi %s139, %s139
                %s151 = sphi %s136, %s136
              $region35: #{forward.3} parent=31 // loop_header_branch
                %148 = sbr.rel (%p146) target = $region39
              $region36: #{forward.3} parent=31 // loop_body
                %v152 = vld [vmem:[%s150] sm:$0xff]
                %153 = vst [vmem:[%s151] sm:$0xff] %v152
                %v154 = vld [vmem:[%s150 + $0x8] sm:$0xff]
                %155 = vst [vmem:[%s151 + $0x8] sm:$0xff] %v154
                %v156 = vld [vmem:[%s150 + $0x10] sm:$0xff]
                %157 = vst [vmem:[%s151 + $0x10] sm:$0xff] %v156
                %v158 = vld [vmem:[%s150 + $0x18] sm:$0xff]
                %159 = vst [vmem:[%s151 + $0x18] sm:$0xff] %v158
                %v160 = vld [vmem:[%s150 + $0x20] sm:$0xff]
                %161 = vst [vmem:[%s151 + $0x20] sm:$0xff] %v160
                %v162 = vld [vmem:[%s150 + $0x28] sm:$0xff]
                %163 = vst [vmem:[%s151 + $0x28] sm:$0xff] %v162
                %v164 = vld [vmem:[%s150 + $0x30] sm:$0xff]
                %165 = vst [vmem:[%s151 + $0x30] sm:$0xff] %v164
                %v166 = vld [vmem:[%s150 + $0x38] sm:$0xff]
                %167 = vst [vmem:[%s151 + $0x38] sm:$0xff] %v166
                %v168 = vld [vmem:[%s150 + $0x80] sm:$0xff]
                %169 = vst [vmem:[%s151 + $0x40] sm:$0xff] %v168
                %v170 = vld [vmem:[%s150 + $0x88] sm:$0xff]
                %171 = vst [vmem:[%s151 + $0x48] sm:$0xff] %v170
                %v172 = vld [vmem:[%s150 + $0x90] sm:$0xff]
                %173 = vst [vmem:[%s151 + $0x50] sm:$0xff] %v172
                %v174 = vld [vmem:[%s150 + $0x98] sm:$0xff]
                %175 = vst [vmem:[%s151 + $0x58] sm:$0xff] %v174
                %v176 = vld [vmem:[%s150 + $0xa0] sm:$0xff]
                %177 = vst [vmem:[%s151 + $0x60] sm:$0xff] %v176
                %v178 = vld [vmem:[%s150 + $0xa8] sm:$0xff]
                %179 = vst [vmem:[%s151 + $0x68] sm:$0xff] %v178
                %v180 = vld [vmem:[%s150 + $0xb0] sm:$0xff]
                %181 = vst [vmem:[%s151 + $0x70] sm:$0xff] %v180
                %v182 = vld [vmem:[%s150 + $0xb8] sm:$0xff]
                %183 = vst [vmem:[%s151 + $0x78] sm:$0xff] %v182
                %v184 = vld [vmem:[%s150 + $0x100] sm:$0xff]
                %185 = vst [vmem:[%s151 + $0x80] sm:$0xff] %v184
                %v186 = vld [vmem:[%s150 + $0x108] sm:$0xff]
                %187 = vst [vmem:[%s151 + $0x88] sm:$0xff] %v186
                %v188 = vld [vmem:[%s150 + $0x110] sm:$0xff]
                %189 = vst [vmem:[%s151 + $0x90] sm:$0xff] %v188
                %v190 = vld [vmem:[%s150 + $0x118] sm:$0xff]
                %191 = vst [vmem:[%s151 + $0x98] sm:$0xff] %v190
                %v192 = vld [vmem:[%s150 + $0x120] sm:$0xff]
                %193 = vst [vmem:[%s151 + $0xa0] sm:$0xff] %v192
                %v194 = vld [vmem:[%s150 + $0x128] sm:$0xff]
                %195 = vst [vmem:[%s151 + $0xa8] sm:$0xff] %v194
                %v196 = vld [vmem:[%s150 + $0x130] sm:$0xff]
                %197 = vst [vmem:[%s151 + $0xb0] sm:$0xff] %v196
                %v198 = vld [vmem:[%s150 + $0x138] sm:$0xff]
                %199 = vst [vmem:[%s151 + $0xb8] sm:$0xff] %v198
                %v200 = vld [vmem:[%s150 + $0x180] sm:$0xff]
                %201 = vst [vmem:[%s151 + $0xc0] sm:$0xff] %v200
                %v202 = vld [vmem:[%s150 + $0x188] sm:$0xff]
                %203 = vst [vmem:[%s151 + $0xc8] sm:$0xff] %v202
                %v204 = vld [vmem:[%s150 + $0x190] sm:$0xff]
                %205 = vst [vmem:[%s151 + $0xd0] sm:$0xff] %v204
                %v206 = vld [vmem:[%s150 + $0x198] sm:$0xff]
                %207 = vst [vmem:[%s151 + $0xd8] sm:$0xff] %v206
                %v208 = vld [vmem:[%s150 + $0x1a0] sm:$0xff]
                %209 = vst [vmem:[%s151 + $0xe0] sm:$0xff] %v208
                %v210 = vld [vmem:[%s150 + $0x1a8] sm:$0xff]
                %211 = vst [vmem:[%s151 + $0xe8] sm:$0xff] %v210
                %v212 = vld [vmem:[%s150 + $0x1b0] sm:$0xff]
                %213 = vst [vmem:[%s151 + $0xf0] sm:$0xff] %v212
                %v214 = vld [vmem:[%s150 + $0x1b8] sm:$0xff]
                %215 = vst [vmem:[%s151 + $0xf8] sm:$0xff] %v214
              $region37: #{forward.3} parent=31 // loop_footer
                %s149 = sadd.s32 1, %s145
              $region38: #{forward.3} parent=31 // loop_footer_branch
                %144 = sbr.rel target = $region34
              $region39: #{forward.3} parent=31 // loop_exit
                _
            $region32: #{forward.3} parent=27 // pred_fallthru
              _
            // Predicated region
            $region40: #{forward.3} parent=27 // pred_check
              _
            $region41: #{forward.3} parent=27 // pred_check_branch
              %217 = sbr.rel target = $region43
            $region42: #{forward.3} parent=27 // pred_region
              _
            $region43: #{forward.3} parent=27 // pred_fallthru
              _
          $region28: #{forward.3} parent=23 // pred_fallthru
            _
          %218 = vnop
        $region24: #{forward.3} parent=19 // pred_fallthru
          _
        // Predicated region
        $region44: #{forward.3} parent=19 // pred_check
          %p219 = pneg %p76
        $region45: #{forward.3} parent=19 // pred_check_branch
          %221 = sbr.rel (%p219) target = $region47
        $region46: #{forward.3} parent=19 // pred_region
          %s222 = smul.u32 16, %s9
          %p223 = scmp.lt.s32.totalorder %s222, 31
          %s224 = scalar_select %p223, %s222, 31
          %s225 = scalar_lea.vmem %s2, %s224
          %s226 = smul.u32 16, %s9
        $region47: #{forward.3} parent=19 // pred_fallthru
          _
      $region20: #{forward.3} parent=5 // pred_fallthru
        _
      %p227 = scmp.le.s32.totalorder 1, %s9
      %p228 = scmp.lt.s32.totalorder %s9, 3
      %p229 = pnand %p227, %p228
      %p230 = pneg %p229
      // Predicated region
      $region48: #{forward.3} parent=5 // pred_check
        _
      $region49: #{forward.3} parent=5 // pred_check_branch
        %232 = sbr.rel (%p229) target = $region51
      $region50: #{forward.3} parent=5 // pred_region
        %s233 = ssub.s32 %s9, 1
        %s234 = sand.u32 %s43, 1
        %s235 = sand.u32 %s43, 1
        %s236 = smul.addr %s235, 256
        %s237 = scalar_lea.vmem [#allocation2], %s236
        // Predicated region
        $region52: #{forward.3} parent=50 // pred_check
          %p238 = pneg %p56
        $region53: #{forward.3} parent=50 // pred_check_branch
          %240 = sbr.rel (%p238) target = $region55
        $region54: #{forward.3} parent=50 // pred_region
          _
        $region55: #{forward.3} parent=50 // pred_fallthru
          _
        %p241 = pneg %p30
        %p242 = pneg %p27
        %s243 = sand.u32 %s43, 1
        %s244 = sand.u32 %s43, 1
        %s245 = smul.addr %s244, 256
        %s246 = scalar_lea.vmem [#allocation2], %s245
        %p247 = pneg %p56
        %p248 = pneg %p53
        %s249 = smul.u32 16, %s14
        %p250 = scmp.lt.s32.totalorder %s249, 31
        %s251 = scalar_select %p250, %s249, 31
        %s252 = scalar_lea.vmem %s2, %s251
        %p253 = pneg %p82
        %p254 = pneg %p79
        %p255 = pneg %p108
        %p256 = pneg %p105
        %s257 = smul.u32 16, %s14
        %p258 = scmp.lt.s32.totalorder %s257, 31
        %s259 = scalar_select %p258, %s257, 31
        %s260 = smul.addr %s259, 2
        %s261 = scalar_lea.vmem %s3, %s260
        %s262 = smul.u32 16, %s14
        %s263 = smul.u32 16, %s14
        %p264 = scmp.lt.s32.totalorder %s263, 31
        %s265 = scalar_select %p264, %s263, 31
        %s266 = scalar_lea.vmem %s2, %s265
        %s267 = smul.u32 16, %s14
        %s268 = smul.u32 16, %s14
        %p269 = scmp.lt.s32.totalorder %s268, 31
        %s270 = scalar_select %p269, %s268, 31
        %s271 = smul.addr %s270, 2
        %s272 = scalar_lea.vmem %s3, %s271
        %s273 = smul.u32 16, %s14
        %v275 = vld [vmem:[%s0] sm:$0x3]
        %v276 = vpack.c.bf16 %v275, %v275
        %v277 = vld [vmem:[%s237] sm:$0xff]
        %v278 = vld [vmem:[%s237 + $0x8] sm:$0xff]
        %v279 = vld [vmem:[%s237 + $0x10] sm:$0xff]
        %v280 = vld [vmem:[%s237 + $0x18] sm:$0xff]
        %v281 = vld [vmem:[%s237 + $0x20] sm:$0xff]
        %v282 = vld [vmem:[%s237 + $0x28] sm:$0xff]
        %v283 = vld [vmem:[%s237 + $0x30] sm:$0xff]
        %v284 = vld [vmem:[%s237 + $0x38] sm:$0xff]
        %v285 = vld [vmem:[%s237 + $0x40] sm:$0xff]
        %v286 = vld [vmem:[%s237 + $0x48] sm:$0xff]
        %v287 = vld [vmem:[%s237 + $0x50] sm:$0xff]
        %v288 = vld [vmem:[%s237 + $0x58] sm:$0xff]
        %v289 = vld [vmem:[%s237 + $0x60] sm:$0xff]
        %v290 = vld [vmem:[%s237 + $0x68] sm:$0xff]
        %v291 = vld [vmem:[%s237 + $0x70] sm:$0xff]
        %v292 = vld [vmem:[%s237 + $0x78] sm:$0xff]
        %v293 = vld [vmem:[%s237 + $0x80] sm:$0xff]
        %v294 = vld [vmem:[%s237 + $0x88] sm:$0xff]
        %v295 = vld [vmem:[%s237 + $0x90] sm:$0xff]
        %v296 = vld [vmem:[%s237 + $0x98] sm:$0xff]
        %v297 = vld [vmem:[%s237 + $0xa0] sm:$0xff]
        %v298 = vld [vmem:[%s237 + $0xa8] sm:$0xff]
        %v299 = vld [vmem:[%s237 + $0xb0] sm:$0xff]
        %v300 = vld [vmem:[%s237 + $0xb8] sm:$0xff]
        %v301 = vld [vmem:[%s237 + $0xc0] sm:$0xff]
        %v302 = vld [vmem:[%s237 + $0xc8] sm:$0xff]
        %v303 = vld [vmem:[%s237 + $0xd0] sm:$0xff]
        %v304 = vld [vmem:[%s237 + $0xd8] sm:$0xff]
        %v305 = vld [vmem:[%s237 + $0xe0] sm:$0xff]
        %v306 = vld [vmem:[%s237 + $0xe8] sm:$0xff]
        %v307 = vld [vmem:[%s237 + $0xf0] sm:$0xff]
        %v308 = vld [vmem:[%s237 + $0xf8] sm:$0xff]
        %v309 = vld [vmem:[%s266] sm:$0xff]
        %v310 = vld [vmem:[%s266 + $0x8] sm:$0xff]
        %v313 = vlaneseq
        %v314 = vshrl.u32 %v313, 7
        %v315 = vsub.s32 0, %v314
        %v316 = vrot.slane %v309, %v315
        %v317 = vlaneseq
        %v318 = vshrl.u32 %v317, 7
        %v319 = vsub.s32 1, %v318
        %v320 = vrot.slane %v309, %v319
        %v321 = vlaneseq
        %v322 = vshrl.u32 %v321, 7
        %v323 = vsub.s32 2, %v322
        %v324 = vrot.slane %v309, %v323
        %v325 = vlaneseq
        %v326 = vshrl.u32 %v325, 7
        %v327 = vsub.s32 3, %v326
        %v328 = vrot.slane %v309, %v327
        %v329 = vlaneseq
        %v330 = vshrl.u32 %v329, 7
        %v331 = vsub.s32 4, %v330
        %v332 = vrot.slane %v309, %v331
        %v333 = vlaneseq
        %v334 = vshrl.u32 %v333, 7
        %v335 = vsub.s32 5, %v334
        %v336 = vrot.slane %v309, %v335
        %v337 = vlaneseq
        %v338 = vshrl.u32 %v337, 7
        %v339 = vsub.s32 6, %v338
        %v340 = vrot.slane %v309, %v339
        %v341 = vlaneseq
        %v342 = vshrl.u32 %v341, 7
        %v343 = vsub.s32 7, %v342
        %v344 = vrot.slane %v309, %v343
        %v345 = vlaneseq
        %v346 = vshrl.u32 %v345, 7
        %v347 = vsub.s32 0, %v346
        %v348 = vrot.slane %v310, %v347
        %v349 = vlaneseq
        %v350 = vshrl.u32 %v349, 7
        %v351 = vsub.s32 1, %v350
        %v352 = vrot.slane %v310, %v351
        %v353 = vlaneseq
        %v354 = vshrl.u32 %v353, 7
        %v355 = vsub.s32 2, %v354
        %v356 = vrot.slane %v310, %v355
        %v357 = vlaneseq
        %v358 = vshrl.u32 %v357, 7
        %v359 = vsub.s32 3, %v358
        %v360 = vrot.slane %v310, %v359
        %v361 = vlaneseq
        %v362 = vshrl.u32 %v361, 7
        %v363 = vsub.s32 4, %v362
        %v364 = vrot.slane %v310, %v363
        %v365 = vlaneseq
        %v366 = vshrl.u32 %v365, 7
        %v367 = vsub.s32 5, %v366
        %v368 = vrot.slane %v310, %v367
        %v369 = vlaneseq
        %v370 = vshrl.u32 %v369, 7
        %v371 = vsub.s32 6, %v370
        %v372 = vrot.slane %v310, %v371
        %v373 = vlaneseq
        %v374 = vshrl.u32 %v373, 7
        %v375 = vsub.s32 7, %v374
        %v376 = vrot.slane %v310, %v375
        %v425 = vunpack.c.l.b16 %v277
        %v426 = vunpack.c.h.b16 %v277
        %v427 = vunpack.c.l.b16 %v278
        %v428 = vunpack.c.h.b16 %v278
        %v429 = vunpack.c.l.b16 %v279
        %v430 = vunpack.c.h.b16 %v279
        %v431 = vunpack.c.l.b16 %v280
        %v432 = vunpack.c.h.b16 %v280
        %v433 = vunpack.c.l.b16 %v281
        %v434 = vunpack.c.h.b16 %v281
        %v435 = vunpack.c.l.b16 %v282
        %v436 = vunpack.c.h.b16 %v282
        %v437 = vunpack.c.l.b16 %v283
        %v438 = vunpack.c.h.b16 %v283
        %v439 = vunpack.c.l.b16 %v284
        %v440 = vunpack.c.h.b16 %v284
        %v441 = vunpack.c.l.b16 %v285
        %v442 = vunpack.c.h.b16 %v285
        %v443 = vunpack.c.l.b16 %v286
        %v444 = vunpack.c.h.b16 %v286
        %v445 = vunpack.c.l.b16 %v287
        %v446 = vunpack.c.h.b16 %v287
        %v447 = vunpack.c.l.b16 %v288
        %v448 = vunpack.c.h.b16 %v288
        %v449 = vunpack.c.l.b16 %v289
        %v450 = vunpack.c.h.b16 %v289
        %v451 = vunpack.c.l.b16 %v290
        %v452 = vunpack.c.h.b16 %v290
        %v453 = vunpack.c.l.b16 %v291
        %v454 = vunpack.c.h.b16 %v291
        %v455 = vunpack.c.l.b16 %v292
        %v456 = vunpack.c.h.b16 %v292
        %v457 = vunpack.c.l.b16 %v293
        %v458 = vunpack.c.h.b16 %v293
        %v459 = vunpack.c.l.b16 %v294
        %v460 = vunpack.c.h.b16 %v294
        %v461 = vunpack.c.l.b16 %v295
        %v462 = vunpack.c.h.b16 %v295
        %v463 = vunpack.c.l.b16 %v296
        %v464 = vunpack.c.h.b16 %v296
        %v465 = vunpack.c.l.b16 %v297
        %v466 = vunpack.c.h.b16 %v297
        %v467 = vunpack.c.l.b16 %v298
        %v468 = vunpack.c.h.b16 %v298
        %v469 = vunpack.c.l.b16 %v299
        %v470 = vunpack.c.h.b16 %v299
        %v471 = vunpack.c.l.b16 %v300
        %v472 = vunpack.c.h.b16 %v300
        %v473 = vunpack.c.l.b16 %v301
        %v474 = vunpack.c.h.b16 %v301
        %v475 = vunpack.c.l.b16 %v302
        %v476 = vunpack.c.h.b16 %v302
        %v477 = vunpack.c.l.b16 %v303
        %v478 = vunpack.c.h.b16 %v303
        %v479 = vunpack.c.l.b16 %v304
        %v480 = vunpack.c.h.b16 %v304
        %v481 = vunpack.c.l.b16 %v305
        %v482 = vunpack.c.h.b16 %v305
        %v483 = vunpack.c.l.b16 %v306
        %v484 = vunpack.c.h.b16 %v306
        %v485 = vunpack.c.l.b16 %v307
        %v486 = vunpack.c.h.b16 %v307
        %v487 = vunpack.c.l.b16 %v308
        %v488 = vunpack.c.h.b16 %v308
        %v489 = vpack.c.b16 %v441, %v425
        %v490 = vpack.c.b16 %v442, %v426
        %v491 = vpack.c.b16 %v443, %v427
        %v492 = vpack.c.b16 %v444, %v428
        %v493 = vpack.c.b16 %v445, %v429
        %v494 = vpack.c.b16 %v446, %v430
        %v495 = vpack.c.b16 %v447, %v431
        %v496 = vpack.c.b16 %v448, %v432
        %v497 = vpack.c.b16 %v449, %v433
        %v498 = vpack.c.b16 %v450, %v434
        %v499 = vpack.c.b16 %v451, %v435
        %v500 = vpack.c.b16 %v452, %v436
        %v501 = vpack.c.b16 %v453, %v437
        %v502 = vpack.c.b16 %v454, %v438
        %v503 = vpack.c.b16 %v455, %v439
        %v504 = vpack.c.b16 %v456, %v440
        %v505 = vpack.c.b16 %v473, %v457
        %v506 = vpack.c.b16 %v474, %v458
        %v507 = vpack.c.b16 %v475, %v459
        %v508 = vpack.c.b16 %v476, %v460
        %v509 = vpack.c.b16 %v477, %v461
        %v510 = vpack.c.b16 %v478, %v462
        %v511 = vpack.c.b16 %v479, %v463
        %v512 = vpack.c.b16 %v480, %v464
        %v513 = vpack.c.b16 %v481, %v465
        %v514 = vpack.c.b16 %v482, %v466
        %v515 = vpack.c.b16 %v483, %v467
        %v516 = vpack.c.b16 %v484, %v468
        %v517 = vpack.c.b16 %v485, %v469
        %v518 = vpack.c.b16 %v486, %v470
        %v519 = vpack.c.b16 %v487, %v471
        %v520 = vpack.c.b16 %v488, %v472
        %vm553 = vcmask 261120
        %v555 = vsel %vm553, %v276, 0
        %557 = vmatprep.subr.bf16.mxu0 %v490
        %558 = vmatpush1.bf16.msra.mxu0 %v489
        %559 = vmatprep.subr.bf16.mxu0 %v506
        %560 = vmatpush1.bf16.msra.mxu0 %v505
        %561 = vmatprep.subr.bf16.mxu0 0
        %562 = vmatpush1.bf16.msra.mxu0 0
        %563 = vmatprep.subr.bf16.mxu0 0
        %564 = vmatpush1.bf16.msra.mxu0 0
        %565 = vmatprep.subr.bf16.mxu0 0
        %566 = vmatpush1.bf16.msra.mxu0 0
        %567 = vmatprep.subr.bf16.mxu0 0
        %568 = vmatpush1.bf16.msra.mxu0 0
        %569 = vmatprep.subr.bf16.mxu0 0
        %570 = vmatpush1.bf16.msra.mxu0 0
        %571 = vmatprep.subr.bf16.mxu0 0
        %572 = vmatpush1.bf16.msra.mxu0 0
        %573 = vmatprep.subr.bf16.mxu0 0
        %574 = vmatpush1.bf16.msra.mxu0 0
        %575 = vmatprep.subr.bf16.mxu0 0
        %576 = vmatpush1.bf16.msra.mxu0 0
        %577 = vmatprep.subr.bf16.mxu0 0
        %578 = vmatpush1.bf16.msra.mxu0 0
        %579 = vmatprep.subr.bf16.mxu0 0
        %580 = vmatpush1.bf16.msra.mxu0 0
        %581 = vmatprep.subr.bf16.mxu0 0
        %582 = vmatpush1.bf16.msra.mxu0 0
        %583 = vmatprep.subr.bf16.mxu0 0
        %584 = vmatpush1.bf16.msra.mxu0 0
        %585 = vmatprep.subr.bf16.mxu0 0
        %586 = vmatpush1.bf16.msra.mxu0 0
        %587 = vmatprep.subr.bf16.mxu0 0
        %588 = vmatpush1.bf16.msra.mxu0 0
        %589 = vmatprep.mubr.bf16.mxu0 0
        %590 = vmatmul.mubr.bf16.gmra.mrb[0].mxu0 %v555
        %v591 = vpop.f32.mrb[0].mxu0
        %v592 = vadd.f32 %v316, %v591
        %v593 = vpop.f32.mrb[0].mxu0
        %v594 = vadd.f32 %v320, %v593
        %v595 = vpop.f32.mrb[0].mxu0
        %v596 = vpop.f32.mrb[0].mxu0
        %597 = vdwg.mxu0
        %598 = vmatprep.subr.bf16.mxu0 %v492
        %599 = vmatpush1.bf16.msra.mxu0 %v491
        %600 = vmatprep.subr.bf16.mxu0 %v508
        %601 = vmatpush1.bf16.msra.mxu0 %v507
        %602 = vmatprep.subr.bf16.mxu0 0
        %603 = vmatpush1.bf16.msra.mxu0 0
        %604 = vmatprep.subr.bf16.mxu0 0
        %605 = vmatpush1.bf16.msra.mxu0 0
        %606 = vmatprep.subr.bf16.mxu0 0
        %607 = vmatpush1.bf16.msra.mxu0 0
        %608 = vmatprep.subr.bf16.mxu0 0
        %609 = vmatpush1.bf16.msra.mxu0 0
        %610 = vmatprep.subr.bf16.mxu0 0
        %611 = vmatpush1.bf16.msra.mxu0 0
        %612 = vmatprep.subr.bf16.mxu0 0
        %613 = vmatpush1.bf16.msra.mxu0 0
        %614 = vmatprep.subr.bf16.mxu0 0
        %615 = vmatpush1.bf16.msra.mxu0 0
        %616 = vmatprep.subr.bf16.mxu0 0
        %617 = vmatpush1.bf16.msra.mxu0 0
        %618 = vmatprep.subr.bf16.mxu0 0
        %619 = vmatpush1.bf16.msra.mxu0 0
        %620 = vmatprep.subr.bf16.mxu0 0
        %621 = vmatpush1.bf16.msra.mxu0 0
        %622 = vmatprep.subr.bf16.mxu0 0
        %623 = vmatpush1.bf16.msra.mxu0 0
        %624 = vmatprep.subr.bf16.mxu0 0
        %625 = vmatpush1.bf16.msra.mxu0 0
        %626 = vmatprep.subr.bf16.mxu0 0
        %627 = vmatpush1.bf16.msra.mxu0 0
        %628 = vmatprep.subr.bf16.mxu0 0
        %629 = vmatpush1.bf16.msra.mxu0 0
        %630 = vmatprep.mubr.bf16.mxu0 0
        %631 = vmatmul.mubr.bf16.gmra.mrb[0].mxu0 %v555
        %v632 = vpop.f32.mrb[0].mxu0
        %v633 = vadd.f32 %v324, %v632
        %v634 = vpop.f32.mrb[0].mxu0
        %v635 = vadd.f32 %v328, %v634
        %v636 = vpop.f32.mrb[0].mxu0
        %v637 = vpop.f32.mrb[0].mxu0
        %638 = vdwg.mxu0
        %639 = vmatprep.subr.bf16.mxu0 %v494
        %640 = vmatpush1.bf16.msra.mxu0 %v493
        %641 = vmatprep.subr.bf16.mxu0 %v510
        %642 = vmatpush1.bf16.msra.mxu0 %v509
        %643 = vmatprep.subr.bf16.mxu0 0
        %644 = vmatpush1.bf16.msra.mxu0 0
        %645 = vmatprep.subr.bf16.mxu0 0
        %646 = vmatpush1.bf16.msra.mxu0 0
        %647 = vmatprep.subr.bf16.mxu0 0
        %648 = vmatpush1.bf16.msra.mxu0 0
        %649 = vmatprep.subr.bf16.mxu0 0
        %650 = vmatpush1.bf16.msra.mxu0 0
        %651 = vmatprep.subr.bf16.mxu0 0
        %652 = vmatpush1.bf16.msra.mxu0 0
        %653 = vmatprep.subr.bf16.mxu0 0
        %654 = vmatpush1.bf16.msra.mxu0 0
        %655 = vmatprep.subr.bf16.mxu0 0
        %656 = vmatpush1.bf16.msra.mxu0 0
        %657 = vmatprep.subr.bf16.mxu0 0
        %658 = vmatpush1.bf16.msra.mxu0 0
        %659 = vmatprep.subr.bf16.mxu0 0
        %660 = vmatpush1.bf16.msra.mxu0 0
        %661 = vmatprep.subr.bf16.mxu0 0
        %662 = vmatpush1.bf16.msra.mxu0 0
        %663 = vmatprep.subr.bf16.mxu0 0
        %664 = vmatpush1.bf16.msra.mxu0 0
        %665 = vmatprep.subr.bf16.mxu0 0
        %666 = vmatpush1.bf16.msra.mxu0 0
        %667 = vmatprep.subr.bf16.mxu0 0
        %668 = vmatpush1.bf16.msra.mxu0 0
        %669 = vmatprep.subr.bf16.mxu0 0
        %670 = vmatpush1.bf16.msra.mxu0 0
        %671 = vmatprep.mubr.bf16.mxu0 0
        %672 = vmatmul.mubr.bf16.gmra.mrb[0].mxu0 %v555
        %v673 = vpop.f32.mrb[0].mxu0
        %v674 = vadd.f32 %v332, %v673
        %v675 = vpop.f32.mrb[0].mxu0
        %v676 = vadd.f32 %v336, %v675
        %v677 = vpop.f32.mrb[0].mxu0
        %v678 = vpop.f32.mrb[0].mxu0
        %679 = vdwg.mxu0
        %680 = vmatprep.subr.bf16.mxu0 %v496
        %681 = vmatpush1.bf16.msra.mxu0 %v495
        %682 = vmatprep.subr.bf16.mxu0 %v512
        %683 = vmatpush1.bf16.msra.mxu0 %v511
        %684 = vmatprep.subr.bf16.mxu0 0
        %685 = vmatpush1.bf16.msra.mxu0 0
        %686 = vmatprep.subr.bf16.mxu0 0
        %687 = vmatpush1.bf16.msra.mxu0 0
        %688 = vmatprep.subr.bf16.mxu0 0
        %689 = vmatpush1.bf16.msra.mxu0 0
        %690 = vmatprep.subr.bf16.mxu0 0
        %691 = vmatpush1.bf16.msra.mxu0 0
        %692 = vmatprep.subr.bf16.mxu0 0
        %693 = vmatpush1.bf16.msra.mxu0 0
        %694 = vmatprep.subr.bf16.mxu0 0
        %695 = vmatpush1.bf16.msra.mxu0 0
        %696 = vmatprep.subr.bf16.mxu0 0
        %697 = vmatpush1.bf16.msra.mxu0 0
        %698 = vmatprep.subr.bf16.mxu0 0
        %699 = vmatpush1.bf16.msra.mxu0 0
        %700 = vmatprep.subr.bf16.mxu0 0
        %701 = vmatpush1.bf16.msra.mxu0 0
        %702 = vmatprep.subr.bf16.mxu0 0
        %703 = vmatpush1.bf16.msra.mxu0 0
        %704 = vmatprep.subr.bf16.mxu0 0
        %705 = vmatpush1.bf16.msra.mxu0 0
        %706 = vmatprep.subr.bf16.mxu0 0
        %707 = vmatpush1.bf16.msra.mxu0 0
        %708 = vmatprep.subr.bf16.mxu0 0
        %709 = vmatpush1.bf16.msra.mxu0 0
        %710 = vmatprep.subr.bf16.mxu0 0
        %711 = vmatpush1.bf16.msra.mxu0 0
        %712 = vmatprep.mubr.bf16.mxu0 0
        %713 = vmatmul.mubr.bf16.gmra.mrb[0].mxu0 %v555
        %v714 = vpop.f32.mrb[0].mxu0
        %v715 = vadd.f32 %v340, %v714
        %v716 = vpop.f32.mrb[0].mxu0
        %v717 = vadd.f32 %v344, %v716
        %v718 = vpop.f32.mrb[0].mxu0
        %v719 = vpop.f32.mrb[0].mxu0
        %720 = vdwg.mxu0
        %721 = vmatprep.subr.bf16.mxu0 %v498
        %722 = vmatpush1.bf16.msra.mxu0 %v497
        %723 = vmatprep.subr.bf16.mxu0 %v514
        %724 = vmatpush1.bf16.msra.mxu0 %v513
        %725 = vmatprep.subr.bf16.mxu0 0
        %726 = vmatpush1.bf16.msra.mxu0 0
        %727 = vmatprep.subr.bf16.mxu0 0
        %728 = vmatpush1.bf16.msra.mxu0 0
        %729 = vmatprep.subr.bf16.mxu0 0
        %730 = vmatpush1.bf16.msra.mxu0 0
        %731 = vmatprep.subr.bf16.mxu0 0
        %732 = vmatpush1.bf16.msra.mxu0 0
        %733 = vmatprep.subr.bf16.mxu0 0
        %734 = vmatpush1.bf16.msra.mxu0 0
        %735 = vmatprep.subr.bf16.mxu0 0
        %736 = vmatpush1.bf16.msra.mxu0 0
        %737 = vmatprep.subr.bf16.mxu0 0
        %738 = vmatpush1.bf16.msra.mxu0 0
        %739 = vmatprep.subr.bf16.mxu0 0
        %740 = vmatpush1.bf16.msra.mxu0 0
        %741 = vmatprep.subr.bf16.mxu0 0
        %742 = vmatpush1.bf16.msra.mxu0 0
        %743 = vmatprep.subr.bf16.mxu0 0
        %744 = vmatpush1.bf16.msra.mxu0 0
        %745 = vmatprep.subr.bf16.mxu0 0
        %746 = vmatpush1.bf16.msra.mxu0 0
        %747 = vmatprep.subr.bf16.mxu0 0
        %748 = vmatpush1.bf16.msra.mxu0 0
        %749 = vmatprep.subr.bf16.mxu0 0
        %750 = vmatpush1.bf16.msra.mxu0 0
        %751 = vmatprep.subr.bf16.mxu0 0
        %752 = vmatpush1.bf16.msra.mxu0 0
        %753 = vmatprep.mubr.bf16.mxu0 0
        %754 = vmatmul.mubr.bf16.gmra.mrb[0].mxu0 %v555
        %v755 = vpop.f32.mrb[0].mxu0
        %v756 = vadd.f32 %v348, %v755
        %v757 = vpop.f32.mrb[0].mxu0
        %v758 = vadd.f32 %v352, %v757
        %v759 = vpop.f32.mrb[0].mxu0
        %v760 = vpop.f32.mrb[0].mxu0
        %761 = vdwg.mxu0
        %762 = vmatprep.subr.bf16.mxu0 %v500
        %763 = vmatpush1.bf16.msra.mxu0 %v499
        %764 = vmatprep.subr.bf16.mxu0 %v516
        %765 = vmatpush1.bf16.msra.mxu0 %v515
        %766 = vmatprep.subr.bf16.mxu0 0
        %767 = vmatpush1.bf16.msra.mxu0 0
        %768 = vmatprep.subr.bf16.mxu0 0
        %769 = vmatpush1.bf16.msra.mxu0 0
        %770 = vmatprep.subr.bf16.mxu0 0
        %771 = vmatpush1.bf16.msra.mxu0 0
        %772 = vmatprep.subr.bf16.mxu0 0
        %773 = vmatpush1.bf16.msra.mxu0 0
        %774 = vmatprep.subr.bf16.mxu0 0
        %775 = vmatpush1.bf16.msra.mxu0 0
        %776 = vmatprep.subr.bf16.mxu0 0
        %777 = vmatpush1.bf16.msra.mxu0 0
        %778 = vmatprep.subr.bf16.mxu0 0
        %779 = vmatpush1.bf16.msra.mxu0 0
        %780 = vmatprep.subr.bf16.mxu0 0
        %781 = vmatpush1.bf16.msra.mxu0 0
        %782 = vmatprep.subr.bf16.mxu0 0
        %783 = vmatpush1.bf16.msra.mxu0 0
        %784 = vmatprep.subr.bf16.mxu0 0
        %785 = vmatpush1.bf16.msra.mxu0 0
        %786 = vmatprep.subr.bf16.mxu0 0
        %787 = vmatpush1.bf16.msra.mxu0 0
        %788 = vmatprep.subr.bf16.mxu0 0
        %789 = vmatpush1.bf16.msra.mxu0 0
        %790 = vmatprep.subr.bf16.mxu0 0
        %791 = vmatpush1.bf16.msra.mxu0 0
        %792 = vmatprep.subr.bf16.mxu0 0
        %793 = vmatpush1.bf16.msra.mxu0 0
        %794 = vmatprep.mubr.bf16.mxu0 0
        %795 = vmatmul.mubr.bf16.gmra.mrb[0].mxu0 %v555
        %v796 = vpop.f32.mrb[0].mxu0
        %v797 = vadd.f32 %v356, %v796
        %v798 = vpop.f32.mrb[0].mxu0
        %v799 = vadd.f32 %v360, %v798
        %v800 = vpop.f32.mrb[0].mxu0
        %v801 = vpop.f32.mrb[0].mxu0
        %802 = vdwg.mxu0
        %803 = vmatprep.subr.bf16.mxu0 %v502
        %804 = vmatpush1.bf16.msra.mxu0 %v501
        %805 = vmatprep.subr.bf16.mxu0 %v518
        %806 = vmatpush1.bf16.msra.mxu0 %v517
        %807 = vmatprep.subr.bf16.mxu0 0
        %808 = vmatpush1.bf16.msra.mxu0 0
        %809 = vmatprep.subr.bf16.mxu0 0
        %810 = vmatpush1.bf16.msra.mxu0 0
        %811 = vmatprep.subr.bf16.mxu0 0
        %812 = vmatpush1.bf16.msra.mxu0 0
        %813 = vmatprep.subr.bf16.mxu0 0
        %814 = vmatpush1.bf16.msra.mxu0 0
        %815 = vmatprep.subr.bf16.mxu0 0
        %816 = vmatpush1.bf16.msra.mxu0 0
        %817 = vmatprep.subr.bf16.mxu0 0
        %818 = vmatpush1.bf16.msra.mxu0 0
        %819 = vmatprep.subr.bf16.mxu0 0
        %820 = vmatpush1.bf16.msra.mxu0 0
        %821 = vmatprep.subr.bf16.mxu0 0
        %822 = vmatpush1.bf16.msra.mxu0 0
        %823 = vmatprep.subr.bf16.mxu0 0
        %824 = vmatpush1.bf16.msra.mxu0 0
        %825 = vmatprep.subr.bf16.mxu0 0
        %826 = vmatpush1.bf16.msra.mxu0 0
        %827 = vmatprep.subr.bf16.mxu0 0
        %828 = vmatpush1.bf16.msra.mxu0 0
        %829 = vmatprep.subr.bf16.mxu0 0
        %830 = vmatpush1.bf16.msra.mxu0 0
        %831 = vmatprep.subr.bf16.mxu0 0
        %832 = vmatpush1.bf16.msra.mxu0 0
        %833 = vmatprep.subr.bf16.mxu0 0
        %834 = vmatpush1.bf16.msra.mxu0 0
        %835 = vmatprep.mubr.bf16.mxu0 0
        %836 = vmatmul.mubr.bf16.gmra.mrb[0].mxu0 %v555
        %v837 = vpop.f32.mrb[0].mxu0
        %v838 = vadd.f32 %v364, %v837
        %v839 = vpop.f32.mrb[0].mxu0
        %v840 = vadd.f32 %v368, %v839
        %v841 = vpop.f32.mrb[0].mxu0
        %v842 = vpop.f32.mrb[0].mxu0
        %843 = vdwg.mxu0
        %844 = vmatprep.subr.bf16.mxu0 %v504
        %845 = vmatpush1.bf16.msra.mxu0 %v503
        %846 = vmatprep.subr.bf16.mxu0 %v520
        %847 = vmatpush1.bf16.msra.mxu0 %v519
        %848 = vmatprep.subr.bf16.mxu0 0
        %849 = vmatpush1.bf16.msra.mxu0 0
        %850 = vmatprep.subr.bf16.mxu0 0
        %851 = vmatpush1.bf16.msra.mxu0 0
        %852 = vmatprep.subr.bf16.mxu0 0
        %853 = vmatpush1.bf16.msra.mxu0 0
        %854 = vmatprep.subr.bf16.mxu0 0
        %855 = vmatpush1.bf16.msra.mxu0 0
        %856 = vmatprep.subr.bf16.mxu0 0
        %857 = vmatpush1.bf16.msra.mxu0 0
        %858 = vmatprep.subr.bf16.mxu0 0
        %859 = vmatpush1.bf16.msra.mxu0 0
        %860 = vmatprep.subr.bf16.mxu0 0
        %861 = vmatpush1.bf16.msra.mxu0 0
        %862 = vmatprep.subr.bf16.mxu0 0
        %863 = vmatpush1.bf16.msra.mxu0 0
        %864 = vmatprep.subr.bf16.mxu0 0
        %865 = vmatpush1.bf16.msra.mxu0 0
        %866 = vmatprep.subr.bf16.mxu0 0
        %867 = vmatpush1.bf16.msra.mxu0 0
        %868 = vmatprep.subr.bf16.mxu0 0
        %869 = vmatpush1.bf16.msra.mxu0 0
        %870 = vmatprep.subr.bf16.mxu0 0
        %871 = vmatpush1.bf16.msra.mxu0 0
        %872 = vmatprep.subr.bf16.mxu0 0
        %873 = vmatpush1.bf16.msra.mxu0 0
        %874 = vmatprep.subr.bf16.mxu0 0
        %875 = vmatpush1.bf16.msra.mxu0 0
        %876 = vmatprep.mubr.bf16.mxu0 0
        %877 = vmatmul.mubr.bf16.gmra.mrb[0].mxu0 %v555
        %v878 = vpop.f32.mrb[0].mxu0
        %v879 = vadd.f32 %v372, %v878
        %v880 = vpop.f32.mrb[0].mxu0
        %v881 = vadd.f32 %v376, %v880
        %v882 = vpop.f32.mrb[0].mxu0
        %v883 = vpop.f32.mrb[0].mxu0
        %884 = vdwg.mxu0
        %v901 = vcombine.low %v592, %v594
        %v902 = vcombine.low %v633, %v635
        %v904 = vunpack.c.l.s4 1983009808
        %v905 = vunpack.c.0.s8 %v904
        %v906 = vlaneseq
        %v907 = vshrl.u32 %v906, 7
        %v908 = vsub.s32 %v905, %v907
        %v909 = vrot.slane %v901, %v908
        %v911 = vunpack.c.l.s4 1983009808
        %v912 = vunpack.c.0.s8 %v911
        %v913 = vlaneseq
        %v914 = vshrl.u32 %v913, 7
        %v915 = vsub.s32 %v912, %v914
        %v916 = vrot.slane %v902, %v915
        %v917 = vcombine.low %v909, %v916
        %v918 = vcombine.low %v674, %v676
        %v919 = vcombine.low %v715, %v717
        %v921 = vunpack.c.l.s4 1983009808
        %v922 = vunpack.c.0.s8 %v921
        %v923 = vlaneseq
        %v924 = vshrl.u32 %v923, 7
        %v925 = vsub.s32 %v922, %v924
        %v926 = vrot.slane %v918, %v925
        %v928 = vunpack.c.l.s4 1983009808
        %v929 = vunpack.c.0.s8 %v928
        %v930 = vlaneseq
        %v931 = vshrl.u32 %v930, 7
        %v932 = vsub.s32 %v929, %v931
        %v933 = vrot.slane %v919, %v932
        %v934 = vcombine.low %v926, %v933
        %v935 = vcombine.low %v756, %v758
        %v936 = vcombine.low %v797, %v799
        %v938 = vunpack.c.l.s4 1983009808
        %v939 = vunpack.c.0.s8 %v938
        %v940 = vlaneseq
        %v941 = vshrl.u32 %v940, 7
        %v942 = vsub.s32 %v939, %v941
        %v943 = vrot.slane %v935, %v942
        %v945 = vunpack.c.l.s4 1983009808
        %v946 = vunpack.c.0.s8 %v945
        %v947 = vlaneseq
        %v948 = vshrl.u32 %v947, 7
        %v949 = vsub.s32 %v946, %v948
        %v950 = vrot.slane %v936, %v949
        %v951 = vcombine.low %v943, %v950
        %v952 = vcombine.low %v838, %v840
        %v953 = vcombine.low %v879, %v881
        %v955 = vunpack.c.l.s4 1983009808
        %v956 = vunpack.c.0.s8 %v955
        %v957 = vlaneseq
        %v958 = vshrl.u32 %v957, 7
        %v959 = vsub.s32 %v956, %v958
        %v960 = vrot.slane %v952, %v959
        %v962 = vunpack.c.l.s4 1983009808
        %v963 = vunpack.c.0.s8 %v962
        %v964 = vlaneseq
        %v965 = vshrl.u32 %v964, 7
        %v966 = vsub.s32 %v963, %v965
        %v967 = vrot.slane %v953, %v966
        %v968 = vcombine.low %v960, %v967
        %973 = vst [vmem:[%s272] sm:$0xff] %v917
        %974 = vst [vmem:[%s272 + $0x8] sm:$0xff] %v934
        %975 = vst [vmem:[%s272 + $0x10] sm:$0xff] %v951
        %976 = vst [vmem:[%s272 + $0x18] sm:$0xff] %v968
        %s977 = smul.u32 16, %s14
        %p978 = scmp.lt.s32.totalorder %s977, 31
        %s979 = scalar_select %p978, %s977, 31
        %s980 = smul.addr %s979, 2
        %s981 = scalar_lea.vmem %s3, %s980
        // Predicated region
        $region56: #{forward.3} parent=50 // pred_check
          %p982 = pneg %p105
        $region57: #{forward.3} parent=50 // pred_check_branch
          %984 = sbr.rel (%p982) target = $region59
        $region58: #{forward.3} parent=50 // pred_region
          %s985 = smul.u32 16, %s14
        $region59: #{forward.3} parent=50 // pred_fallthru
          _
      $region51: #{forward.3} parent=5 // pred_fallthru
        _
      %p986 = scmp.le.s32.totalorder 2, %s9
      // Predicated region
      $region60: #{forward.3} parent=5 // pred_check
        %p987 = pneg %p986
      $region61: #{forward.3} parent=5 // pred_check_branch
        %989 = sbr.rel (%p987) target = $region63
      $region62: #{forward.3} parent=5 // pred_region
        %s990 = ssub.s32 %s9, 2
        // Predicated region
        $region64: #{forward.3} parent=62 // pred_check
          %p991 = pneg %p111
        $region65: #{forward.3} parent=62 // pred_check_branch
          %993 = sbr.rel (%p991) target = $region67
        $region66: #{forward.3} parent=62 // pred_region
          %s994 = smul.u32 16, %s15
          %p995 = scmp.lt.s32.totalorder %s994, 31
          %s996 = scalar_select %p995, %s994, 31
          %s997 = smul.addr %s996, 2
          %s998 = scalar_lea.vmem %s3, %s997
        $region67: #{forward.3} parent=62 // pred_fallthru
          _
      $region63: #{forward.3} parent=5 // pred_fallthru
        _
    $region6: #{forward.3} parent=1 // loop_footer
      %s13 = sadd.s32 1, %s9
    $region7: #{forward.3} parent=1 // loop_footer_branch
      %8 = sbr.rel target = $region3
    $region8: #{forward.3} parent=1 // loop_exit
      _

// kernel: forward.2
$region0: #{forward.2}
  #allocation0 [shape = 'u32[]', space=smem, size = 0x4, offset = 0x4, fixed_abs, tag = 'smem constant byte address 0x4 - core index']
  #allocation1 [shape = 'u32[144,128]{1,0:T(1,128)}', space=vmem, size = 0x12000, scoped, tag = 'internal scratch']
  %s0 = inlined_call_operand.vmem [shape: f32[8,768], index: 0, kind: input, shape index: {}]
  %s1 = inlined_call_operand.vmem [shape: bf16[768,32], index: 1, kind: input, shape index: {}]
  %s2 = inlined_call_operand.vmem [shape: f32[1,32], index: 2, kind: input, shape index: {}]
  %s3 = inlined_call_operand.vmem [shape: f32[1,32], index: 3, kind: input, shape index: {}]
  %s4 = inlined_call_operand.vmem [shape: f32[8,32], index: 4, kind: input, shape index: {}]
  %s5 = inlined_call_operand.vmem [shape: f32[2,1,32], index: 5, kind: input, shape index: {}]
  %s6 = inlined_call_operand.vmem [shape: f32[2,1,32], index: 6, kind: input, shape index: {}]
  %s7 = inlined_call_operand.vmem [shape: bf16[2,32,96], index: 7, kind: input, shape index: {}]
  %s8 = inlined_call_operand.vmem [shape: f32[2,1,96], index: 8, kind: input, shape index: {}]
  %s9 = inlined_call_operand.vmem [shape: bf16[2,32,32], index: 9, kind: input, shape index: {}]
  %s10 = inlined_call_operand.vmem [shape: f32[2,1,32], index: 10, kind: input, shape index: {}]
  %s11 = inlined_call_operand.vmem [shape: f32[2,1,32], index: 11, kind: input, shape index: {}]
  %s12 = inlined_call_operand.vmem [shape: f32[2,1,32], index: 12, kind: input, shape index: {}]
  %s13 = inlined_call_operand.vmem [shape: bf16[2,32,128], index: 13, kind: input, shape index: {}]
  %s14 = inlined_call_operand.vmem [shape: f32[2,1,128], index: 14, kind: input, shape index: {}]
  %s15 = inlined_call_operand.vmem [shape: bf16[2,128,32], index: 15, kind: input, shape index: {}]
  %s16 = inlined_call_operand.vmem [shape: f32[2,1,32], index: 16, kind: input, shape index: {}]
  %s17 = inlined_call_operand.vmem [shape: f32[1,32], index: 17, kind: input, shape index: {}]
  %s18 = inlined_call_operand.vmem [shape: f32[1,32], index: 18, kind: input, shape index: {}]
  %s19 = inlined_call_operand.vmem [shape: f32[2,32], index: 19, kind: output, shape index: {}]
  %s20 = sld [smem:[#allocation0]]
  $region86: #{forward.2} parent=0
    _
  %s22 = ssub.s32 1, %s20
  %s23 = scalar_select 0, %s22, %s20
  // Predicated region
  $region2: #{forward.2} parent=0 // pred_check
    _
  $region3: #{forward.2} parent=0 // pred_check_branch
    %25 = sbr.rel (0) target = $region5
  $region4: #{forward.2} parent=0 // pred_region
    _
  $region5: #{forward.2} parent=0 // pred_fallthru
    _
  // Predicated region
  $region6: #{forward.2} parent=0 // pred_check
    _
  $region7: #{forward.2} parent=0 // pred_check_branch
    %27 = sbr.rel (0) target = $region9
  $region8: #{forward.2} parent=0 // pred_region
    _
  $region9: #{forward.2} parent=0 // pred_fallthru
    _
  // Predicated region
  $region10: #{forward.2} parent=0 // pred_check
    _
  $region11: #{forward.2} parent=0 // pred_check_branch
    %29 = sbr.rel (0) target = $region13
  $region12: #{forward.2} parent=0 // pred_region
    _
  $region13: #{forward.2} parent=0 // pred_fallthru
    _
  // Predicated region
  $region14: #{forward.2} parent=0 // pred_check
    _
  $region15: #{forward.2} parent=0 // pred_check_branch
    %31 = sbr.rel (0) target = $region17
  $region16: #{forward.2} parent=0 // pred_region
    _
  $region17: #{forward.2} parent=0 // pred_fallthru
    _
  // Predicated region
  $region18: #{forward.2} parent=0 // pred_check
    _
  $region19: #{forward.2} parent=0 // pred_check_branch
    %33 = sbr.rel (0) target = $region21
  $region20: #{forward.2} parent=0 // pred_region
    _
  $region21: #{forward.2} parent=0 // pred_fallthru
    _
  // Predicated region
  $region22: #{forward.2} parent=0 // pred_check
    _
  $region23: #{forward.2} parent=0 // pred_check_branch
    %35 = sbr.rel (0) target = $region25
  $region24: #{forward.2} parent=0 // pred_region
    _
  $region25: #{forward.2} parent=0 // pred_fallthru
    _
  // Predicated region
  $region26: #{forward.2} parent=0 // pred_check
    _
  $region27: #{forward.2} parent=0 // pred_check_branch
    %37 = sbr.rel (0) target = $region29
  $region28: #{forward.2} parent=0 // pred_region
    _
  $region29: #{forward.2} parent=0 // pred_fallthru
    _
  // Predicated region
  $region30: #{forward.2} parent=0 // pred_check
    _
  $region31: #{forward.2} parent=0 // pred_check_branch
    %39 = sbr.rel (0) target = $region33
  $region32: #{forward.2} parent=0 // pred_region
    _
  $region33: #{forward.2} parent=0 // pred_fallthru
    _
  // Predicated region
  $region34: #{forward.2} parent=0 // pred_check
    _
  $region35: #{forward.2} parent=0 // pred_check_branch
    %41 = sbr.rel (0) target = $region37
  $region36: #{forward.2} parent=0 // pred_region
    _
  $region37: #{forward.2} parent=0 // pred_fallthru
    _
  // Predicated region
  $region38: #{forward.2} parent=0 // pred_check
    _
  $region39: #{forward.2} parent=0 // pred_check_branch
    %43 = sbr.rel (0) target = $region41
  $region40: #{forward.2} parent=0 // pred_region
    _
  $region41: #{forward.2} parent=0 // pred_fallthru
    _
  // Predicated region
  $region42: #{forward.2} parent=0 // pred_check
    _
  $region43: #{forward.2} parent=0 // pred_check_branch
    %45 = sbr.rel (0) target = $region45
  $region44: #{forward.2} parent=0 // pred_region
    _
  $region45: #{forward.2} parent=0 // pred_fallthru
    _
  // Predicated region
  $region46: #{forward.2} parent=0 // pred_check
    _
  $region47: #{forward.2} parent=0 // pred_check_branch
    %47 = sbr.rel (0) target = $region49
  $region48: #{forward.2} parent=0 // pred_region
    _
  $region49: #{forward.2} parent=0 // pred_fallthru
    _
  // Predicated region
  $region50: #{forward.2} parent=0 // pred_check
    _
  $region51: #{forward.2} parent=0 // pred_check_branch
    %49 = sbr.rel (0) target = $region53
  $region52: #{forward.2} parent=0 // pred_region
    _
  $region53: #{forward.2} parent=0 // pred_fallthru
    _
  // Predicated region
  $region54: #{forward.2} parent=0 // pred_check
    _
  $region55: #{forward.2} parent=0 // pred_check_branch
    %51 = sbr.rel (0) target = $region57
  $region56: #{forward.2} parent=0 // pred_region
    _
  $region57: #{forward.2} parent=0 // pred_fallthru
    _
  // Predicated region
  $region58: #{forward.2} parent=0 // pred_check
    _
  $region59: #{forward.2} parent=0 // pred_check_branch
    %53 = sbr.rel (0) target = $region61
  $region60: #{forward.2} parent=0 // pred_region
    _
  $region61: #{forward.2} parent=0 // pred_fallthru
    _
  // Predicated region
  $region62: #{forward.2} parent=0 // pred_check
    _
  $region63: #{forward.2} parent=0 // pred_check_branch
    %55 = sbr.rel (0) target = $region65
  $region64: #{forward.2} parent=0 // pred_region
    _
  $region65: #{forward.2} parent=0 // pred_fallthru
    _
  // Predicated region
  $region66: #{forward.2} parent=0 // pred_check
    _
  $region67: #{forward.2} parent=0 // pred_check_branch
    %57 = sbr.rel (0) target = $region69
  $region68: #{forward.2} parent=0 // pred_region
    _
  $region69: #{forward.2} parent=0 // pred_fallthru
    _
  // Predicated region
  $region70: #{forward.2} parent=0 // pred_check
    _
  $region71: #{forward.2} parent=0 // pred_check_branch
    %59 = sbr.rel (0) target = $region73
  $region72: #{forward.2} parent=0 // pred_region
    _
  $region73: #{forward.2} parent=0 // pred_fallthru
    _
  // Predicated region
  $region74: #{forward.2} parent=0 // pred_check
    _
  $region75: #{forward.2} parent=0 // pred_check_branch
    %61 = sbr.rel (0) target = $region77
  $region76: #{forward.2} parent=0 // pred_region
    _
  $region77: #{forward.2} parent=0 // pred_fallthru
    _
  %v63 = vld [vmem:[%s0] sm:$0xff]
  %v64 = vld [vmem:[%s0 + $0x8] sm:$0xff]
  %v65 = vld [vmem:[%s0 + $0x10] sm:$0xff]
  %v66 = vld [vmem:[%s0 + $0x18] sm:$0xff]
  %v67 = vld [vmem:[%s0 + $0x20] sm:$0xff]
  %v68 = vld [vmem:[%s0 + $0x28] sm:$0xff]
  %v69 = vpack.c.bf16 %v63, %v63
  %v70 = vpack.c.bf16 %v64, %v64
  %v71 = vpack.c.bf16 %v65, %v65
  %v72 = vpack.c.bf16 %v66, %v66
  %v73 = vpack.c.bf16 %v67, %v67
  %v74 = vpack.c.bf16 %v68, %v68
  %v75 = vld [vmem:[%s1] sm:$0xf]
  %v76 = vld [vmem:[%s1 + $0x4] sm:$0xf]
  %v77 = vld [vmem:[%s1 + $0x8] sm:$0xf]
  %v78 = vld [vmem:[%s1 + $0xc] sm:$0xf]
  %v79 = vld [vmem:[%s1 + $0x10] sm:$0xf]
  %v80 = vld [vmem:[%s1 + $0x14] sm:$0xf]
  %v81 = vld [vmem:[%s1 + $0x18] sm:$0xf]
  %v82 = vld [vmem:[%s1 + $0x1c] sm:$0xf]
  %v83 = vld [vmem:[%s1 + $0x20] sm:$0xf]
  %v84 = vld [vmem:[%s1 + $0x24] sm:$0xf]
  %v85 = vld [vmem:[%s1 + $0x28] sm:$0xf]
  %v86 = vld [vmem:[%s1 + $0x2c] sm:$0xf]
  %v87 = vld [vmem:[%s1 + $0x30] sm:$0xf]
  %v88 = vld [vmem:[%s1 + $0x34] sm:$0xf]
  %v89 = vld [vmem:[%s1 + $0x38] sm:$0xf]
  %v90 = vld [vmem:[%s1 + $0x3c] sm:$0xf]
  %v91 = vld [vmem:[%s1 + $0x40] sm:$0xf]
  %v92 = vld [vmem:[%s1 + $0x44] sm:$0xf]
  %v93 = vld [vmem:[%s1 + $0x48] sm:$0xf]
  %v94 = vld [vmem:[%s1 + $0x4c] sm:$0xf]
  %v95 = vld [vmem:[%s1 + $0x50] sm:$0xf]
  %v96 = vld [vmem:[%s1 + $0x54] sm:$0xf]
  %v97 = vld [vmem:[%s1 + $0x58] sm:$0xf]
  %v98 = vld [vmem:[%s1 + $0x5c] sm:$0xf]
  %v99 = vld [vmem:[%s1 + $0x60] sm:$0xf]
  %v100 = vld [vmem:[%s1 + $0x64] sm:$0xf]
  %v101 = vld [vmem:[%s1 + $0x68] sm:$0xf]
  %v102 = vld [vmem:[%s1 + $0x6c] sm:$0xf]
  %v103 = vld [vmem:[%s1 + $0x70] sm:$0xf]
  %v104 = vld [vmem:[%s1 + $0x74] sm:$0xf]
  %v105 = vld [vmem:[%s1 + $0x78] sm:$0xf]
  %v106 = vld [vmem:[%s1 + $0x7c] sm:$0xf]
  %v107 = vld [vmem:[%s1 + $0x80] sm:$0xf]
  %v108 = vld [vmem:[%s1 + $0x84] sm:$0xf]
  %v109 = vld [vmem:[%s1 + $0x88] sm:$0xf]
  %v110 = vld [vmem:[%s1 + $0x8c] sm:$0xf]
  %v111 = vld [vmem:[%s1 + $0x90] sm:$0xf]
  %v112 = vld [vmem:[%s1 + $0x94] sm:$0xf]
  %v113 = vld [vmem:[%s1 + $0x98] sm:$0xf]
  %v114 = vld [vmem:[%s1 + $0x9c] sm:$0xf]
  %v115 = vld [vmem:[%s1 + $0xa0] sm:$0xf]
  %v116 = vld [vmem:[%s1 + $0xa4] sm:$0xf]
  %v117 = vld [vmem:[%s1 + $0xa8] sm:$0xf]
  %v118 = vld [vmem:[%s1 + $0xac] sm:$0xf]
  %v119 = vld [vmem:[%s1 + $0xb0] sm:$0xf]
  %v120 = vld [vmem:[%s1 + $0xb4] sm:$0xf]
  %v121 = vld [vmem:[%s1 + $0xb8] sm:$0xf]
  %v122 = vld [vmem:[%s1 + $0xbc] sm:$0xf]
  %v123 = vld [vmem:[%s1 + $0xc0] sm:$0xf]
  %v124 = vld [vmem:[%s1 + $0xc4] sm:$0xf]
  %v125 = vld [vmem:[%s1 + $0xc8] sm:$0xf]
  %v126 = vld [vmem:[%s1 + $0xcc] sm:$0xf]
  %v127 = vld [vmem:[%s1 + $0xd0] sm:$0xf]
  %v128 = vld [vmem:[%s1 + $0xd4] sm:$0xf]
  %v129 = vld [vmem:[%s1 + $0xd8] sm:$0xf]
  %v130 = vld [vmem:[%s1 + $0xdc] sm:$0xf]
  %v131 = vld [vmem:[%s1 + $0xe0] sm:$0xf]
  %v132 = vld [vmem:[%s1 + $0xe4] sm:$0xf]
  %v133 = vld [vmem:[%s1 + $0xe8] sm:$0xf]
  %v134 = vld [vmem:[%s1 + $0xec] sm:$0xf]
  %v135 = vld [vmem:[%s1 + $0xf0] sm:$0xf]
  %v136 = vld [vmem:[%s1 + $0xf4] sm:$0xf]
  %v137 = vld [vmem:[%s1 + $0xf8] sm:$0xf]
  %v138 = vld [vmem:[%s1 + $0xfc] sm:$0xf]
  %v139 = vld [vmem:[%s1 + $0x100] sm:$0xf]
  %v140 = vld [vmem:[%s1 + $0x104] sm:$0xf]
  %v141 = vld [vmem:[%s1 + $0x108] sm:$0xf]
  %v142 = vld [vmem:[%s1 + $0x10c] sm:$0xf]
  %v143 = vld [vmem:[%s1 + $0x110] sm:$0xf]
  %v144 = vld [vmem:[%s1 + $0x114] sm:$0xf]
  %v145 = vld [vmem:[%s1 + $0x118] sm:$0xf]
  %v146 = vld [vmem:[%s1 + $0x11c] sm:$0xf]
  %v147 = vld [vmem:[%s1 + $0x120] sm:$0xf]
  %v148 = vld [vmem:[%s1 + $0x124] sm:$0xf]
  %v149 = vld [vmem:[%s1 + $0x128] sm:$0xf]
  %v150 = vld [vmem:[%s1 + $0x12c] sm:$0xf]
  %v151 = vld [vmem:[%s1 + $0x130] sm:$0xf]
  %v152 = vld [vmem:[%s1 + $0x134] sm:$0xf]
  %v153 = vld [vmem:[%s1 + $0x138] sm:$0xf]
  %v154 = vld [vmem:[%s1 + $0x13c] sm:$0xf]
  %v155 = vld [vmem:[%s1 + $0x140] sm:$0xf]
  %v156 = vld [vmem:[%s1 + $0x144] sm:$0xf]
  %v157 = vld [vmem:[%s1 + $0x148] sm:$0xf]
  %v158 = vld [vmem:[%s1 + $0x14c] sm:$0xf]
  %v159 = vld [vmem:[%s1 + $0x150] sm:$0xf]
  %v160 = vld [vmem:[%s1 + $0x154] sm:$0xf]
  %v161 = vld [vmem:[%s1 + $0x158] sm:$0xf]
  %v162 = vld [vmem:[%s1 + $0x15c] sm:$0xf]
  %v163 = vld [vmem:[%s1 + $0x160] sm:$0xf]
  %v164 = vld [vmem:[%s1 + $0x164] sm:$0xf]
  %v165 = vld [vmem:[%s1 + $0x168] sm:$0xf]
  %v166 = vld [vmem:[%s1 + $0x16c] sm:$0xf]
  %v167 = vld [vmem:[%s1 + $0x170] sm:$0xf]
  %v168 = vld [vmem:[%s1 + $0x174] sm:$0xf]
  %v169 = vld [vmem:[%s1 + $0x178] sm:$0xf]
  %v170 = vld [vmem:[%s1 + $0x17c] sm:$0xf]
  %v171 = vld [vmem:[%s2] sm:$0x1]
  %v173 = vlaneseq
  %v174 = vshrl.u32 %v173, 7
  %v175 = vsub.s32 0, %v174
  %v176 = vrot.slane %v171, %v175
  %v274 = vunpack.c.l.b16 %v75
  %v275 = vunpack.c.l.b16 %v76
  %v276 = vunpack.c.l.b16 %v77
  %v277 = vunpack.c.l.b16 %v78
  %v278 = vunpack.c.l.b16 %v79
  %v279 = vunpack.c.l.b16 %v80
  %v280 = vunpack.c.l.b16 %v81
  %v281 = vunpack.c.l.b16 %v82
  %v282 = vunpack.c.l.b16 %v83
  %v283 = vunpack.c.l.b16 %v84
  %v284 = vunpack.c.l.b16 %v85
  %v285 = vunpack.c.l.b16 %v86
  %v286 = vunpack.c.l.b16 %v87
  %v287 = vunpack.c.l.b16 %v88
  %v288 = vunpack.c.l.b16 %v89
  %v289 = vunpack.c.l.b16 %v90
  %v290 = vunpack.c.l.b16 %v91
  %v291 = vunpack.c.l.b16 %v92
  %v292 = vunpack.c.l.b16 %v93
  %v293 = vunpack.c.l.b16 %v94
  %v294 = vunpack.c.l.b16 %v95
  %v295 = vunpack.c.l.b16 %v96
  %v296 = vunpack.c.l.b16 %v97
  %v297 = vunpack.c.l.b16 %v98
  %v298 = vunpack.c.l.b16 %v99
  %v299 = vunpack.c.l.b16 %v100
  %v300 = vunpack.c.l.b16 %v101
  %v301 = vunpack.c.l.b16 %v102
  %v302 = vunpack.c.l.b16 %v103
  %v303 = vunpack.c.l.b16 %v104
  %v304 = vunpack.c.l.b16 %v105
  %v305 = vunpack.c.l.b16 %v106
  %v306 = vunpack.c.l.b16 %v107
  %v307 = vunpack.c.l.b16 %v108
  %v308 = vunpack.c.l.b16 %v109
  %v309 = vunpack.c.l.b16 %v110
  %v310 = vunpack.c.l.b16 %v111
  %v311 = vunpack.c.l.b16 %v112
  %v312 = vunpack.c.l.b16 %v113
  %v313 = vunpack.c.l.b16 %v114
  %v314 = vunpack.c.l.b16 %v115
  %v315 = vunpack.c.l.b16 %v116
  %v316 = vunpack.c.l.b16 %v117
  %v317 = vunpack.c.l.b16 %v118
  %v318 = vunpack.c.l.b16 %v119
  %v319 = vunpack.c.l.b16 %v120
  %v320 = vunpack.c.l.b16 %v121
  %v321 = vunpack.c.l.b16 %v122
  %v322 = vunpack.c.l.b16 %v123
  %v323 = vunpack.c.l.b16 %v124
  %v324 = vunpack.c.l.b16 %v125
  %v325 = vunpack.c.l.b16 %v126
  %v326 = vunpack.c.l.b16 %v127
  %v327 = vunpack.c.l.b16 %v128
  %v328 = vunpack.c.l.b16 %v129
  %v329 = vunpack.c.l.b16 %v130
  %v330 = vunpack.c.l.b16 %v131
  %v331 = vunpack.c.l.b16 %v132
  %v332 = vunpack.c.l.b16 %v133
  %v333 = vunpack.c.l.b16 %v134
  %v334 = vunpack.c.l.b16 %v135
  %v335 = vunpack.c.l.b16 %v136
  %v336 = vunpack.c.l.b16 %v137
  %v337 = vunpack.c.l.b16 %v138
  %v338 = vunpack.c.l.b16 %v139
  %v339 = vunpack.c.l.b16 %v140
  %v340 = vunpack.c.l.b16 %v141
  %v341 = vunpack.c.l.b16 %v142
  %v342 = vunpack.c.l.b16 %v143
  %v343 = vunpack.c.l.b16 %v144
  %v344 = vunpack.c.l.b16 %v145
  %v345 = vunpack.c.l.b16 %v146
  %v346 = vunpack.c.l.b16 %v147
  %v347 = vunpack.c.l.b16 %v148
  %v348 = vunpack.c.l.b16 %v149
  %v349 = vunpack.c.l.b16 %v150
  %v350 = vunpack.c.l.b16 %v151
  %v351 = vunpack.c.l.b16 %v152
  %v352 = vunpack.c.l.b16 %v153
  %v353 = vunpack.c.l.b16 %v154
  %v354 = vunpack.c.l.b16 %v155
  %v355 = vunpack.c.l.b16 %v156
  %v356 = vunpack.c.l.b16 %v157
  %v357 = vunpack.c.l.b16 %v158
  %v358 = vunpack.c.l.b16 %v159
  %v359 = vunpack.c.l.b16 %v160
  %v360 = vunpack.c.l.b16 %v161
  %v361 = vunpack.c.l.b16 %v162
  %v362 = vunpack.c.l.b16 %v163
  %v363 = vunpack.c.l.b16 %v164
  %v364 = vunpack.c.l.b16 %v165
  %v365 = vunpack.c.l.b16 %v166
  %v366 = vunpack.c.l.b16 %v167
  %v367 = vunpack.c.l.b16 %v168
  %v368 = vunpack.c.l.b16 %v169
  %v369 = vunpack.c.l.b16 %v170
  %v370 = vpack.c.b16 %v275, %v274
  %v371 = vpack.c.b16 %v277, %v276
  %v372 = vpack.c.b16 %v279, %v278
  %v373 = vpack.c.b16 %v281, %v280
  %v374 = vpack.c.b16 %v283, %v282
  %v375 = vpack.c.b16 %v285, %v284
  %v376 = vpack.c.b16 %v287, %v286
  %v377 = vpack.c.b16 %v289, %v288
  %v378 = vpack.c.b16 %v291, %v290
  %v379 = vpack.c.b16 %v293, %v292
  %v380 = vpack.c.b16 %v295, %v294
  %v381 = vpack.c.b16 %v297, %v296
  %v382 = vpack.c.b16 %v299, %v298
  %v383 = vpack.c.b16 %v301, %v300
  %v384 = vpack.c.b16 %v303, %v302
  %v385 = vpack.c.b16 %v305, %v304
  %v386 = vpack.c.b16 %v307, %v306
  %v387 = vpack.c.b16 %v309, %v308
  %v388 = vpack.c.b16 %v311, %v310
  %v389 = vpack.c.b16 %v313, %v312
  %v390 = vpack.c.b16 %v315, %v314
  %v391 = vpack.c.b16 %v317, %v316
  %v392 = vpack.c.b16 %v319, %v318
  %v393 = vpack.c.b16 %v321, %v320
  %v394 = vpack.c.b16 %v323, %v322
  %v395 = vpack.c.b16 %v325, %v324
  %v396 = vpack.c.b16 %v327, %v326
  %v397 = vpack.c.b16 %v329, %v328
  %v398 = vpack.c.b16 %v331, %v330
  %v399 = vpack.c.b16 %v333, %v332
  %v400 = vpack.c.b16 %v335, %v334
  %v401 = vpack.c.b16 %v337, %v336
  %v402 = vpack.c.b16 %v339, %v338
  %v403 = vpack.c.b16 %v341, %v340
  %v404 = vpack.c.b16 %v343, %v342
  %v405 = vpack.c.b16 %v345, %v344
  %v406 = vpack.c.b16 %v347, %v346
  %v407 = vpack.c.b16 %v349, %v348
  %v408 = vpack.c.b16 %v351, %v350
  %v409 = vpack.c.b16 %v353, %v352
  %v410 = vpack.c.b16 %v355, %v354
  %v411 = vpack.c.b16 %v357, %v356
  %v412 = vpack.c.b16 %v359, %v358
  %v413 = vpack.c.b16 %v361, %v360
  %v414 = vpack.c.b16 %v363, %v362
  %v415 = vpack.c.b16 %v365, %v364
  %v416 = vpack.c.b16 %v367, %v366
  %v417 = vpack.c.b16 %v369, %v368
  %466 = vmatprep.subr.bf16.mxu0 0
  %467 = vmatpush1.bf16.msra.mxu0 %v370
  %468 = vmatprep.subr.bf16.mxu0 0
  %469 = vmatpush1.bf16.msra.mxu0 %v371
  %470 = vmatprep.subr.bf16.mxu0 0
  %471 = vmatpush1.bf16.msra.mxu0 %v372
  %472 = vmatprep.subr.bf16.mxu0 0
  %473 = vmatpush1.bf16.msra.mxu0 %v373
  %474 = vmatprep.subr.bf16.mxu0 0
  %475 = vmatpush1.bf16.msra.mxu0 %v374
  %476 = vmatprep.subr.bf16.mxu0 0
  %477 = vmatpush1.bf16.msra.mxu0 %v375
  %478 = vmatprep.subr.bf16.mxu0 0
  %479 = vmatpush1.bf16.msra.mxu0 %v376
  %480 = vmatprep.subr.bf16.mxu0 0
  %481 = vmatpush1.bf16.msra.mxu0 %v377
  %482 = vmatprep.subr.bf16.mxu0 0
  %483 = vmatpush1.bf16.msra.mxu0 %v378
  %484 = vmatprep.subr.bf16.mxu0 0
  %485 = vmatpush1.bf16.msra.mxu0 %v379
  %486 = vmatprep.subr.bf16.mxu0 0
  %487 = vmatpush1.bf16.msra.mxu0 %v380
  %488 = vmatprep.subr.bf16.mxu0 0
  %489 = vmatpush1.bf16.msra.mxu0 %v381
  %490 = vmatprep.subr.bf16.mxu0 0
  %491 = vmatpush1.bf16.msra.mxu0 %v382
  %492 = vmatprep.subr.bf16.mxu0 0
  %493 = vmatpush1.bf16.msra.mxu0 %v383
  %494 = vmatprep.subr.bf16.mxu0 0
  %495 = vmatpush1.bf16.msra.mxu0 %v384
  %496 = vmatprep.subr.bf16.mxu0 0
  %497 = vmatpush1.bf16.msra.mxu0 %v385
  %498 = vmatprep.mubr.bf16.mxu0 %v70
  %499 = vmatmul.mubr.bf16.gmra.mrb[0].mxu0 %v69
  %v500 = vpop.f32.mrb[0].mxu0
  %v501 = vadd.f32 %v176, %v500
  %v502 = vpop.f32.mrb[0].mxu0
  %v503 = vpop.f32.mrb[0].mxu0
  %v504 = vpop.f32.mrb[0].mxu0
  %505 = vdwg.mxu0
  %506 = vmatprep.subr.bf16.mxu0 0
  %507 = vmatpush1.bf16.msra.mxu0 %v386
  %508 = vmatprep.subr.bf16.mxu0 0
  %509 = vmatpush1.bf16.msra.mxu0 %v387
  %510 = vmatprep.subr.bf16.mxu0 0
  %511 = vmatpush1.bf16.msra.mxu0 %v388
  %512 = vmatprep.subr.bf16.mxu0 0
  %513 = vmatpush1.bf16.msra.mxu0 %v389
  %514 = vmatprep.subr.bf16.mxu0 0
  %515 = vmatpush1.bf16.msra.mxu0 %v390
  %516 = vmatprep.subr.bf16.mxu0 0
  %517 = vmatpush1.bf16.msra.mxu0 %v391
  %518 = vmatprep.subr.bf16.mxu0 0
  %519 = vmatpush1.bf16.msra.mxu0 %v392
  %520 = vmatprep.subr.bf16.mxu0 0
  %521 = vmatpush1.bf16.msra.mxu0 %v393
  %522 = vmatprep.subr.bf16.mxu0 0
  %523 = vmatpush1.bf16.msra.mxu0 %v394
  %524 = vmatprep.subr.bf16.mxu0 0
  %525 = vmatpush1.bf16.msra.mxu0 %v395
  %526 = vmatprep.subr.bf16.mxu0 0
  %527 = vmatpush1.bf16.msra.mxu0 %v396
  %528 = vmatprep.subr.bf16.mxu0 0
  %529 = vmatpush1.bf16.msra.mxu0 %v397
  %530 = vmatprep.subr.bf16.mxu0 0
  %531 = vmatpush1.bf16.msra.mxu0 %v398
  %532 = vmatprep.subr.bf16.mxu0 0
  %533 = vmatpush1.bf16.msra.mxu0 %v399
  %534 = vmatprep.subr.bf16.mxu0 0
  %535 = vmatpush1.bf16.msra.mxu0 %v400
  %536 = vmatprep.subr.bf16.mxu0 0
  %537 = vmatpush1.bf16.msra.mxu0 %v401
  %538 = vmatprep.mubr.bf16.mxu0 %v72
  %539 = vmatmul.mubr.bf16.gmra.mrb[0].mxu0 %v71
  %v540 = vpop.f32.mrb[0].mxu0
  %v541 = vadd.f32 %v501, %v540
  %v542 = vpop.f32.mrb[0].mxu0
  %v543 = vpop.f32.mrb[0].mxu0
  %v544 = vpop.f32.mrb[0].mxu0
  %545 = vdwg.mxu0
  %546 = vmatprep.subr.bf16.mxu0 0
  %547 = vmatpush1.bf16.msra.mxu0 %v402
  %548 = vmatprep.subr.bf16.mxu0 0
  %549 = vmatpush1.bf16.msra.mxu0 %v403
  %550 = vmatprep.subr.bf16.mxu0 0
  %551 = vmatpush1.bf16.msra.mxu0 %v404
  %552 = vmatprep.subr.bf16.mxu0 0
  %553 = vmatpush1.bf16.msra.mxu0 %v405
  %554 = vmatprep.subr.bf16.mxu0 0
  %555 = vmatpush1.bf16.msra.mxu0 %v406
  %556 = vmatprep.subr.bf16.mxu0 0
  %557 = vmatpush1.bf16.msra.mxu0 %v407
  %558 = vmatprep.subr.bf16.mxu0 0
  %559 = vmatpush1.bf16.msra.mxu0 %v408
  %560 = vmatprep.subr.bf16.mxu0 0
  %561 = vmatpush1.bf16.msra.mxu0 %v409
  %562 = vmatprep.subr.bf16.mxu0 0
  %563 = vmatpush1.bf16.msra.mxu0 %v410
  %564 = vmatprep.subr.bf16.mxu0 0
  %565 = vmatpush1.bf16.msra.mxu0 %v411
  %566 = vmatprep.subr.bf16.mxu0 0
  %567 = vmatpush1.bf16.msra.mxu0 %v412
  %568 = vmatprep.subr.bf16.mxu0 0
  %569 = vmatpush1.bf16.msra.mxu0 %v413
  %570 = vmatprep.subr.bf16.mxu0 0
  %571 = vmatpush1.bf16.msra.mxu0 %v414
  %572 = vmatprep.subr.bf16.mxu0 0
  %573 = vmatpush1.bf16.msra.mxu0 %v415
  %574 = vmatprep.subr.bf16.mxu0 0
  %575 = vmatpush1.bf16.msra.mxu0 %v416
  %576 = vmatprep.subr.bf16.mxu0 0
  %577 = vmatpush1.bf16.msra.mxu0 %v417
  %578 = vmatprep.mubr.bf16.mxu0 %v74
  %579 = vmatmul.mubr.bf16.gmra.mrb[0].mxu0 %v73
  %v580 = vpop.f32.mrb[0].mxu0
  %v581 = vadd.f32 %v541, %v580
  %v582 = vpop.f32.mrb[0].mxu0
  %v583 = vpop.f32.mrb[0].mxu0
  %v584 = vpop.f32.mrb[0].mxu0
  %585 = vdwg.mxu0
  %v586 = vld [vmem:[%s3] sm:$0x1]
  %v587 = vld [vmem:[%s4] sm:$0x1]
  %v588 = vadd.f32 %v586, %v587
  %v589 = vld [vmem:[%s4 + $0x1] sm:$0xf]
  %v590 = vadd.f32 %v581, %v589
  %v592 = vrot.slane %v590, 7
  %vm594 = vcmask 1040384
  %v595 = vsel %vm594, %v588, %v592
  %vm596 = vcmask 1044480
  %v597 = vsel %vm596, %v595, 0.0
  %v599 = vrot.slane %v589, 4
  %v601 = vadd.f32 %v581, %v599
  %v603 = vrot.slane %v601, 3
  %v605 = vsel %vm594, %v588, %v603
  %v606 = vsel %vm596, %v605, 0.0
  %v607 = vlaneseq
  %v608 = vand.u32 %v607, 127
  %vm609 = vcmp.lt.s32.totalorder %v608, 5
  %v610 = vsel %vm609, 0.0, -1e+30
  %v611 = vld [vmem:[%s5] sm:$0x1]
  %v612 = vld [vmem:[%s6] sm:$0x1]
  %vm613 = vcmask 261120
  %v614 = vsel %vm613, %v597, 0.0
  %615 = vadd.xlane.f32.xlu0 %v614
  %v616 = vpop.xlane.xlu0 %615
  %v617 = vsel %vm613, %v606, 0.0
  %618 = vadd.xlane.f32.xlu0 %v617
  %v619 = vpop.xlane.xlu0 %618
  %v620 = vrcp.pop 32.0
  %v621 = vmul.f32 %v616, %v620
  %v622 = vmul.f32 %v619, %v620
  %v623 = vsub.f32 %v597, %v621
  %v624 = vsub.f32 %v606, %v622
  %v625 = vmul.f32 %v623, %v623
  %v626 = vmul.f32 %v624, %v624
  %v627 = vsel %vm613, %v625, 0.0
  %628 = vadd.xlane.f32.xlu0 %v627
  %v629 = vpop.xlane.xlu0 %628
  %v630 = vsel %vm613, %v626, 0.0
  %631 = vadd.xlane.f32.xlu0 %v630
  %v632 = vpop.xlane.xlu0 %631
  %v633 = vmul.f32 %v629, %v620
  %v634 = vmul.f32 %v632, %v620
  %v635 = vadd.f32 %v633, 1e-12
  %v636 = vadd.f32 %v634, 1e-12
  %v637 = vrsqrt.pop %v635
  %v638 = vrsqrt.pop %v636
  %v639 = vmul.f32 %v623, %v637
  %v640 = vmul.f32 %v624, %v638
  %v642 = vlaneseq
  %v643 = vshrl.u32 %v642, 7
  %v644 = vsub.s32 0, %v643
  %v645 = vrot.slane %v611, %v644
  %v647 = vmul.f32 %v639, %v645
  %v648 = vmul.f32 %v640, %v645
  %v650 = vlaneseq
  %v651 = vshrl.u32 %v650, 7
  %v652 = vsub.s32 0, %v651
  %v653 = vrot.slane %v612, %v652
  %v655 = vadd.f32 %v647, %v653
  %v656 = vadd.f32 %v648, %v653
  %v657 = vpack.c.bf16 %v656, %v655
  %v658 = vld [vmem:[%s7] sm:$0xf]
  %v659 = vld [vmem:[%s7 + $0x4] sm:$0xf]
  %v660 = vld [vmem:[%s7 + $0x8] sm:$0xf]
  %v661 = vld [vmem:[%s7 + $0xc] sm:$0xf]
  %v662 = vld [vmem:[%s8] sm:$0x1]
  %v664 = vlaneseq
  %v665 = vshrl.u32 %v664, 7
  %v666 = vsub.s32 0, %v665
  %v667 = vrot.slane %v662, %v666
  %v673 = vunpack.c.l.b16 %v658
  %v674 = vunpack.c.l.b16 %v659
  %v675 = vunpack.c.l.b16 %v660
  %v676 = vunpack.c.l.b16 %v661
  %v677 = vpack.c.b16 %v674, %v673
  %v678 = vpack.c.b16 %v676, %v675
  %v682 = vsel %vm613, %v657, 0
  %684 = vmatprep.subr.bf16.mxu0 0
  %685 = vmatpush1.bf16.msra.mxu0 %v677
  %686 = vmatprep.subr.bf16.mxu0 0
  %687 = vmatpush1.bf16.msra.mxu0 %v678
  %688 = vmatprep.subr.bf16.mxu0 0
  %689 = vmatpush1.bf16.msra.mxu0 0
  %690 = vmatprep.subr.bf16.mxu0 0
  %691 = vmatpush1.bf16.msra.mxu0 0
  %692 = vmatprep.subr.bf16.mxu0 0
  %693 = vmatpush1.bf16.msra.mxu0 0
  %694 = vmatprep.subr.bf16.mxu0 0
  %695 = vmatpush1.bf16.msra.mxu0 0
  %696 = vmatprep.subr.bf16.mxu0 0
  %697 = vmatpush1.bf16.msra.mxu0 0
  %698 = vmatprep.subr.bf16.mxu0 0
  %699 = vmatpush1.bf16.msra.mxu0 0
  %700 = vmatprep.subr.bf16.mxu0 0
  %701 = vmatpush1.bf16.msra.mxu0 0
  %702 = vmatprep.subr.bf16.mxu0 0
  %703 = vmatpush1.bf16.msra.mxu0 0
  %704 = vmatprep.subr.bf16.mxu0 0
  %705 = vmatpush1.bf16.msra.mxu0 0
  %706 = vmatprep.subr.bf16.mxu0 0
  %707 = vmatpush1.bf16.msra.mxu0 0
  %708 = vmatprep.subr.bf16.mxu0 0
  %709 = vmatpush1.bf16.msra.mxu0 0
  %710 = vmatprep.subr.bf16.mxu0 0
  %711 = vmatpush1.bf16.msra.mxu0 0
  %712 = vmatprep.subr.bf16.mxu0 0
  %713 = vmatpush1.bf16.msra.mxu0 0
  %714 = vmatprep.subr.bf16.mxu0 0
  %715 = vmatpush1.bf16.msra.mxu0 0
  %716 = vmatprep.mubr.bf16.mxu0 0
  %717 = vmatmul.mubr.bf16.gmra.mrb[0].mxu0 %v682
  %v718 = vpop.f32.mrb[0].mxu0
  %v719 = vadd.f32 %v667, %v718
  %v720 = vpop.f32.mrb[0].mxu0
  %v721 = vpop.f32.mrb[0].mxu0
  %v722 = vadd.f32 %v667, %v721
  %v723 = vpop.f32.mrb[0].mxu0
  %724 = vdwg.mxu0
  %726 = vrot.lane.b32.xlu0 %v719, 96
  %v727 = vpop.permute.xlu0 %726
  %vm728 = vcmask 130048
  %v729 = vsel %vm728, %v719, 0
  %v731 = vsel %vm728, %v727, 0
  %733 = vmatprep.subr.mxu0 0.0
  %734 = vmatpush1.xpose.msra.mxu0 %v731
  %735 = vmatprep.subr.mxu0 0.0
  %736 = vmatpush1.xpose.msra.mxu0 0.0
  %737 = vmatprep.subr.mxu0 0.0
  %738 = vmatpush1.xpose.msra.mxu0 0.0
  %739 = vmatprep.subr.mxu0 0.0
  %740 = vmatpush1.xpose.msra.mxu0 0.0
  %741 = vmatprep.subr.mxu0 0.0
  %742 = vmatpush1.xpose.msra.mxu0 0.0
  %743 = vmatprep.subr.mxu0 0.0
  %744 = vmatpush1.xpose.msra.mxu0 0.0
  %745 = vmatprep.subr.mxu0 0.0
  %746 = vmatpush1.xpose.msra.mxu0 0.0
  %747 = vmatprep.subr.mxu0 0.0
  %748 = vmatpush1.xpose.msra.mxu0 0.0
  %749 = vmatprep.subr.mxu0 0.0
  %750 = vmatpush1.xpose.msra.mxu0 0.0
  %751 = vmatprep.subr.mxu0 0.0
  %752 = vmatpush1.xpose.msra.mxu0 0.0
  %753 = vmatprep.subr.mxu0 0.0
  %754 = vmatpush1.xpose.msra.mxu0 0.0
  %755 = vmatprep.subr.mxu0 0.0
  %756 = vmatpush1.xpose.msra.mxu0 0.0
  %757 = vmatprep.subr.mxu0 0.0
  %758 = vmatpush1.xpose.msra.mxu0 0.0
  %759 = vmatprep.subr.mxu0 0.0
  %760 = vmatpush1.xpose.msra.mxu0 0.0
  %761 = vmatprep.subr.mxu0 0.0
  %762 = vmatpush1.xpose.msra.mxu0 0.0
  %763 = vmatprep.subr.mxu0 0.0
  %764 = vmatpush1.xpose.msra.mxu0 0.0
  %765 = vmatprep.subr.mxu0 0.0
  %766 = vmatpush1.xpose.msra.mxu0 0.0
  %767 = vmatprep.subr.mxu0 0.0
  %768 = vmatpush1.xpose.msra.mxu0 0.0
  %769 = vmatprep.subr.mxu0 0.0
  %770 = vmatpush1.xpose.msra.mxu0 0.0
  %771 = vmatprep.subr.mxu0 0.0
  %772 = vmatpush1.xpose.msra.mxu0 0.0
  %773 = vmatprep.subr.mxu0 0.0
  %774 = vmatpush1.xpose.msra.mxu0 0.0
  %775 = vmatprep.subr.mxu0 0.0
  %776 = vmatpush1.xpose.msra.mxu0 0.0
  %777 = vmatprep.subr.mxu0 0.0
  %778 = vmatpush1.xpose.msra.mxu0 0.0
  %779 = vmatprep.subr.mxu0 0.0
  %780 = vmatpush1.xpose.msra.mxu0 0.0
  %781 = vmatprep.subr.mxu0 0.0
  %782 = vmatpush1.xpose.msra.mxu0 0.0
  %783 = vmatprep.subr.mxu0 0.0
  %784 = vmatpush1.xpose.msra.mxu0 0.0
  %785 = vmatprep.subr.mxu0 0.0
  %786 = vmatpush1.xpose.msra.mxu0 0.0
  %787 = vmatprep.subr.mxu0 0.0
  %788 = vmatpush1.xpose.msra.mxu0 0.0
  %789 = vmatprep.subr.mxu0 0.0
  %790 = vmatpush1.xpose.msra.mxu0 0.0
  %791 = vmatprep.subr.mxu0 0.0
  %792 = vmatpush1.xpose.msra.mxu0 0.0
  %793 = vmatprep.subr.mxu0 0.0
  %794 = vmatpush1.xpose.msra.mxu0 0.0
  %795 = vmatprep.subr.mxu0 0.0
  %796 = vmatpush1.xpose.msra.mxu0 0.0
  %797 = vmatprep.mubr.f32.mxu0 0.0
  %798 = vmatmul.mubr.f32.gmra.mrb[0].mxu0 %v729
  %v799 = vpop.f32.mrb[0].mxu0
  %v800 = vadd.f32 0.0, %v799
  %v801 = vpop.f32.mrb[0].mxu0
  %802 = vdwg.mxu0
  %804 = vrot.lane.b32.xlu0 %v722, 96
  %v805 = vpop.permute.xlu0 %804
  %v806 = vsel %vm728, %v722, 0
  %v808 = vsel %vm728, %v805, 0
  %810 = vmatprep.subr.mxu0 0.0
  %811 = vmatpush1.xpose.msra.mxu0 %v808
  %812 = vmatprep.subr.mxu0 0.0
  %813 = vmatpush1.xpose.msra.mxu0 0.0
  %814 = vmatprep.subr.mxu0 0.0
  %815 = vmatpush1.xpose.msra.mxu0 0.0
  %816 = vmatprep.subr.mxu0 0.0
  %817 = vmatpush1.xpose.msra.mxu0 0.0
  %818 = vmatprep.subr.mxu0 0.0
  %819 = vmatpush1.xpose.msra.mxu0 0.0
  %820 = vmatprep.subr.mxu0 0.0
  %821 = vmatpush1.xpose.msra.mxu0 0.0
  %822 = vmatprep.subr.mxu0 0.0
  %823 = vmatpush1.xpose.msra.mxu0 0.0
  %824 = vmatprep.subr.mxu0 0.0
  %825 = vmatpush1.xpose.msra.mxu0 0.0
  %826 = vmatprep.subr.mxu0 0.0
  %827 = vmatpush1.xpose.msra.mxu0 0.0
  %828 = vmatprep.subr.mxu0 0.0
  %829 = vmatpush1.xpose.msra.mxu0 0.0
  %830 = vmatprep.subr.mxu0 0.0
  %831 = vmatpush1.xpose.msra.mxu0 0.0
  %832 = vmatprep.subr.mxu0 0.0
  %833 = vmatpush1.xpose.msra.mxu0 0.0
  %834 = vmatprep.subr.mxu0 0.0
  %835 = vmatpush1.xpose.msra.mxu0 0.0
  %836 = vmatprep.subr.mxu0 0.0
  %837 = vmatpush1.xpose.msra.mxu0 0.0
  %838 = vmatprep.subr.mxu0 0.0
  %839 = vmatpush1.xpose.msra.mxu0 0.0
  %840 = vmatprep.subr.mxu0 0.0
  %841 = vmatpush1.xpose.msra.mxu0 0.0
  %842 = vmatprep.subr.mxu0 0.0
  %843 = vmatpush1.xpose.msra.mxu0 0.0
  %844 = vmatprep.subr.mxu0 0.0
  %845 = vmatpush1.xpose.msra.mxu0 0.0
  %846 = vmatprep.subr.mxu0 0.0
  %847 = vmatpush1.xpose.msra.mxu0 0.0
  %848 = vmatprep.subr.mxu0 0.0
  %849 = vmatpush1.xpose.msra.mxu0 0.0
  %850 = vmatprep.subr.mxu0 0.0
  %851 = vmatpush1.xpose.msra.mxu0 0.0
  %852 = vmatprep.subr.mxu0 0.0
  %853 = vmatpush1.xpose.msra.mxu0 0.0
  %854 = vmatprep.subr.mxu0 0.0
  %855 = vmatpush1.xpose.msra.mxu0 0.0
  %856 = vmatprep.subr.mxu0 0.0
  %857 = vmatpush1.xpose.msra.mxu0 0.0
  %858 = vmatprep.subr.mxu0 0.0
  %859 = vmatpush1.xpose.msra.mxu0 0.0
  %860 = vmatprep.subr.mxu0 0.0
  %861 = vmatpush1.xpose.msra.mxu0 0.0
  %862 = vmatprep.subr.mxu0 0.0
  %863 = vmatpush1.xpose.msra.mxu0 0.0
  %864 = vmatprep.subr.mxu0 0.0
  %865 = vmatpush1.xpose.msra.mxu0 0.0
  %866 = vmatprep.subr.mxu0 0.0
  %867 = vmatpush1.xpose.msra.mxu0 0.0
  %868 = vmatprep.subr.mxu0 0.0
  %869 = vmatpush1.xpose.msra.mxu0 0.0
  %870 = vmatprep.subr.mxu0 0.0
  %871 = vmatpush1.xpose.msra.mxu0 0.0
  %872 = vmatprep.subr.mxu0 0.0
  %873 = vmatpush1.xpose.msra.mxu0 0.0
  %874 = vmatprep.mubr.f32.mxu0 0.0
  %875 = vmatmul.mubr.f32.gmra.mrb[0].mxu0 %v806
  %v876 = vpop.f32.mrb[0].mxu0
  %v877 = vadd.f32 0.0, %v876
  %v878 = vpop.f32.mrb[0].mxu0
  %879 = vdwg.mxu0
  %v880 = vmul.f32 %v800, 0.25
  %v881 = vmul.f32 %v877, 0.25
  %v882 = vadd.f32 %v880, %v610
  %v883 = vadd.f32 %v881, %v610
  %vm884 = vcmask 64512
  %v885 = vsel %vm884, %v882, -inf
  %886 = vmax.xlane.f32.xlu0 %v885
  %v887 = vpop.xlane.xlu0 %886
  %v888 = vsel %vm884, %v883, -inf
  %889 = vmax.xlane.f32.xlu0 %v888
  %v890 = vpop.xlane.xlu0 %889
  %v891 = vsub.f32 %v882, %v887
  %v892 = vsub.f32 %v883, %v890
  %v893 = vmul.f32 %v891, 1.442695
  %v894 = vpow.pop %v893
  %v895 = vmul.f32 %v892, 1.442695
  %v896 = vpow.pop %v895
  %v897 = vsel %vm884, %v894, 0.0
  %898 = vadd.xlane.f32.xlu0 %v897
  %v899 = vpop.xlane.xlu0 %898
  %v900 = vsel %vm884, %v896, 0.0
  %901 = vadd.xlane.f32.xlu0 %v900
  %v902 = vpop.xlane.xlu0 %901
  %v903 = vrcp.pop %v899
  %v904 = vrcp.pop %v902
  %v905 = vmul.f32 %v894, %v903
  %v906 = vmul.f32 %v896, %v904
  %907 = vrot.lane.b32.xlu0 %v719, 64
  %v908 = vpop.permute.xlu0 %907
  %v911 = vsel %vm884, %v905, 0
  %913 = vmatprep.subr.mxu0 0.0
  %914 = vmatpush1.msra.mxu0 %v908
  %915 = vmatprep.subr.mxu0 0.0
  %916 = vmatpush1.msra.mxu0 0.0
  %917 = vmatprep.subr.mxu0 0.0
  %918 = vmatpush1.msra.mxu0 0.0
  %919 = vmatprep.subr.mxu0 0.0
  %920 = vmatpush1.msra.mxu0 0.0
  %921 = vmatprep.subr.mxu0 0.0
  %922 = vmatpush1.msra.mxu0 0.0
  %923 = vmatprep.subr.mxu0 0.0
  %924 = vmatpush1.msra.mxu0 0.0
  %925 = vmatprep.subr.mxu0 0.0
  %926 = vmatpush1.msra.mxu0 0.0
  %927 = vmatprep.subr.mxu0 0.0
  %928 = vmatpush1.msra.mxu0 0.0
  %929 = vmatprep.subr.mxu0 0.0
  %930 = vmatpush1.msra.mxu0 0.0
  %931 = vmatprep.subr.mxu0 0.0
  %932 = vmatpush1.msra.mxu0 0.0
  %933 = vmatprep.subr.mxu0 0.0
  %934 = vmatpush1.msra.mxu0 0.0
  %935 = vmatprep.subr.mxu0 0.0
  %936 = vmatpush1.msra.mxu0 0.0
  %937 = vmatprep.subr.mxu0 0.0
  %938 = vmatpush1.msra.mxu0 0.0
  %939 = vmatprep.subr.mxu0 0.0
  %940 = vmatpush1.msra.mxu0 0.0
  %941 = vmatprep.subr.mxu0 0.0
  %942 = vmatpush1.msra.mxu0 0.0
  %943 = vmatprep.subr.mxu0 0.0
  %944 = vmatpush1.msra.mxu0 0.0
  %945 = vmatprep.subr.mxu0 0.0
  %946 = vmatpush1.msra.mxu0 0.0
  %947 = vmatprep.subr.mxu0 0.0
  %948 = vmatpush1.msra.mxu0 0.0
  %949 = vmatprep.subr.mxu0 0.0
  %950 = vmatpush1.msra.mxu0 0.0
  %951 = vmatprep.subr.mxu0 0.0
  %952 = vmatpush1.msra.mxu0 0.0
  %953 = vmatprep.subr.mxu0 0.0
  %954 = vmatpush1.msra.mxu0 0.0
  %955 = vmatprep.subr.mxu0 0.0
  %956 = vmatpush1.msra.mxu0 0.0
  %957 = vmatprep.subr.mxu0 0.0
  %958 = vmatpush1.msra.mxu0 0.0
  %959 = vmatprep.subr.mxu0 0.0
  %960 = vmatpush1.msra.mxu0 0.0
  %961 = vmatprep.subr.mxu0 0.0
  %962 = vmatpush1.msra.mxu0 0.0
  %963 = vmatprep.subr.mxu0 0.0
  %964 = vmatpush1.msra.mxu0 0.0
  %965 = vmatprep.subr.mxu0 0.0
  %966 = vmatpush1.msra.mxu0 0.0
  %967 = vmatprep.subr.mxu0 0.0
  %968 = vmatpush1.msra.mxu0 0.0
  %969 = vmatprep.subr.mxu0 0.0
  %970 = vmatpush1.msra.mxu0 0.0
  %971 = vmatprep.subr.mxu0 0.0
  %972 = vmatpush1.msra.mxu0 0.0
  %973 = vmatprep.subr.mxu0 0.0
  %974 = vmatpush1.msra.mxu0 0.0
  %975 = vmatprep.subr.mxu0 0.0
  %976 = vmatpush1.msra.mxu0 0.0
  %977 = vmatprep.mubr.f32.mxu0 0.0
  %978 = vmatmul.mubr.f32.gmra.mrb[0].mxu0 %v911
  %v979 = vpop.f32.mrb[0].mxu0
  %v980 = vadd.f32 0.0, %v979
  %v981 = vpop.f32.mrb[0].mxu0
  %982 = vdwg.mxu0
  %983 = vrot.lane.b32.xlu0 %v722, 64
  %v984 = vpop.permute.xlu0 %983
  %v987 = vsel %vm884, %v906, 0
  %989 = vmatprep.subr.mxu0 0.0
  %990 = vmatpush1.msra.mxu0 %v984
  %991 = vmatprep.subr.mxu0 0.0
  %992 = vmatpush1.msra.mxu0 0.0
  %993 = vmatprep.subr.mxu0 0.0
  %994 = vmatpush1.msra.mxu0 0.0
  %995 = vmatprep.subr.mxu0 0.0
  %996 = vmatpush1.msra.mxu0 0.0
  %997 = vmatprep.subr.mxu0 0.0
  %998 = vmatpush1.msra.mxu0 0.0
  %999 = vmatprep.subr.mxu0 0.0
  %1000 = vmatpush1.msra.mxu0 0.0
  %1001 = vmatprep.subr.mxu0 0.0
  %1002 = vmatpush1.msra.mxu0 0.0
  %1003 = vmatprep.subr.mxu0 0.0
  %1004 = vmatpush1.msra.mxu0 0.0
  %1005 = vmatprep.subr.mxu0 0.0
  %1006 = vmatpush1.msra.mxu0 0.0
  %1007 = vmatprep.subr.mxu0 0.0
  %1008 = vmatpush1.msra.mxu0 0.0
  %1009 = vmatprep.subr.mxu0 0.0
  %1010 = vmatpush1.msra.mxu0 0.0
  %1011 = vmatprep.subr.mxu0 0.0
  %1012 = vmatpush1.msra.mxu0 0.0
  %1013 = vmatprep.subr.mxu0 0.0
  %1014 = vmatpush1.msra.mxu0 0.0
  %1015 = vmatprep.subr.mxu0 0.0
  %1016 = vmatpush1.msra.mxu0 0.0
  %1017 = vmatprep.subr.mxu0 0.0
  %1018 = vmatpush1.msra.mxu0 0.0
  %1019 = vmatprep.subr.mxu0 0.0
  %1020 = vmatpush1.msra.mxu0 0.0
  %1021 = vmatprep.subr.mxu0 0.0
  %1022 = vmatpush1.msra.mxu0 0.0
  %1023 = vmatprep.subr.mxu0 0.0
  %1024 = vmatpush1.msra.mxu0 0.0
  %1025 = vmatprep.subr.mxu0 0.0
  %1026 = vmatpush1.msra.mxu0 0.0
  %1027 = vmatprep.subr.mxu0 0.0
  %1028 = vmatpush1.msra.mxu0 0.0
  %1029 = vmatprep.subr.mxu0 0.0
  %1030 = vmatpush1.msra.mxu0 0.0
  %1031 = vmatprep.subr.mxu0 0.0
  %1032 = vmatpush1.msra.mxu0 0.0
  %1033 = vmatprep.subr.mxu0 0.0
  %1034 = vmatpush1.msra.mxu0 0.0
  %1035 = vmatprep.subr.mxu0 0.0
  %1036 = vmatpush1.msra.mxu0 0.0
  %1037 = vmatprep.subr.mxu0 0.0
  %1038 = vmatpush1.msra.mxu0 0.0
  %1039 = vmatprep.subr.mxu0 0.0
  %1040 = vmatpush1.msra.mxu0 0.0
  %1041 = vmatprep.subr.mxu0 0.0
  %1042 = vmatpush1.msra.mxu0 0.0
  %1043 = vmatprep.subr.mxu0 0.0
  %1044 = vmatpush1.msra.mxu0 0.0
  %1045 = vmatprep.subr.mxu0 0.0
  %1046 = vmatpush1.msra.mxu0 0.0
  %1047 = vmatprep.subr.mxu0 0.0
  %1048 = vmatpush1.msra.mxu0 0.0
  %1049 = vmatprep.subr.mxu0 0.0
  %1050 = vmatpush1.msra.mxu0 0.0
  %1051 = vmatprep.subr.mxu0 0.0
  %1052 = vmatpush1.msra.mxu0 0.0
  %1053 = vmatprep.mubr.f32.mxu0 0.0
  %1054 = vmatmul.mubr.f32.gmra.mrb[0].mxu0 %v987
  %v1055 = vpop.f32.mrb[0].mxu0
  %v1056 = vadd.f32 0.0, %v1055
  %v1057 = vpop.f32.mrb[0].mxu0
  %1058 = vdwg.mxu0
  %1059 = vrot.lane.b32.xlu0 %v719, 112
  %v1060 = vpop.permute.xlu0 %1059
  %1061 = vrot.lane.b32.xlu0 %v719, 80
  %v1062 = vpop.permute.xlu0 %1061
  %v1063 = vsel %vm728, %v1060, 0
  %v1065 = vsel %vm728, %v1062, 0
  %1067 = vmatprep.subr.mxu0 0.0
  %1068 = vmatpush1.xpose.msra.mxu0 %v1065
  %1069 = vmatprep.subr.mxu0 0.0
  %1070 = vmatpush1.xpose.msra.mxu0 0.0
  %1071 = vmatprep.subr.mxu0 0.0
  %1072 = vmatpush1.xpose.msra.mxu0 0.0
  %1073 = vmatprep.subr.mxu0 0.0
  %1074 = vmatpush1.xpose.msra.mxu0 0.0
  %1075 = vmatprep.subr.mxu0 0.0
  %1076 = vmatpush1.xpose.msra.mxu0 0.0
  %1077 = vmatprep.subr.mxu0 0.0
  %1078 = vmatpush1.xpose.msra.mxu0 0.0
  %1079 = vmatprep.subr.mxu0 0.0
  %1080 = vmatpush1.xpose.msra.mxu0 0.0
  %1081 = vmatprep.subr.mxu0 0.0
  %1082 = vmatpush1.xpose.msra.mxu0 0.0
  %1083 = vmatprep.subr.mxu0 0.0
  %1084 = vmatpush1.xpose.msra.mxu0 0.0
  %1085 = vmatprep.subr.mxu0 0.0
  %1086 = vmatpush1.xpose.msra.mxu0 0.0
  %1087 = vmatprep.subr.mxu0 0.0
  %1088 = vmatpush1.xpose.msra.mxu0 0.0
  %1089 = vmatprep.subr.mxu0 0.0
  %1090 = vmatpush1.xpose.msra.mxu0 0.0
  %1091 = vmatprep.subr.mxu0 0.0
  %1092 = vmatpush1.xpose.msra.mxu0 0.0
  %1093 = vmatprep.subr.mxu0 0.0
  %1094 = vmatpush1.xpose.msra.mxu0 0.0
  %1095 = vmatprep.subr.mxu0 0.0
  %1096 = vmatpush1.xpose.msra.mxu0 0.0
  %1097 = vmatprep.subr.mxu0 0.0
  %1098 = vmatpush1.xpose.msra.mxu0 0.0
  %1099 = vmatprep.subr.mxu0 0.0
  %1100 = vmatpush1.xpose.msra.mxu0 0.0
  %1101 = vmatprep.subr.mxu0 0.0
  %1102 = vmatpush1.xpose.msra.mxu0 0.0
  %1103 = vmatprep.subr.mxu0 0.0
  %1104 = vmatpush1.xpose.msra.mxu0 0.0
  %1105 = vmatprep.subr.mxu0 0.0
  %1106 = vmatpush1.xpose.msra.mxu0 0.0
  %1107 = vmatprep.subr.mxu0 0.0
  %1108 = vmatpush1.xpose.msra.mxu0 0.0
  %1109 = vmatprep.subr.mxu0 0.0
  %1110 = vmatpush1.xpose.msra.mxu0 0.0
  %1111 = vmatprep.subr.mxu0 0.0
  %1112 = vmatpush1.xpose.msra.mxu0 0.0
  %1113 = vmatprep.subr.mxu0 0.0
  %1114 = vmatpush1.xpose.msra.mxu0 0.0
  %1115 = vmatprep.subr.mxu0 0.0
  %1116 = vmatpush1.xpose.msra.mxu0 0.0
  %1117 = vmatprep.subr.mxu0 0.0
  %1118 = vmatpush1.xpose.msra.mxu0 0.0
  %1119 = vmatprep.subr.mxu0 0.0
  %1120 = vmatpush1.xpose.msra.mxu0 0.0
  %1121 = vmatprep.subr.mxu0 0.0
  %1122 = vmatpush1.xpose.msra.mxu0 0.0
  %1123 = vmatprep.subr.mxu0 0.0
  %1124 = vmatpush1.xpose.msra.mxu0 0.0
  %1125 = vmatprep.subr.mxu0 0.0
  %1126 = vmatpush1.xpose.msra.mxu0 0.0
  %1127 = vmatprep.subr.mxu0 0.0
  %1128 = vmatpush1.xpose.msra.mxu0 0.0
  %1129 = vmatprep.subr.mxu0 0.0
  %1130 = vmatpush1.xpose.msra.mxu0 0.0
  %1131 = vmatprep.mubr.f32.mxu0 0.0
  %1132 = vmatmul.mubr.f32.gmra.mrb[0].mxu0 %v1063
  %v1133 = vpop.f32.mrb[0].mxu0
  %v1134 = vadd.f32 0.0, %v1133
  %v1135 = vpop.f32.mrb[0].mxu0
  %1136 = vdwg.mxu0
  %1137 = vrot.lane.b32.xlu0 %v722, 112
  %v1138 = vpop.permute.xlu0 %1137
  %1139 = vrot.lane.b32.xlu0 %v722, 80
  %v1140 = vpop.permute.xlu0 %1139
  %v1141 = vsel %vm728, %v1138, 0
  %v1143 = vsel %vm728, %v1140, 0
  %1145 = vmatprep.subr.mxu0 0.0
  %1146 = vmatpush1.xpose.msra.mxu0 %v1143
  %1147 = vmatprep.subr.mxu0 0.0
  %1148 = vmatpush1.xpose.msra.mxu0 0.0
  %1149 = vmatprep.subr.mxu0 0.0
  %1150 = vmatpush1.xpose.msra.mxu0 0.0
  %1151 = vmatprep.subr.mxu0 0.0
  %1152 = vmatpush1.xpose.msra.mxu0 0.0
  %1153 = vmatprep.subr.mxu0 0.0
  %1154 = vmatpush1.xpose.msra.mxu0 0.0
  %1155 = vmatprep.subr.mxu0 0.0
  %1156 = vmatpush1.xpose.msra.mxu0 0.0
  %1157 = vmatprep.subr.mxu0 0.0
  %1158 = vmatpush1.xpose.msra.mxu0 0.0
  %1159 = vmatprep.subr.mxu0 0.0
  %1160 = vmatpush1.xpose.msra.mxu0 0.0
  %1161 = vmatprep.subr.mxu0 0.0
  %1162 = vmatpush1.xpose.msra.mxu0 0.0
  %1163 = vmatprep.subr.mxu0 0.0
  %1164 = vmatpush1.xpose.msra.mxu0 0.0
  %1165 = vmatprep.subr.mxu0 0.0
  %1166 = vmatpush1.xpose.msra.mxu0 0.0
  %1167 = vmatprep.subr.mxu0 0.0
  %1168 = vmatpush1.xpose.msra.mxu0 0.0
  %1169 = vmatprep.subr.mxu0 0.0
  %1170 = vmatpush1.xpose.msra.mxu0 0.0
  %1171 = vmatprep.subr.mxu0 0.0
  %1172 = vmatpush1.xpose.msra.mxu0 0.0
  %1173 = vmatprep.subr.mxu0 0.0
  %1174 = vmatpush1.xpose.msra.mxu0 0.0
  %1175 = vmatprep.subr.mxu0 0.0
  %1176 = vmatpush1.xpose.msra.mxu0 0.0
  %1177 = vmatprep.subr.mxu0 0.0
  %1178 = vmatpush1.xpose.msra.mxu0 0.0
  %1179 = vmatprep.subr.mxu0 0.0
  %1180 = vmatpush1.xpose.msra.mxu0 0.0
  %1181 = vmatprep.subr.mxu0 0.0
  %1182 = vmatpush1.xpose.msra.mxu0 0.0
  %1183 = vmatprep.subr.mxu0 0.0
  %1184 = vmatpush1.xpose.msra.mxu0 0.0
  %1185 = vmatprep.subr.mxu0 0.0
  %1186 = vmatpush1.xpose.msra.mxu0 0.0
  %1187 = vmatprep.subr.mxu0 0.0
  %1188 = vmatpush1.xpose.msra.mxu0 0.0
  %1189 = vmatprep.subr.mxu0 0.0
  %1190 = vmatpush1.xpose.msra.mxu0 0.0
  %1191 = vmatprep.subr.mxu0 0.0
  %1192 = vmatpush1.xpose.msra.mxu0 0.0
  %1193 = vmatprep.subr.mxu0 0.0
  %1194 = vmatpush1.xpose.msra.mxu0 0.0
  %1195 = vmatprep.subr.mxu0 0.0
  %1196 = vmatpush1.xpose.msra.mxu0 0.0
  %1197 = vmatprep.subr.mxu0 0.0
  %1198 = vmatpush1.xpose.msra.mxu0 0.0
  %1199 = vmatprep.subr.mxu0 0.0
  %1200 = vmatpush1.xpose.msra.mxu0 0.0
  %1201 = vmatprep.subr.mxu0 0.0
  %1202 = vmatpush1.xpose.msra.mxu0 0.0
  %1203 = vmatprep.subr.mxu0 0.0
  %1204 = vmatpush1.xpose.msra.mxu0 0.0
  %1205 = vmatprep.subr.mxu0 0.0
  %1206 = vmatpush1.xpose.msra.mxu0 0.0
  %1207 = vmatprep.subr.mxu0 0.0
  %1208 = vmatpush1.xpose.msra.mxu0 0.0
  %1209 = vmatprep.mubr.f32.mxu0 0.0
  %1210 = vmatmul.mubr.f32.gmra.mrb[0].mxu0 %v1141
  %v1211 = vpop.f32.mrb[0].mxu0
  %v1212 = vadd.f32 0.0, %v1211
  %v1213 = vpop.f32.mrb[0].mxu0
  %1214 = vdwg.mxu0
  %v1215 = vmul.f32 %v1134, 0.25
  %v1216 = vmul.f32 %v1212, 0.25
  %v1217 = vadd.f32 %v1215, %v610
  %v1218 = vadd.f32 %v1216, %v610
  %v1219 = vsel %vm884, %v1217, -inf
  %1220 = vmax.xlane.f32.xlu0 %v1219
  %v1221 = vpop.xlane.xlu0 %1220
  %v1222 = vsel %vm884, %v1218, -inf
  %1223 = vmax.xlane.f32.xlu0 %v1222
  %v1224 = vpop.xlane.xlu0 %1223
  %v1225 = vsub.f32 %v1217, %v1221
  %v1226 = vsub.f32 %v1218, %v1224
  %v1227 = vmul.f32 %v1225, 1.442695
  %v1228 = vpow.pop %v1227
  %v1229 = vmul.f32 %v1226, 1.442695
  %v1230 = vpow.pop %v1229
  %v1231 = vsel %vm884, %v1228, 0.0
  %1232 = vadd.xlane.f32.xlu0 %v1231
  %v1233 = vpop.xlane.xlu0 %1232
  %v1234 = vsel %vm884, %v1230, 0.0
  %1235 = vadd.xlane.f32.xlu0 %v1234
  %v1236 = vpop.xlane.xlu0 %1235
  %v1237 = vrcp.pop %v1233
  %v1238 = vrcp.pop %v1236
  %v1239 = vmul.f32 %v1228, %v1237
  %v1240 = vmul.f32 %v1230, %v1238
  %1241 = vrot.lane.b32.xlu0 %v719, 48
  %v1242 = vpop.permute.xlu0 %1241
  %v1245 = vsel %vm884, %v1239, 0
  %1247 = vmatprep.subr.mxu0 0.0
  %1248 = vmatpush1.msra.mxu0 %v1242
  %1249 = vmatprep.subr.mxu0 0.0
  %1250 = vmatpush1.msra.mxu0 0.0
  %1251 = vmatprep.subr.mxu0 0.0
  %1252 = vmatpush1.msra.mxu0 0.0
  %1253 = vmatprep.subr.mxu0 0.0
  %1254 = vmatpush1.msra.mxu0 0.0
  %1255 = vmatprep.subr.mxu0 0.0
  %1256 = vmatpush1.msra.mxu0 0.0
  %1257 = vmatprep.subr.mxu0 0.0
  %1258 = vmatpush1.msra.mxu0 0.0
  %1259 = vmatprep.subr.mxu0 0.0
  %1260 = vmatpush1.msra.mxu0 0.0
  %1261 = vmatprep.subr.mxu0 0.0
  %1262 = vmatpush1.msra.mxu0 0.0
  %1263 = vmatprep.subr.mxu0 0.0
  %1264 = vmatpush1.msra.mxu0 0.0
  %1265 = vmatprep.subr.mxu0 0.0
  %1266 = vmatpush1.msra.mxu0 0.0
  %1267 = vmatprep.subr.mxu0 0.0
  %1268 = vmatpush1.msra.mxu0 0.0
  %1269 = vmatprep.subr.mxu0 0.0
  %1270 = vmatpush1.msra.mxu0 0.0
  %1271 = vmatprep.subr.mxu0 0.0
  %1272 = vmatpush1.msra.mxu0 0.0
  %1273 = vmatprep.subr.mxu0 0.0
  %1274 = vmatpush1.msra.mxu0 0.0
  %1275 = vmatprep.subr.mxu0 0.0
  %1276 = vmatpush1.msra.mxu0 0.0
  %1277 = vmatprep.subr.mxu0 0.0
  %1278 = vmatpush1.msra.mxu0 0.0
  %1279 = vmatprep.subr.mxu0 0.0
  %1280 = vmatpush1.msra.mxu0 0.0
  %1281 = vmatprep.subr.mxu0 0.0
  %1282 = vmatpush1.msra.mxu0 0.0
  %1283 = vmatprep.subr.mxu0 0.0
  %1284 = vmatpush1.msra.mxu0 0.0
  %1285 = vmatprep.subr.mxu0 0.0
  %1286 = vmatpush1.msra.mxu0 0.0
  %1287 = vmatprep.subr.mxu0 0.0
  %1288 = vmatpush1.msra.mxu0 0.0
  %1289 = vmatprep.subr.mxu0 0.0
  %1290 = vmatpush1.msra.mxu0 0.0
  %1291 = vmatprep.subr.mxu0 0.0
  %1292 = vmatpush1.msra.mxu0 0.0
  %1293 = vmatprep.subr.mxu0 0.0
  %1294 = vmatpush1.msra.mxu0 0.0
  %1295 = vmatprep.subr.mxu0 0.0
  %1296 = vmatpush1.msra.mxu0 0.0
  %1297 = vmatprep.subr.mxu0 0.0
  %1298 = vmatpush1.msra.mxu0 0.0
  %1299 = vmatprep.subr.mxu0 0.0
  %1300 = vmatpush1.msra.mxu0 0.0
  %1301 = vmatprep.subr.mxu0 0.0
  %1302 = vmatpush1.msra.mxu0 0.0
  %1303 = vmatprep.subr.mxu0 0.0
  %1304 = vmatpush1.msra.mxu0 0.0
  %1305 = vmatprep.subr.mxu0 0.0
  %1306 = vmatpush1.msra.mxu0 0.0
  %1307 = vmatprep.subr.mxu0 0.0
  %1308 = vmatpush1.msra.mxu0 0.0
  %1309 = vmatprep.subr.mxu0 0.0
  %1310 = vmatpush1.msra.mxu0 0.0
  %1311 = vmatprep.mubr.f32.mxu0 0.0
  %1312 = vmatmul.mubr.f32.gmra.mrb[0].mxu0 %v1245
  %v1313 = vpop.f32.mrb[0].mxu0
  %v1314 = vadd.f32 0.0, %v1313
  %v1315 = vpop.f32.mrb[0].mxu0
  %1316 = vdwg.mxu0
  %1317 = vrot.lane.b32.xlu0 %v722, 48
  %v1318 = vpop.permute.xlu0 %1317
  %v1321 = vsel %vm884, %v1240, 0
  %1323 = vmatprep.subr.mxu0 0.0
  %1324 = vmatpush1.msra.mxu0 %v1318
  %1325 = vmatprep.subr.mxu0 0.0
  %1326 = vmatpush1.msra.mxu0 0.0
  %1327 = vmatprep.subr.mxu0 0.0
  %1328 = vmatpush1.msra.mxu0 0.0
  %1329 = vmatprep.subr.mxu0 0.0
  %1330 = vmatpush1.msra.mxu0 0.0
  %1331 = vmatprep.subr.mxu0 0.0
  %1332 = vmatpush1.msra.mxu0 0.0
  %1333 = vmatprep.subr.mxu0 0.0
  %1334 = vmatpush1.msra.mxu0 0.0
  %1335 = vmatprep.subr.mxu0 0.0
  %1336 = vmatpush1.msra.mxu0 0.0
  %1337 = vmatprep.subr.mxu0 0.0
  %1338 = vmatpush1.msra.mxu0 0.0
  %1339 = vmatprep.subr.mxu0 0.0
  %1340 = vmatpush1.msra.mxu0 0.0
  %1341 = vmatprep.subr.mxu0 0.0
  %1342 = vmatpush1.msra.mxu0 0.0
  %1343 = vmatprep.subr.mxu0 0.0
  %1344 = vmatpush1.msra.mxu0 0.0
  %1345 = vmatprep.subr.mxu0 0.0
  %1346 = vmatpush1.msra.mxu0 0.0
  %1347 = vmatprep.subr.mxu0 0.0
  %1348 = vmatpush1.msra.mxu0 0.0
  %1349 = vmatprep.subr.mxu0 0.0
  %1350 = vmatpush1.msra.mxu0 0.0
  %1351 = vmatprep.subr.mxu0 0.0
  %1352 = vmatpush1.msra.mxu0 0.0
  %1353 = vmatprep.subr.mxu0 0.0
  %1354 = vmatpush1.msra.mxu0 0.0
  %1355 = vmatprep.subr.mxu0 0.0
  %1356 = vmatpush1.msra.mxu0 0.0
  %1357 = vmatprep.subr.mxu0 0.0
  %1358 = vmatpush1.msra.mxu0 0.0
  %1359 = vmatprep.subr.mxu0 0.0
  %1360 = vmatpush1.msra.mxu0 0.0
  %1361 = vmatprep.subr.mxu0 0.0
  %1362 = vmatpush1.msra.mxu0 0.0
  %1363 = vmatprep.subr.mxu0 0.0
  %1364 = vmatpush1.msra.mxu0 0.0
  %1365 = vmatprep.subr.mxu0 0.0
  %1366 = vmatpush1.msra.mxu0 0.0
  %1367 = vmatprep.subr.mxu0 0.0
  %1368 = vmatpush1.msra.mxu0 0.0
  %1369 = vmatprep.subr.mxu0 0.0
  %1370 = vmatpush1.msra.mxu0 0.0
  %1371 = vmatprep.subr.mxu0 0.0
  %1372 = vmatpush1.msra.mxu0 0.0
  %1373 = vmatprep.subr.mxu0 0.0
  %1374 = vmatpush1.msra.mxu0 0.0
  %1375 = vmatprep.subr.mxu0 0.0
  %1376 = vmatpush1.msra.mxu0 0.0
  %1377 = vmatprep.subr.mxu0 0.0
  %1378 = vmatpush1.msra.mxu0 0.0
  %1379 = vmatprep.subr.mxu0 0.0
  %1380 = vmatpush1.msra.mxu0 0.0
  %1381 = vmatprep.subr.mxu0 0.0
  %1382 = vmatpush1.msra.mxu0 0.0
  %1383 = vmatprep.subr.mxu0 0.0
  %1384 = vmatpush1.msra.mxu0 0.0
  %1385 = vmatprep.subr.mxu0 0.0
  %1386 = vmatpush1.msra.mxu0 0.0
  %1387 = vmatprep.mubr.f32.mxu0 0.0
  %1388 = vmatmul.mubr.f32.gmra.mrb[0].mxu0 %v1321
  %v1389 = vpop.f32.mrb[0].mxu0
  %v1390 = vadd.f32 0.0, %v1389
  %v1391 = vpop.f32.mrb[0].mxu0
  %1392 = vdwg.mxu0
  %1395 = vrot.lane.b32.xlu0 %v1314, 16
  %v1396 = vpop.permute.xlu0 %1395
  %1397 = vrot.lane.b32.xlu0 %v1390, 16
  %v1398 = vpop.permute.xlu0 %1397
  %v1401 = vsel %vm728, %v980, %v1396
  %v1402 = vsel %vm728, %v1056, %v1398
  %v1403 = vpack.c.bf16 %v1402, %v1401
  %v1404 = vld [vmem:[%s9] sm:$0xf]
  %v1405 = vld [vmem:[%s9 + $0x4] sm:$0xf]
  %v1406 = vld [vmem:[%s9 + $0x8] sm:$0xf]
  %v1407 = vld [vmem:[%s9 + $0xc] sm:$0xf]
  %v1408 = vld [vmem:[%s10] sm:$0x1]
  %v1410 = vlaneseq
  %v1411 = vshrl.u32 %v1410, 7
  %v1412 = vsub.s32 0, %v1411
  %v1413 = vrot.slane %v1408, %v1412
  %v1419 = vunpack.c.l.b16 %v1404
  %v1420 = vunpack.c.l.b16 %v1405
  %v1421 = vunpack.c.l.b16 %v1406
  %v1422 = vunpack.c.l.b16 %v1407
  %v1423 = vpack.c.b16 %v1420, %v1419
  %v1424 = vpack.c.b16 %v1422, %v1421
  %v1428 = vsel %vm613, %v1403, 0
  %1430 = vmatprep.subr.bf16.mxu0 0
  %1431 = vmatpush1.bf16.msra.mxu0 %v1423
  %1432 = vmatprep.subr.bf16.mxu0 0
  %1433 = vmatpush1.bf16.msra.mxu0 %v1424
  %1434 = vmatprep.subr.bf16.mxu0 0
  %1435 = vmatpush1.bf16.msra.mxu0 0
  %1436 = vmatprep.subr.bf16.mxu0 0
  %1437 = vmatpush1.bf16.msra.mxu0 0
  %1438 = vmatprep.subr.bf16.mxu0 0
  %1439 = vmatpush1.bf16.msra.mxu0 0
  %1440 = vmatprep.subr.bf16.mxu0 0
  %1441 = vmatpush1.bf16.msra.mxu0 0
  %1442 = vmatprep.subr.bf16.mxu0 0
  %1443 = vmatpush1.bf16.msra.mxu0 0
  %1444 = vmatprep.subr.bf16.mxu0 0
  %1445 = vmatpush1.bf16.msra.mxu0 0
  %1446 = vmatprep.subr.bf16.mxu0 0
  %1447 = vmatpush1.bf16.msra.mxu0 0
  %1448 = vmatprep.subr.bf16.mxu0 0
  %1449 = vmatpush1.bf16.msra.mxu0 0
  %1450 = vmatprep.subr.bf16.mxu0 0
  %1451 = vmatpush1.bf16.msra.mxu0 0
  %1452 = vmatprep.subr.bf16.mxu0 0
  %1453 = vmatpush1.bf16.msra.mxu0 0
  %1454 = vmatprep.subr.bf16.mxu0 0
  %1455 = vmatpush1.bf16.msra.mxu0 0
  %1456 = vmatprep.subr.bf16.mxu0 0
  %1457 = vmatpush1.bf16.msra.mxu0 0
  %1458 = vmatprep.subr.bf16.mxu0 0
  %1459 = vmatpush1.bf16.msra.mxu0 0
  %1460 = vmatprep.subr.bf16.mxu0 0
  %1461 = vmatpush1.bf16.msra.mxu0 0
  %1462 = vmatprep.mubr.bf16.mxu0 0
  %1463 = vmatmul.mubr.bf16.gmra.mrb[0].mxu0 %v1428
  %v1464 = vpop.f32.mrb[0].mxu0
  %v1465 = vadd.f32 %v1413, %v1464
  %v1466 = vpop.f32.mrb[0].mxu0
  %v1467 = vpop.f32.mrb[0].mxu0
  %v1468 = vadd.f32 %v1413, %v1467
  %v1469 = vpop.f32.mrb[0].mxu0
  %1470 = vdwg.mxu0
  %v1471 = vadd.f32 %v597, %v1465
  %v1472 = vadd.f32 %v606, %v1468
  %v1473 = vld [vmem:[%s11] sm:$0x1]
  %v1474 = vld [vmem:[%s12] sm:$0x1]
  %v1475 = vsel %vm613, %v1471, 0.0
  %1476 = vadd.xlane.f32.xlu0 %v1475
  %v1477 = vpop.xlane.xlu0 %1476
  %v1478 = vsel %vm613, %v1472, 0.0
  %1479 = vadd.xlane.f32.xlu0 %v1478
  %v1480 = vpop.xlane.xlu0 %1479
  %v1481 = vmul.f32 %v1477, %v620
  %v1482 = vmul.f32 %v1480, %v620
  %v1483 = vsub.f32 %v1471, %v1481
  %v1484 = vsub.f32 %v1472, %v1482
  %v1485 = vmul.f32 %v1483, %v1483
  %v1486 = vmul.f32 %v1484, %v1484
  %v1487 = vsel %vm613, %v1485, 0.0
  %1488 = vadd.xlane.f32.xlu0 %v1487
  %v1489 = vpop.xlane.xlu0 %1488
  %v1490 = vsel %vm613, %v1486, 0.0
  %1491 = vadd.xlane.f32.xlu0 %v1490
  %v1492 = vpop.xlane.xlu0 %1491
  %v1493 = vmul.f32 %v1489, %v620
  %v1494 = vmul.f32 %v1492, %v620
  %v1495 = vadd.f32 %v1493, 1e-12
  %v1496 = vadd.f32 %v1494, 1e-12
  %v1497 = vrsqrt.pop %v1495
  %v1498 = vrsqrt.pop %v1496
  %v1499 = vmul.f32 %v1483, %v1497
  %v1500 = vmul.f32 %v1484, %v1498
  %v1502 = vlaneseq
  %v1503 = vshrl.u32 %v1502, 7
  %v1504 = vsub.s32 0, %v1503
  %v1505 = vrot.slane %v1473, %v1504
  %v1507 = vmul.f32 %v1499, %v1505
  %v1508 = vmul.f32 %v1500, %v1505
  %v1510 = vlaneseq
  %v1511 = vshrl.u32 %v1510, 7
  %v1512 = vsub.s32 0, %v1511
  %v1513 = vrot.slane %v1474, %v1512
  %v1515 = vadd.f32 %v1507, %v1513
  %v1516 = vadd.f32 %v1508, %v1513
  %v1517 = vpack.c.bf16 %v1516, %v1515
  %v1518 = vld [vmem:[%s13] sm:$0xf]
  %v1519 = vld [vmem:[%s13 + $0x4] sm:$0xf]
  %v1520 = vld [vmem:[%s13 + $0x8] sm:$0xf]
  %v1521 = vld [vmem:[%s13 + $0xc] sm:$0xf]
  %v1522 = vld [vmem:[%s14] sm:$0x1]
  %v1524 = vlaneseq
  %v1525 = vshrl.u32 %v1524, 7
  %v1526 = vsub.s32 0, %v1525
  %v1527 = vrot.slane %v1522, %v1526
  %v1533 = vunpack.c.l.b16 %v1518
  %v1534 = vunpack.c.l.b16 %v1519
  %v1535 = vunpack.c.l.b16 %v1520
  %v1536 = vunpack.c.l.b16 %v1521
  %v1537 = vpack.c.b16 %v1534, %v1533
  %v1538 = vpack.c.b16 %v1536, %v1535
  %v1542 = vsel %vm613, %v1517, 0
  %1544 = vmatprep.subr.bf16.mxu0 0
  %1545 = vmatpush1.bf16.msra.mxu0 %v1537
  %1546 = vmatprep.subr.bf16.mxu0 0
  %1547 = vmatpush1.bf16.msra.mxu0 %v1538
  %1548 = vmatprep.subr.bf16.mxu0 0
  %1549 = vmatpush1.bf16.msra.mxu0 0
  %1550 = vmatprep.subr.bf16.mxu0 0
  %1551 = vmatpush1.bf16.msra.mxu0 0
  %1552 = vmatprep.subr.bf16.mxu0 0
  %1553 = vmatpush1.bf16.msra.mxu0 0
  %1554 = vmatprep.subr.bf16.mxu0 0
  %1555 = vmatpush1.bf16.msra.mxu0 0
  %1556 = vmatprep.subr.bf16.mxu0 0
  %1557 = vmatpush1.bf16.msra.mxu0 0
  %1558 = vmatprep.subr.bf16.mxu0 0
  %1559 = vmatpush1.bf16.msra.mxu0 0
  %1560 = vmatprep.subr.bf16.mxu0 0
  %1561 = vmatpush1.bf16.msra.mxu0 0
  %1562 = vmatprep.subr.bf16.mxu0 0
  %1563 = vmatpush1.bf16.msra.mxu0 0
  %1564 = vmatprep.subr.bf16.mxu0 0
  %1565 = vmatpush1.bf16.msra.mxu0 0
  %1566 = vmatprep.subr.bf16.mxu0 0
  %1567 = vmatpush1.bf16.msra.mxu0 0
  %1568 = vmatprep.subr.bf16.mxu0 0
  %1569 = vmatpush1.bf16.msra.mxu0 0
  %1570 = vmatprep.subr.bf16.mxu0 0
  %1571 = vmatpush1.bf16.msra.mxu0 0
  %1572 = vmatprep.subr.bf16.mxu0 0
  %1573 = vmatpush1.bf16.msra.mxu0 0
  %1574 = vmatprep.subr.bf16.mxu0 0
  %1575 = vmatpush1.bf16.msra.mxu0 0
  %1576 = vmatprep.mubr.bf16.mxu0 0
  %1577 = vmatmul.mubr.bf16.gmra.mrb[0].mxu0 %v1542
  %v1578 = vpop.f32.mrb[0].mxu0
  %v1579 = vadd.f32 %v1527, %v1578
  %v1580 = vpop.f32.mrb[0].mxu0
  %v1581 = vpop.f32.mrb[0].mxu0
  %v1582 = vadd.f32 %v1527, %v1581
  %v1583 = vpop.f32.mrb[0].mxu0
  %1584 = vdwg.mxu0
  %v1585 = vmul.f32 %v1579, 0.5
  %v1586 = vmul.f32 %v1582, 0.5
  %v1587 = vmul.f32 %v1579, 0.044715
  %v1588 = vmul.f32 %v1582, 0.044715
  %v1589 = vmul.f32 %v1587, %v1579
  %v1590 = vmul.f32 %v1588, %v1582
  %v1591 = vmul.f32 %v1589, %v1579
  %v1592 = vmul.f32 %v1590, %v1582
  %v1593 = vadd.f32 %v1579, %v1591
  %v1594 = vadd.f32 %v1582, %v1592
  %v1595 = vmul.f32 %v1593, 0.7978846
  %v1596 = vmul.f32 %v1594, 0.7978846
  %v1597 = vtanh.pop %v1595
  %v1598 = vtanh.pop %v1596
  %v1599 = vadd.f32 %v1597, 1.0
  %v1600 = vadd.f32 %v1598, 1.0
  %v1601 = vmul.f32 %v1585, %v1599
  %v1602 = vmul.f32 %v1586, %v1600
  %v1603 = vpack.c.bf16 %v1602, %v1601
  %v1604 = vld [vmem:[%s15] sm:$0xf]
  %v1605 = vld [vmem:[%s15 + $0x4] sm:$0xf]
  %v1606 = vld [vmem:[%s15 + $0x8] sm:$0xf]
  %v1607 = vld [vmem:[%s15 + $0xc] sm:$0xf]
  %v1608 = vld [vmem:[%s15 + $0x10] sm:$0xf]
  %v1609 = vld [vmem:[%s15 + $0x14] sm:$0xf]
  %v1610 = vld [vmem:[%s15 + $0x18] sm:$0xf]
  %v1611 = vld [vmem:[%s15 + $0x1c] sm:$0xf]
  %v1612 = vld [vmem:[%s15 + $0x20] sm:$0xf]
  %v1613 = vld [vmem:[%s15 + $0x24] sm:$0xf]
  %v1614 = vld [vmem:[%s15 + $0x28] sm:$0xf]
  %v1615 = vld [vmem:[%s15 + $0x2c] sm:$0xf]
  %v1616 = vld [vmem:[%s15 + $0x30] sm:$0xf]
  %v1617 = vld [vmem:[%s15 + $0x34] sm:$0xf]
  %v1618 = vld [vmem:[%s15 + $0x38] sm:$0xf]
  %v1619 = vld [vmem:[%s15 + $0x3c] sm:$0xf]
  %v1620 = vld [vmem:[%s16] sm:$0x1]
  %v1622 = vlaneseq
  %v1623 = vshrl.u32 %v1622, 7
  %v1624 = vsub.s32 0, %v1623
  %v1625 = vrot.slane %v1620, %v1624
  %v1643 = vunpack.c.l.b16 %v1604
  %v1644 = vunpack.c.l.b16 %v1605
  %v1645 = vunpack.c.l.b16 %v1606
  %v1646 = vunpack.c.l.b16 %v1607
  %v1647 = vunpack.c.l.b16 %v1608
  %v1648 = vunpack.c.l.b16 %v1609
  %v1649 = vunpack.c.l.b16 %v1610
  %v1650 = vunpack.c.l.b16 %v1611
  %v1651 = vunpack.c.l.b16 %v1612
  %v1652 = vunpack.c.l.b16 %v1613
  %v1653 = vunpack.c.l.b16 %v1614
  %v1654 = vunpack.c.l.b16 %v1615
  %v1655 = vunpack.c.l.b16 %v1616
  %v1656 = vunpack.c.l.b16 %v1617
  %v1657 = vunpack.c.l.b16 %v1618
  %v1658 = vunpack.c.l.b16 %v1619
  %v1659 = vpack.c.b16 %v1644, %v1643
  %v1660 = vpack.c.b16 %v1646, %v1645
  %v1661 = vpack.c.b16 %v1648, %v1647
  %v1662 = vpack.c.b16 %v1650, %v1649
  %v1663 = vpack.c.b16 %v1652, %v1651
  %v1664 = vpack.c.b16 %v1654, %v1653
  %v1665 = vpack.c.b16 %v1656, %v1655
  %v1666 = vpack.c.b16 %v1658, %v1657
  %1675 = vmatprep.subr.bf16.mxu0 0
  %1676 = vmatpush1.bf16.msra.mxu0 %v1659
  %1677 = vmatprep.subr.bf16.mxu0 0
  %1678 = vmatpush1.bf16.msra.mxu0 %v1660
  %1679 = vmatprep.subr.bf16.mxu0 0
  %1680 = vmatpush1.bf16.msra.mxu0 %v1661
  %1681 = vmatprep.subr.bf16.mxu0 0
  %1682 = vmatpush1.bf16.msra.mxu0 %v1662
  %1683 = vmatprep.subr.bf16.mxu0 0
  %1684 = vmatpush1.bf16.msra.mxu0 %v1663
  %1685 = vmatprep.subr.bf16.mxu0 0
  %1686 = vmatpush1.bf16.msra.mxu0 %v1664
  %1687 = vmatprep.subr.bf16.mxu0 0
  %1688 = vmatpush1.bf16.msra.mxu0 %v1665
  %1689 = vmatprep.subr.bf16.mxu0 0
  %1690 = vmatpush1.bf16.msra.mxu0 %v1666
  %1691 = vmatprep.subr.bf16.mxu0 0
  %1692 = vmatpush1.bf16.msra.mxu0 0
  %1693 = vmatprep.subr.bf16.mxu0 0
  %1694 = vmatpush1.bf16.msra.mxu0 0
  %1695 = vmatprep.subr.bf16.mxu0 0
  %1696 = vmatpush1.bf16.msra.mxu0 0
  %1697 = vmatprep.subr.bf16.mxu0 0
  %1698 = vmatpush1.bf16.msra.mxu0 0
  %1699 = vmatprep.subr.bf16.mxu0 0
  %1700 = vmatpush1.bf16.msra.mxu0 0
  %1701 = vmatprep.subr.bf16.mxu0 0
  %1702 = vmatpush1.bf16.msra.mxu0 0
  %1703 = vmatprep.subr.bf16.mxu0 0
  %1704 = vmatpush1.bf16.msra.mxu0 0
  %1705 = vmatprep.subr.bf16.mxu0 0
  %1706 = vmatpush1.bf16.msra.mxu0 0
  %1707 = vmatprep.mubr.bf16.mxu0 0
  %1708 = vmatmul.mubr.bf16.gmra.mrb[0].mxu0 %v1603
  %v1709 = vpop.f32.mrb[0].mxu0
  %v1710 = vadd.f32 %v1625, %v1709
  %v1711 = vpop.f32.mrb[0].mxu0
  %v1712 = vpop.f32.mrb[0].mxu0
  %v1713 = vadd.f32 %v1625, %v1712
  %v1714 = vpop.f32.mrb[0].mxu0
  %1715 = vdwg.mxu0
  %v1716 = vadd.f32 %v1471, %v1710
  %v1717 = vadd.f32 %v1472, %v1713
  %s1718 = scalar_lea.vmem %s5, 1
  %v1719 = vld [vmem:[%s1718] sm:$0x1]
  %s1720 = scalar_lea.vmem %s6, 1
  %v1721 = vld [vmem:[%s1720] sm:$0x1]
  %v1722 = vsel %vm613, %v1716, 0.0
  %1723 = vadd.xlane.f32.xlu0 %v1722
  %v1724 = vpop.xlane.xlu0 %1723
  %v1725 = vsel %vm613, %v1717, 0.0
  %1726 = vadd.xlane.f32.xlu0 %v1725
  %v1727 = vpop.xlane.xlu0 %1726
  %v1728 = vmul.f32 %v1724, %v620
  %v1729 = vmul.f32 %v1727, %v620
  %v1730 = vsub.f32 %v1716, %v1728
  %v1731 = vsub.f32 %v1717, %v1729
  %v1732 = vmul.f32 %v1730, %v1730
  %v1733 = vmul.f32 %v1731, %v1731
  %v1734 = vsel %vm613, %v1732, 0.0
  %1735 = vadd.xlane.f32.xlu0 %v1734
  %v1736 = vpop.xlane.xlu0 %1735
  %v1737 = vsel %vm613, %v1733, 0.0
  %1738 = vadd.xlane.f32.xlu0 %v1737
  %v1739 = vpop.xlane.xlu0 %1738
  %v1740 = vmul.f32 %v1736, %v620
  %v1741 = vmul.f32 %v1739, %v620
  %v1742 = vadd.f32 %v1740, 1e-12
  %v1743 = vadd.f32 %v1741, 1e-12
  %v1744 = vrsqrt.pop %v1742
  %v1745 = vrsqrt.pop %v1743
  %v1746 = vmul.f32 %v1730, %v1744
  %v1747 = vmul.f32 %v1731, %v1745
  %v1749 = vlaneseq
  %v1750 = vshrl.u32 %v1749, 7
  %v1751 = vsub.s32 0, %v1750
  %v1752 = vrot.slane %v1719, %v1751
  %v1754 = vmul.f32 %v1746, %v1752
  %v1755 = vmul.f32 %v1747, %v1752
  %v1757 = vlaneseq
  %v1758 = vshrl.u32 %v1757, 7
  %v1759 = vsub.s32 0, %v1758
  %v1760 = vrot.slane %v1721, %v1759
  %v1762 = vadd.f32 %v1754, %v1760
  %v1763 = vadd.f32 %v1755, %v1760
  %v1764 = vpack.c.bf16 %v1763, %v1762
  %s1765 = scalar_lea.vmem %s7, 16
  %v1766 = vld [vmem:[%s1765] sm:$0xf]
  %v1767 = vld [vmem:[%s1765 + $0x4] sm:$0xf]
  %v1768 = vld [vmem:[%s1765 + $0x8] sm:$0xf]
  %v1769 = vld [vmem:[%s1765 + $0xc] sm:$0xf]
  %s1770 = scalar_lea.vmem %s8, 1
  %v1771 = vld [vmem:[%s1770] sm:$0x1]
  %v1773 = vlaneseq
  %v1774 = vshrl.u32 %v1773, 7
  %v1775 = vsub.s32 0, %v1774
  %v1776 = vrot.slane %v1771, %v1775
  %v1782 = vunpack.c.l.b16 %v1766
  %v1783 = vunpack.c.l.b16 %v1767
  %v1784 = vunpack.c.l.b16 %v1768
  %v1785 = vunpack.c.l.b16 %v1769
  %v1786 = vpack.c.b16 %v1783, %v1782
  %v1787 = vpack.c.b16 %v1785, %v1784
  %v1791 = vsel %vm613, %v1764, 0
  %1793 = vmatprep.subr.bf16.mxu0 0
  %1794 = vmatpush1.bf16.msra.mxu0 %v1786
  %1795 = vmatprep.subr.bf16.mxu0 0
  %1796 = vmatpush1.bf16.msra.mxu0 %v1787
  %1797 = vmatprep.subr.bf16.mxu0 0
  %1798 = vmatpush1.bf16.msra.mxu0 0
  %1799 = vmatprep.subr.bf16.mxu0 0
  %1800 = vmatpush1.bf16.msra.mxu0 0
  %1801 = vmatprep.subr.bf16.mxu0 0
  %1802 = vmatpush1.bf16.msra.mxu0 0
  %1803 = vmatprep.subr.bf16.mxu0 0
  %1804 = vmatpush1.bf16.msra.mxu0 0
  %1805 = vmatprep.subr.bf16.mxu0 0
  %1806 = vmatpush1.bf16.msra.mxu0 0
  %1807 = vmatprep.subr.bf16.mxu0 0
  %1808 = vmatpush1.bf16.msra.mxu0 0
  %1809 = vmatprep.subr.bf16.mxu0 0
  %1810 = vmatpush1.bf16.msra.mxu0 0
  %1811 = vmatprep.subr.bf16.mxu0 0
  %1812 = vmatpush1.bf16.msra.mxu0 0
  %1813 = vmatprep.subr.bf16.mxu0 0
  %1814 = vmatpush1.bf16.msra.mxu0 0
  %1815 = vmatprep.subr.bf16.mxu0 0
  %1816 = vmatpush1.bf16.msra.mxu0 0
  %1817 = vmatprep.subr.bf16.mxu0 0
  %1818 = vmatpush1.bf16.msra.mxu0 0
  %1819 = vmatprep.subr.bf16.mxu0 0
  %1820 = vmatpush1.bf16.msra.mxu0 0
  %1821 = vmatprep.subr.bf16.mxu0 0
  %1822 = vmatpush1.bf16.msra.mxu0 0
  %1823 = vmatprep.subr.bf16.mxu0 0
  %1824 = vmatpush1.bf16.msra.mxu0 0
  %1825 = vmatprep.mubr.bf16.mxu0 0
  %1826 = vmatmul.mubr.bf16.gmra.mrb[0].mxu0 %v1791
  %v1827 = vpop.f32.mrb[0].mxu0
  %v1828 = vadd.f32 %v1776, %v1827
  %v1829 = vpop.f32.mrb[0].mxu0
  %v1830 = vpop.f32.mrb[0].mxu0
  %v1831 = vadd.f32 %v1776, %v1830
  %v1832 = vpop.f32.mrb[0].mxu0
  %1833 = vdwg.mxu0
  %1835 = vrot.lane.b32.xlu0 %v1828, 96
  %v1836 = vpop.permute.xlu0 %1835
  %v1837 = vsel %vm728, %v1828, 0
  %v1839 = vsel %vm728, %v1836, 0
  %1841 = vmatprep.subr.mxu0 0.0
  %1842 = vmatpush1.xpose.msra.mxu0 %v1839
  %1843 = vmatprep.subr.mxu0 0.0
  %1844 = vmatpush1.xpose.msra.mxu0 0.0
  %1845 = vmatprep.subr.mxu0 0.0
  %1846 = vmatpush1.xpose.msra.mxu0 0.0
  %1847 = vmatprep.subr.mxu0 0.0
  %1848 = vmatpush1.xpose.msra.mxu0 0.0
  %1849 = vmatprep.subr.mxu0 0.0
  %1850 = vmatpush1.xpose.msra.mxu0 0.0
  %1851 = vmatprep.subr.mxu0 0.0
  %1852 = vmatpush1.xpose.msra.mxu0 0.0
  %1853 = vmatprep.subr.mxu0 0.0
  %1854 = vmatpush1.xpose.msra.mxu0 0.0
  %1855 = vmatprep.subr.mxu0 0.0
  %1856 = vmatpush1.xpose.msra.mxu0 0.0
  %1857 = vmatprep.subr.mxu0 0.0
  %1858 = vmatpush1.xpose.msra.mxu0 0.0
  %1859 = vmatprep.subr.mxu0 0.0
  %1860 = vmatpush1.xpose.msra.mxu0 0.0
  %1861 = vmatprep.subr.mxu0 0.0
  %1862 = vmatpush1.xpose.msra.mxu0 0.0
  %1863 = vmatprep.subr.mxu0 0.0
  %1864 = vmatpush1.xpose.msra.mxu0 0.0
  %1865 = vmatprep.subr.mxu0 0.0
  %1866 = vmatpush1.xpose.msra.mxu0 0.0
  %1867 = vmatprep.subr.mxu0 0.0
  %1868 = vmatpush1.xpose.msra.mxu0 0.0
  %1869 = vmatprep.subr.mxu0 0.0
  %1870 = vmatpush1.xpose.msra.mxu0 0.0
  %1871 = vmatprep.subr.mxu0 0.0
  %1872 = vmatpush1.xpose.msra.mxu0 0.0
  %1873 = vmatprep.subr.mxu0 0.0
  %1874 = vmatpush1.xpose.msra.mxu0 0.0
  %1875 = vmatprep.subr.mxu0 0.0
  %1876 = vmatpush1.xpose.msra.mxu0 0.0
  %1877 = vmatprep.subr.mxu0 0.0
  %1878 = vmatpush1.xpose.msra.mxu0 0.0
  %1879 = vmatprep.subr.mxu0 0.0
  %1880 = vmatpush1.xpose.msra.mxu0 0.0
  %1881 = vmatprep.subr.mxu0 0.0
  %1882 = vmatpush1.xpose.msra.mxu0 0.0
  %1883 = vmatprep.subr.mxu0 0.0
  %1884 = vmatpush1.xpose.msra.mxu0 0.0
  %1885 = vmatprep.subr.mxu0 0.0
  %1886 = vmatpush1.xpose.msra.mxu0 0.0
  %1887 = vmatprep.subr.mxu0 0.0
  %1888 = vmatpush1.xpose.msra.mxu0 0.0
  %1889 = vmatprep.subr.mxu0 0.0
  %1890 = vmatpush1.xpose.msra.mxu0 0.0
  %1891 = vmatprep.subr.mxu0 0.0
  %1892 = vmatpush1.xpose.msra.mxu0 0.0
  %1893 = vmatprep.subr.mxu0 0.0
  %1894 = vmatpush1.xpose.msra.mxu0 0.0
  %1895 = vmatprep.subr.mxu0 0.0
  %1896 = vmatpush1.xpose.msra.mxu0 0.0
  %1897 = vmatprep.subr.mxu0 0.0
  %1898 = vmatpush1.xpose.msra.mxu0 0.0
  %1899 = vmatprep.subr.mxu0 0.0
  %1900 = vmatpush1.xpose.msra.mxu0 0.0
  %1901 = vmatprep.subr.mxu0 0.0
  %1902 = vmatpush1.xpose.msra.mxu0 0.0
  %1903 = vmatprep.subr.mxu0 0.0
  %1904 = vmatpush1.xpose.msra.mxu0 0.0
  %1905 = vmatprep.mubr.f32.mxu0 0.0
  %1906 = vmatmul.mubr.f32.gmra.mrb[0].mxu0 %v1837
  %v1907 = vpop.f32.mrb[0].mxu0
  %v1908 = vadd.f32 0.0, %v1907
  %v1909 = vpop.f32.mrb[0].mxu0
  %1910 = vdwg.mxu0
  %1912 = vrot.lane.b32.xlu0 %v1831, 96
  %v1913 = vpop.permute.xlu0 %1912
  %v1914 = vsel %vm728, %v1831, 0
  %v1916 = vsel %vm728, %v1913, 0
  %1918 = vmatprep.subr.mxu0 0.0
  %1919 = vmatpush1.xpose.msra.mxu0 %v1916
  %1920 = vmatprep.subr.mxu0 0.0
  %1921 = vmatpush1.xpose.msra.mxu0 0.0
  %1922 = vmatprep.subr.mxu0 0.0
  %1923 = vmatpush1.xpose.msra.mxu0 0.0
  %1924 = vmatprep.subr.mxu0 0.0
  %1925 = vmatpush1.xpose.msra.mxu0 0.0
  %1926 = vmatprep.subr.mxu0 0.0
  %1927 = vmatpush1.xpose.msra.mxu0 0.0
  %1928 = vmatprep.subr.mxu0 0.0
  %1929 = vmatpush1.xpose.msra.mxu0 0.0
  %1930 = vmatprep.subr.mxu0 0.0
  %1931 = vmatpush1.xpose.msra.mxu0 0.0
  %1932 = vmatprep.subr.mxu0 0.0
  %1933 = vmatpush1.xpose.msra.mxu0 0.0
  %1934 = vmatprep.subr.mxu0 0.0
  %1935 = vmatpush1.xpose.msra.mxu0 0.0
  %1936 = vmatprep.subr.mxu0 0.0
  %1937 = vmatpush1.xpose.msra.mxu0 0.0
  %1938 = vmatprep.subr.mxu0 0.0
  %1939 = vmatpush1.xpose.msra.mxu0 0.0
  %1940 = vmatprep.subr.mxu0 0.0
  %1941 = vmatpush1.xpose.msra.mxu0 0.0
  %1942 = vmatprep.subr.mxu0 0.0
  %1943 = vmatpush1.xpose.msra.mxu0 0.0
  %1944 = vmatprep.subr.mxu0 0.0
  %1945 = vmatpush1.xpose.msra.mxu0 0.0
  %1946 = vmatprep.subr.mxu0 0.0
  %1947 = vmatpush1.xpose.msra.mxu0 0.0
  %1948 = vmatprep.subr.mxu0 0.0
  %1949 = vmatpush1.xpose.msra.mxu0 0.0
  %1950 = vmatprep.subr.mxu0 0.0
  %1951 = vmatpush1.xpose.msra.mxu0 0.0
  %1952 = vmatprep.subr.mxu0 0.0
  %1953 = vmatpush1.xpose.msra.mxu0 0.0
  %1954 = vmatprep.subr.mxu0 0.0
  %1955 = vmatpush1.xpose.msra.mxu0 0.0
  %1956 = vmatprep.subr.mxu0 0.0
  %1957 = vmatpush1.xpose.msra.mxu0 0.0
  %1958 = vmatprep.subr.mxu0 0.0
  %1959 = vmatpush1.xpose.msra.mxu0 0.0
  %1960 = vmatprep.subr.mxu0 0.0
  %1961 = vmatpush1.xpose.msra.mxu0 0.0
  %1962 = vmatprep.subr.mxu0 0.0
  %1963 = vmatpush1.xpose.msra.mxu0 0.0
  %1964 = vmatprep.subr.mxu0 0.0
  %1965 = vmatpush1.xpose.msra.mxu0 0.0
  %1966 = vmatprep.subr.mxu0 0.0
  %1967 = vmatpush1.xpose.msra.mxu0 0.0
  %1968 = vmatprep.subr.mxu0 0.0
  %1969 = vmatpush1.xpose.msra.mxu0 0.0
  %1970 = vmatprep.subr.mxu0 0.0
  %1971 = vmatpush1.xpose.msra.mxu0 0.0
  %1972 = vmatprep.subr.mxu0 0.0
  %1973 = vmatpush1.xpose.msra.mxu0 0.0
  %1974 = vmatprep.subr.mxu0 0.0
  %1975 = vmatpush1.xpose.msra.mxu0 0.0
  %1976 = vmatprep.subr.mxu0 0.0
  %1977 = vmatpush1.xpose.msra.mxu0 0.0
  %1978 = vmatprep.subr.mxu0 0.0
  %1979 = vmatpush1.xpose.msra.mxu0 0.0
  %1980 = vmatprep.subr.mxu0 0.0
  %1981 = vmatpush1.xpose.msra.mxu0 0.0
  %1982 = vmatprep.mubr.f32.mxu0 0.0
  %1983 = vmatmul.mubr.f32.gmra.mrb[0].mxu0 %v1914
  %v1984 = vpop.f32.mrb[0].mxu0
  %v1985 = vadd.f32 0.0, %v1984
  %v1986 = vpop.f32.mrb[0].mxu0
  %1987 = vdwg.mxu0
  %v1988 = vmul.f32 %v1908, 0.25
  %v1989 = vmul.f32 %v1985, 0.25
  %v1990 = vadd.f32 %v1988, %v610
  %v1991 = vadd.f32 %v1989, %v610
  %v1992 = vsel %vm884, %v1990, -inf
  %1993 = vmax.xlane.f32.xlu0 %v1992
  %v1994 = vpop.xlane.xlu0 %1993
  %v1995 = vsel %vm884, %v1991, -inf
  %1996 = vmax.xlane.f32.xlu0 %v1995
  %v1997 = vpop.xlane.xlu0 %1996
  %v1998 = vsub.f32 %v1990, %v1994
  %v1999 = vsub.f32 %v1991, %v1997
  %v2000 = vmul.f32 %v1998, 1.442695
  %v2001 = vpow.pop %v2000
  %v2002 = vmul.f32 %v1999, 1.442695
  %v2003 = vpow.pop %v2002
  %v2004 = vsel %vm884, %v2001, 0.0
  %2005 = vadd.xlane.f32.xlu0 %v2004
  %v2006 = vpop.xlane.xlu0 %2005
  %v2007 = vsel %vm884, %v2003, 0.0
  %2008 = vadd.xlane.f32.xlu0 %v2007
  %v2009 = vpop.xlane.xlu0 %2008
  %v2010 = vrcp.pop %v2006
  %v2011 = vrcp.pop %v2009
  %v2012 = vmul.f32 %v2001, %v2010
  %v2013 = vmul.f32 %v2003, %v2011
  %2014 = vrot.lane.b32.xlu0 %v1828, 64
  %v2015 = vpop.permute.xlu0 %2014
  %v2018 = vsel %vm884, %v2012, 0
  %2020 = vmatprep.subr.mxu0 0.0
  %2021 = vmatpush1.msra.mxu0 %v2015
  %2022 = vmatprep.subr.mxu0 0.0
  %2023 = vmatpush1.msra.mxu0 0.0
  %2024 = vmatprep.subr.mxu0 0.0
  %2025 = vmatpush1.msra.mxu0 0.0
  %2026 = vmatprep.subr.mxu0 0.0
  %2027 = vmatpush1.msra.mxu0 0.0
  %2028 = vmatprep.subr.mxu0 0.0
  %2029 = vmatpush1.msra.mxu0 0.0
  %2030 = vmatprep.subr.mxu0 0.0
  %2031 = vmatpush1.msra.mxu0 0.0
  %2032 = vmatprep.subr.mxu0 0.0
  %2033 = vmatpush1.msra.mxu0 0.0
  %2034 = vmatprep.subr.mxu0 0.0
  %2035 = vmatpush1.msra.mxu0 0.0
  %2036 = vmatprep.subr.mxu0 0.0
  %2037 = vmatpush1.msra.mxu0 0.0
  %2038 = vmatprep.subr.mxu0 0.0
  %2039 = vmatpush1.msra.mxu0 0.0
  %2040 = vmatprep.subr.mxu0 0.0
  %2041 = vmatpush1.msra.mxu0 0.0
  %2042 = vmatprep.subr.mxu0 0.0
  %2043 = vmatpush1.msra.mxu0 0.0
  %2044 = vmatprep.subr.mxu0 0.0
  %2045 = vmatpush1.msra.mxu0 0.0
  %2046 = vmatprep.subr.mxu0 0.0
  %2047 = vmatpush1.msra.mxu0 0.0
  %2048 = vmatprep.subr.mxu0 0.0
  %2049 = vmatpush1.msra.mxu0 0.0
  %2050 = vmatprep.subr.mxu0 0.0
  %2051 = vmatpush1.msra.mxu0 0.0
  %2052 = vmatprep.subr.mxu0 0.0
  %2053 = vmatpush1.msra.mxu0 0.0
  %2054 = vmatprep.subr.mxu0 0.0
  %2055 = vmatpush1.msra.mxu0 0.0
  %2056 = vmatprep.subr.mxu0 0.0
  %2057 = vmatpush1.msra.mxu0 0.0
  %2058 = vmatprep.subr.mxu0 0.0
  %2059 = vmatpush1.msra.mxu0 0.0
  %2060 = vmatprep.subr.mxu0 0.0
  %2061 = vmatpush1.msra.mxu0 0.0
  %2062 = vmatprep.subr.mxu0 0.0
  %2063 = vmatpush1.msra.mxu0 0.0
  %2064 = vmatprep.subr.mxu0 0.0
  %2065 = vmatpush1.msra.mxu0 0.0
  %2066 = vmatprep.subr.mxu0 0.0
  %2067 = vmatpush1.msra.mxu0 0.0
  %2068 = vmatprep.subr.mxu0 0.0
  %2069 = vmatpush1.msra.mxu0 0.0
  %2070 = vmatprep.subr.mxu0 0.0
  %2071 = vmatpush1.msra.mxu0 0.0
  %2072 = vmatprep.subr.mxu0 0.0
  %2073 = vmatpush1.msra.mxu0 0.0
  %2074 = vmatprep.subr.mxu0 0.0
  %2075 = vmatpush1.msra.mxu0 0.0
  %2076 = vmatprep.subr.mxu0 0.0
  %2077 = vmatpush1.msra.mxu0 0.0
  %2078 = vmatprep.subr.mxu0 0.0
  %2079 = vmatpush1.msra.mxu0 0.0
  %2080 = vmatprep.subr.mxu0 0.0
  %2081 = vmatpush1.msra.mxu0 0.0
  %2082 = vmatprep.subr.mxu0 0.0
  %2083 = vmatpush1.msra.mxu0 0.0
  %2084 = vmatprep.mubr.f32.mxu0 0.0
  %2085 = vmatmul.mubr.f32.gmra.mrb[0].mxu0 %v2018
  %v2086 = vpop.f32.mrb[0].mxu0
  %v2087 = vadd.f32 0.0, %v2086
  %v2088 = vpop.f32.mrb[0].mxu0
  %2089 = vdwg.mxu0
  %2090 = vrot.lane.b32.xlu0 %v1831, 64
  %v2091 = vpop.permute.xlu0 %2090
  %v2094 = vsel %vm884, %v2013, 0
  %2096 = vmatprep.subr.mxu0 0.0
  %2097 = vmatpush1.msra.mxu0 %v2091
  %2098 = vmatprep.subr.mxu0 0.0
  %2099 = vmatpush1.msra.mxu0 0.0
  %2100 = vmatprep.subr.mxu0 0.0
  %2101 = vmatpush1.msra.mxu0 0.0
  %2102 = vmatprep.subr.mxu0 0.0
  %2103 = vmatpush1.msra.mxu0 0.0
  %2104 = vmatprep.subr.mxu0 0.0
  %2105 = vmatpush1.msra.mxu0 0.0
  %2106 = vmatprep.subr.mxu0 0.0
  %2107 = vmatpush1.msra.mxu0 0.0
  %2108 = vmatprep.subr.mxu0 0.0
  %2109 = vmatpush1.msra.mxu0 0.0
  %2110 = vmatprep.subr.mxu0 0.0
  %2111 = vmatpush1.msra.mxu0 0.0
  %2112 = vmatprep.subr.mxu0 0.0
  %2113 = vmatpush1.msra.mxu0 0.0
  %2114 = vmatprep.subr.mxu0 0.0
  %2115 = vmatpush1.msra.mxu0 0.0
  %2116 = vmatprep.subr.mxu0 0.0
  %2117 = vmatpush1.msra.mxu0 0.0
  %2118 = vmatprep.subr.mxu0 0.0
  %2119 = vmatpush1.msra.mxu0 0.0
  %2120 = vmatprep.subr.mxu0 0.0
  %2121 = vmatpush1.msra.mxu0 0.0
  %2122 = vmatprep.subr.mxu0 0.0
  %2123 = vmatpush1.msra.mxu0 0.0
  %2124 = vmatprep.subr.mxu0 0.0
  %2125 = vmatpush1.msra.mxu0 0.0
  %2126 = vmatprep.subr.mxu0 0.0
  %2127 = vmatpush1.msra.mxu0 0.0
  %2128 = vmatprep.subr.mxu0 0.0
  %2129 = vmatpush1.msra.mxu0 0.0
  %2130 = vmatprep.subr.mxu0 0.0
  %2131 = vmatpush1.msra.mxu0 0.0
  %2132 = vmatprep.subr.mxu0 0.0
  %2133 = vmatpush1.msra.mxu0 0.0
  %2134 = vmatprep.subr.mxu0 0.0
  %2135 = vmatpush1.msra.mxu0 0.0
  %2136 = vmatprep.subr.mxu0 0.0
  %2137 = vmatpush1.msra.mxu0 0.0
  %2138 = vmatprep.subr.mxu0 0.0
  %2139 = vmatpush1.msra.mxu0 0.0
  %2140 = vmatprep.subr.mxu0 0.0
  %2141 = vmatpush1.msra.mxu0 0.0
  %2142 = vmatprep.subr.mxu0 0.0
  %2143 = vmatpush1.msra.mxu0 0.0
  %2144 = vmatprep.subr.mxu0 0.0
  %2145 = vmatpush1.msra.mxu0 0.0
  %2146 = vmatprep.subr.mxu0 0.0
  %2147 = vmatpush1.msra.mxu0 0.0
  %2148 = vmatprep.subr.mxu0 0.0
  %2149 = vmatpush1.msra.mxu0 0.0
  %2150 = vmatprep.subr.mxu0 0.0
  %2151 = vmatpush1.msra.mxu0 0.0
  %2152 = vmatprep.subr.mxu0 0.0
  %2153 = vmatpush1.msra.mxu0 0.0
  %2154 = vmatprep.subr.mxu0 0.0
  %2155 = vmatpush1.msra.mxu0 0.0
  %2156 = vmatprep.subr.mxu0 0.0
  %2157 = vmatpush1.msra.mxu0 0.0
  %2158 = vmatprep.subr.mxu0 0.0
  %2159 = vmatpush1.msra.mxu0 0.0
  %2160 = vmatprep.mubr.f32.mxu0 0.0
  %2161 = vmatmul.mubr.f32.gmra.mrb[0].mxu0 %v2094
  %v2162 = vpop.f32.mrb[0].mxu0
  %v2163 = vadd.f32 0.0, %v2162
  %v2164 = vpop.f32.mrb[0].mxu0
  %2165 = vdwg.mxu0
  %2166 = vrot.lane.b32.xlu0 %v1828, 112
  %v2167 = vpop.permute.xlu0 %2166
  %2168 = vrot.lane.b32.xlu0 %v1828, 80
  %v2169 = vpop.permute.xlu0 %2168
  %v2170 = vsel %vm728, %v2167, 0
  %v2172 = vsel %vm728, %v2169, 0
  %2174 = vmatprep.subr.mxu0 0.0
  %2175 = vmatpush1.xpose.msra.mxu0 %v2172
  %2176 = vmatprep.subr.mxu0 0.0
  %2177 = vmatpush1.xpose.msra.mxu0 0.0
  %2178 = vmatprep.subr.mxu0 0.0
  %2179 = vmatpush1.xpose.msra.mxu0 0.0
  %2180 = vmatprep.subr.mxu0 0.0
  %2181 = vmatpush1.xpose.msra.mxu0 0.0
  %2182 = vmatprep.subr.mxu0 0.0
  %2183 = vmatpush1.xpose.msra.mxu0 0.0
  %2184 = vmatprep.subr.mxu0 0.0
  %2185 = vmatpush1.xpose.msra.mxu0 0.0
  %2186 = vmatprep.subr.mxu0 0.0
  %2187 = vmatpush1.xpose.msra.mxu0 0.0
  %2188 = vmatprep.subr.mxu0 0.0
  %2189 = vmatpush1.xpose.msra.mxu0 0.0
  %2190 = vmatprep.subr.mxu0 0.0
  %2191 = vmatpush1.xpose.msra.mxu0 0.0
  %2192 = vmatprep.subr.mxu0 0.0
  %2193 = vmatpush1.xpose.msra.mxu0 0.0
  %2194 = vmatprep.subr.mxu0 0.0
  %2195 = vmatpush1.xpose.msra.mxu0 0.0
  %2196 = vmatprep.subr.mxu0 0.0
  %2197 = vmatpush1.xpose.msra.mxu0 0.0
  %2198 = vmatprep.subr.mxu0 0.0
  %2199 = vmatpush1.xpose.msra.mxu0 0.0
  %2200 = vmatprep.subr.mxu0 0.0
  %2201 = vmatpush1.xpose.msra.mxu0 0.0
  %2202 = vmatprep.subr.mxu0 0.0
  %2203 = vmatpush1.xpose.msra.mxu0 0.0
  %2204 = vmatprep.subr.mxu0 0.0
  %2205 = vmatpush1.xpose.msra.mxu0 0.0
  %2206 = vmatprep.subr.mxu0 0.0
  %2207 = vmatpush1.xpose.msra.mxu0 0.0
  %2208 = vmatprep.subr.mxu0 0.0
  %2209 = vmatpush1.xpose.msra.mxu0 0.0
  %2210 = vmatprep.subr.mxu0 0.0
  %2211 = vmatpush1.xpose.msra.mxu0 0.0
  %2212 = vmatprep.subr.mxu0 0.0
  %2213 = vmatpush1.xpose.msra.mxu0 0.0
  %2214 = vmatprep.subr.mxu0 0.0
  %2215 = vmatpush1.xpose.msra.mxu0 0.0
  %2216 = vmatprep.subr.mxu0 0.0
  %2217 = vmatpush1.xpose.msra.mxu0 0.0
  %2218 = vmatprep.subr.mxu0 0.0
  %2219 = vmatpush1.xpose.msra.mxu0 0.0
  %2220 = vmatprep.subr.mxu0 0.0
  %2221 = vmatpush1.xpose.msra.mxu0 0.0
  %2222 = vmatprep.subr.mxu0 0.0
  %2223 = vmatpush1.xpose.msra.mxu0 0.0
  %2224 = vmatprep.subr.mxu0 0.0
  %2225 = vmatpush1.xpose.msra.mxu0 0.0
  %2226 = vmatprep.subr.mxu0 0.0
  %2227 = vmatpush1.xpose.msra.mxu0 0.0
  %2228 = vmatprep.subr.mxu0 0.0
  %2229 = vmatpush1.xpose.msra.mxu0 0.0
  %2230 = vmatprep.subr.mxu0 0.0
  %2231 = vmatpush1.xpose.msra.mxu0 0.0
  %2232 = vmatprep.subr.mxu0 0.0
  %2233 = vmatpush1.xpose.msra.mxu0 0.0
  %2234 = vmatprep.subr.mxu0 0.0
  %2235 = vmatpush1.xpose.msra.mxu0 0.0
  %2236 = vmatprep.subr.mxu0 0.0
  %2237 = vmatpush1.xpose.msra.mxu0 0.0
  %2238 = vmatprep.mubr.f32.mxu0 0.0
  %2239 = vmatmul.mubr.f32.gmra.mrb[0].mxu0 %v2170
  %v2240 = vpop.f32.mrb[0].mxu0
  %v2241 = vadd.f32 0.0, %v2240
  %v2242 = vpop.f32.mrb[0].mxu0
  %2243 = vdwg.mxu0
  %2244 = vrot.lane.b32.xlu0 %v1831, 112
  %v2245 = vpop.permute.xlu0 %2244
  %2246 = vrot.lane.b32.xlu0 %v1831, 80
  %v2247 = vpop.permute.xlu0 %2246
  %v2248 = vsel %vm728, %v2245, 0
  %v2250 = vsel %vm728, %v2247, 0
  %2252 = vmatprep.subr.mxu0 0.0
  %2253 = vmatpush1.xpose.msra.mxu0 %v2250
  %2254 = vmatprep.subr.mxu0 0.0
  %2255 = vmatpush1.xpose.msra.mxu0 0.0
  %2256 = vmatprep.subr.mxu0 0.0
  %2257 = vmatpush1.xpose.msra.mxu0 0.0
  %2258 = vmatprep.subr.mxu0 0.0
  %2259 = vmatpush1.xpose.msra.mxu0 0.0
  %2260 = vmatprep.subr.mxu0 0.0
  %2261 = vmatpush1.xpose.msra.mxu0 0.0
  %2262 = vmatprep.subr.mxu0 0.0
  %2263 = vmatpush1.xpose.msra.mxu0 0.0
  %2264 = vmatprep.subr.mxu0 0.0
  %2265 = vmatpush1.xpose.msra.mxu0 0.0
  %2266 = vmatprep.subr.mxu0 0.0
  %2267 = vmatpush1.xpose.msra.mxu0 0.0
  %2268 = vmatprep.subr.mxu0 0.0
  %2269 = vmatpush1.xpose.msra.mxu0 0.0
  %2270 = vmatprep.subr.mxu0 0.0
  %2271 = vmatpush1.xpose.msra.mxu0 0.0
  %2272 = vmatprep.subr.mxu0 0.0
  %2273 = vmatpush1.xpose.msra.mxu0 0.0
  %2274 = vmatprep.subr.mxu0 0.0
  %2275 = vmatpush1.xpose.msra.mxu0 0.0
  %2276 = vmatprep.subr.mxu0 0.0
  %2277 = vmatpush1.xpose.msra.mxu0 0.0
  %2278 = vmatprep.subr.mxu0 0.0
  %2279 = vmatpush1.xpose.msra.mxu0 0.0
  %2280 = vmatprep.subr.mxu0 0.0
  %2281 = vmatpush1.xpose.msra.mxu0 0.0
  %2282 = vmatprep.subr.mxu0 0.0
  %2283 = vmatpush1.xpose.msra.mxu0 0.0
  %2284 = vmatprep.subr.mxu0 0.0
  %2285 = vmatpush1.xpose.msra.mxu0 0.0
  %2286 = vmatprep.subr.mxu0 0.0
  %2287 = vmatpush1.xpose.msra.mxu0 0.0
  %2288 = vmatprep.subr.mxu0 0.0
  %2289 = vmatpush1.xpose.msra.mxu0 0.0
  %2290 = vmatprep.subr.mxu0 0.0
  %2291 = vmatpush1.xpose.msra.mxu0 0.0
  %2292 = vmatprep.subr.mxu0 0.0
  %2293 = vmatpush1.xpose.msra.mxu0 0.0
  %2294 = vmatprep.subr.mxu0 0.0
  %2295 = vmatpush1.xpose.msra.mxu0 0.0
  %2296 = vmatprep.subr.mxu0 0.0
  %2297 = vmatpush1.xpose.msra.mxu0 0.0
  %2298 = vmatprep.subr.mxu0 0.0
  %2299 = vmatpush1.xpose.msra.mxu0 0.0
  %2300 = vmatprep.subr.mxu0 0.0
  %2301 = vmatpush1.xpose.msra.mxu0 0.0
  %2302 = vmatprep.subr.mxu0 0.0
  %2303 = vmatpush1.xpose.msra.mxu0 0.0
  %2304 = vmatprep.subr.mxu0 0.0
  %2305 = vmatpush1.xpose.msra.mxu0 0.0
  %2306 = vmatprep.subr.mxu0 0.0
  %2307 = vmatpush1.xpose.msra.mxu0 0.0
  %2308 = vmatprep.subr.mxu0 0.0
  %2309 = vmatpush1.xpose.msra.mxu0 0.0
  %2310 = vmatprep.subr.mxu0 0.0
  %2311 = vmatpush1.xpose.msra.mxu0 0.0
  %2312 = vmatprep.subr.mxu0 0.0
  %2313 = vmatpush1.xpose.msra.mxu0 0.0
  %2314 = vmatprep.subr.mxu0 0.0
  %2315 = vmatpush1.xpose.msra.mxu0 0.0
  %2316 = vmatprep.mubr.f32.mxu0 0.0
  %2317 = vmatmul.mubr.f32.gmra.mrb[0].mxu0 %v2248
  %v2318 = vpop.f32.mrb[0].mxu0
  %v2319 = vadd.f32 0.0, %v2318
  %v2320 = vpop.f32.mrb[0].mxu0
  %2321 = vdwg.mxu0
  %v2322 = vmul.f32 %v2241, 0.25
  %v2323 = vmul.f32 %v2319, 0.25
  %v2324 = vadd.f32 %v2322, %v610
  %v2325 = vadd.f32 %v2323, %v610
  %v2326 = vsel %vm884, %v2324, -inf
  %2327 = vmax.xlane.f32.xlu0 %v2326
  %v2328 = vpop.xlane.xlu0 %2327
  %v2329 = vsel %vm884, %v2325, -inf
  %2330 = vmax.xlane.f32.xlu0 %v2329
  %v2331 = vpop.xlane.xlu0 %2330
  %v2332 = vsub.f32 %v2324, %v2328
  %v2333 = vsub.f32 %v2325, %v2331
  %v2334 = vmul.f32 %v2332, 1.442695
  %v2335 = vpow.pop %v2334
  %v2336 = vmul.f32 %v2333, 1.442695
  %v2337 = vpow.pop %v2336
  %v2338 = vsel %vm884, %v2335, 0.0
  %2339 = vadd.xlane.f32.xlu0 %v2338
  %v2340 = vpop.xlane.xlu0 %2339
  %v2341 = vsel %vm884, %v2337, 0.0
  %2342 = vadd.xlane.f32.xlu0 %v2341
  %v2343 = vpop.xlane.xlu0 %2342
  %v2344 = vrcp.pop %v2340
  %v2345 = vrcp.pop %v2343
  %v2346 = vmul.f32 %v2335, %v2344
  %v2347 = vmul.f32 %v2337, %v2345
  %2348 = vrot.lane.b32.xlu0 %v1828, 48
  %v2349 = vpop.permute.xlu0 %2348
  %v2352 = vsel %vm884, %v2346, 0
  %2354 = vmatprep.subr.mxu0 0.0
  %2355 = vmatpush1.msra.mxu0 %v2349
  %2356 = vmatprep.subr.mxu0 0.0
  %2357 = vmatpush1.msra.mxu0 0.0
  %2358 = vmatprep.subr.mxu0 0.0
  %2359 = vmatpush1.msra.mxu0 0.0
  %2360 = vmatprep.subr.mxu0 0.0
  %2361 = vmatpush1.msra.mxu0 0.0
  %2362 = vmatprep.subr.mxu0 0.0
  %2363 = vmatpush1.msra.mxu0 0.0
  %2364 = vmatprep.subr.mxu0 0.0
  %2365 = vmatpush1.msra.mxu0 0.0
  %2366 = vmatprep.subr.mxu0 0.0
  %2367 = vmatpush1.msra.mxu0 0.0
  %2368 = vmatprep.subr.mxu0 0.0
  %2369 = vmatpush1.msra.mxu0 0.0
  %2370 = vmatprep.subr.mxu0 0.0
  %2371 = vmatpush1.msra.mxu0 0.0
  %2372 = vmatprep.subr.mxu0 0.0
  %2373 = vmatpush1.msra.mxu0 0.0
  %2374 = vmatprep.subr.mxu0 0.0
  %2375 = vmatpush1.msra.mxu0 0.0
  %2376 = vmatprep.subr.mxu0 0.0
  %2377 = vmatpush1.msra.mxu0 0.0
  %2378 = vmatprep.subr.mxu0 0.0
  %2379 = vmatpush1.msra.mxu0 0.0
  %2380 = vmatprep.subr.mxu0 0.0
  %2381 = vmatpush1.msra.mxu0 0.0
  %2382 = vmatprep.subr.mxu0 0.0
  %2383 = vmatpush1.msra.mxu0 0.0
  %2384 = vmatprep.subr.mxu0 0.0
  %2385 = vmatpush1.msra.mxu0 0.0
  %2386 = vmatprep.subr.mxu0 0.0
  %2387 = vmatpush1.msra.mxu0 0.0
  %2388 = vmatprep.subr.mxu0 0.0
  %2389 = vmatpush1.msra.mxu0 0.0
  %2390 = vmatprep.subr.mxu0 0.0
  %2391 = vmatpush1.msra.mxu0 0.0
  %2392 = vmatprep.subr.mxu0 0.0
  %2393 = vmatpush1.msra.mxu0 0.0
  %2394 = vmatprep.subr.mxu0 0.0
  %2395 = vmatpush1.msra.mxu0 0.0
  %2396 = vmatprep.subr.mxu0 0.0
  %2397 = vmatpush1.msra.mxu0 0.0
  %2398 = vmatprep.subr.mxu0 0.0
  %2399 = vmatpush1.msra.mxu0 0.0
  %2400 = vmatprep.subr.mxu0 0.0
  %2401 = vmatpush1.msra.mxu0 0.0
  %2402 = vmatprep.subr.mxu0 0.0
  %2403 = vmatpush1.msra.mxu0 0.0
  %2404 = vmatprep.subr.mxu0 0.0
  %2405 = vmatpush1.msra.mxu0 0.0
  %2406 = vmatprep.subr.mxu0 0.0
  %2407 = vmatpush1.msra.mxu0 0.0
  %2408 = vmatprep.subr.mxu0 0.0
  %2409 = vmatpush1.msra.mxu0 0.0
  %2410 = vmatprep.subr.mxu0 0.0
  %2411 = vmatpush1.msra.mxu0 0.0
  %2412 = vmatprep.subr.mxu0 0.0
  %2413 = vmatpush1.msra.mxu0 0.0
  %2414 = vmatprep.subr.mxu0 0.0
  %2415 = vmatpush1.msra.mxu0 0.0
  %2416 = vmatprep.subr.mxu0 0.0
  %2417 = vmatpush1.msra.mxu0 0.0
  %2418 = vmatprep.mubr.f32.mxu0 0.0
  %2419 = vmatmul.mubr.f32.gmra.mrb[0].mxu0 %v2352
  %v2420 = vpop.f32.mrb[0].mxu0
  %v2421 = vadd.f32 0.0, %v2420
  %v2422 = vpop.f32.mrb[0].mxu0
  %2423 = vdwg.mxu0
  %2424 = vrot.lane.b32.xlu0 %v1831, 48
  %v2425 = vpop.permute.xlu0 %2424
  %v2428 = vsel %vm884, %v2347, 0
  %2430 = vmatprep.subr.mxu0 0.0
  %2431 = vmatpush1.msra.mxu0 %v2425
  %2432 = vmatprep.subr.mxu0 0.0
  %2433 = vmatpush1.msra.mxu0 0.0
  %2434 = vmatprep.subr.mxu0 0.0
  %2435 = vmatpush1.msra.mxu0 0.0
  %2436 = vmatprep.subr.mxu0 0.0
  %2437 = vmatpush1.msra.mxu0 0.0
  %2438 = vmatprep.subr.mxu0 0.0
  %2439 = vmatpush1.msra.mxu0 0.0
  %2440 = vmatprep.subr.mxu0 0.0
  %2441 = vmatpush1.msra.mxu0 0.0
  %2442 = vmatprep.subr.mxu0 0.0
  %2443 = vmatpush1.msra.mxu0 0.0
  %2444 = vmatprep.subr.mxu0 0.0
  %2445 = vmatpush1.msra.mxu0 0.0
  %2446 = vmatprep.subr.mxu0 0.0
  %2447 = vmatpush1.msra.mxu0 0.0
  %2448 = vmatprep.subr.mxu0 0.0
  %2449 = vmatpush1.msra.mxu0 0.0
  %2450 = vmatprep.subr.mxu0 0.0
  %2451 = vmatpush1.msra.mxu0 0.0
  %2452 = vmatprep.subr.mxu0 0.0
  %2453 = vmatpush1.msra.mxu0 0.0
  %2454 = vmatprep.subr.mxu0 0.0
  %2455 = vmatpush1.msra.mxu0 0.0
  %2456 = vmatprep.subr.mxu0 0.0
  %2457 = vmatpush1.msra.mxu0 0.0
  %2458 = vmatprep.subr.mxu0 0.0
  %2459 = vmatpush1.msra.mxu0 0.0
  %2460 = vmatprep.subr.mxu0 0.0
  %2461 = vmatpush1.msra.mxu0 0.0
  %2462 = vmatprep.subr.mxu0 0.0
  %2463 = vmatpush1.msra.mxu0 0.0
  %2464 = vmatprep.subr.mxu0 0.0
  %2465 = vmatpush1.msra.mxu0 0.0
  %2466 = vmatprep.subr.mxu0 0.0
  %2467 = vmatpush1.msra.mxu0 0.0
  %2468 = vmatprep.subr.mxu0 0.0
  %2469 = vmatpush1.msra.mxu0 0.0
  %2470 = vmatprep.subr.mxu0 0.0
  %2471 = vmatpush1.msra.mxu0 0.0
  %2472 = vmatprep.subr.mxu0 0.0
  %2473 = vmatpush1.msra.mxu0 0.0
  %2474 = vmatprep.subr.mxu0 0.0
  %2475 = vmatpush1.msra.mxu0 0.0
  %2476 = vmatprep.subr.mxu0 0.0
  %2477 = vmatpush1.msra.mxu0 0.0
  %2478 = vmatprep.subr.mxu0 0.0
  %2479 = vmatpush1.msra.mxu0 0.0
  %2480 = vmatprep.subr.mxu0 0.0
  %2481 = vmatpush1.msra.mxu0 0.0
  %2482 = vmatprep.subr.mxu0 0.0
  %2483 = vmatpush1.msra.mxu0 0.0
  %2484 = vmatprep.subr.mxu0 0.0
  %2485 = vmatpush1.msra.mxu0 0.0
  %2486 = vmatprep.subr.mxu0 0.0
  %2487 = vmatpush1.msra.mxu0 0.0
  %2488 = vmatprep.subr.mxu0 0.0
  %2489 = vmatpush1.msra.mxu0 0.0
  %2490 = vmatprep.subr.mxu0 0.0
  %2491 = vmatpush1.msra.mxu0 0.0
  %2492 = vmatprep.subr.mxu0 0.0
  %2493 = vmatpush1.msra.mxu0 0.0
  %2494 = vmatprep.mubr.f32.mxu0 0.0
  %2495 = vmatmul.mubr.f32.gmra.mrb[0].mxu0 %v2428
  %v2496 = vpop.f32.mrb[0].mxu0
  %v2497 = vadd.f32 0.0, %v2496
  %v2498 = vpop.f32.mrb[0].mxu0
  %2499 = vdwg.mxu0
  %2502 = vrot.lane.b32.xlu0 %v2421, 16
  %v2503 = vpop.permute.xlu0 %2502
  %2504 = vrot.lane.b32.xlu0 %v2497, 16
  %v2505 = vpop.permute.xlu0 %2504
  %v2508 = vsel %vm728, %v2087, %v2503
  %v2509 = vsel %vm728, %v2163, %v2505
  %v2510 = vpack.c.bf16 %v2509, %v2508
  %s2511 = scalar_lea.vmem %s9, 16
  %v2512 = vld [vmem:[%s2511] sm:$0xf]
  %v2513 = vld [vmem:[%s2511 + $0x4] sm:$0xf]
  %v2514 = vld [vmem:[%s2511 + $0x8] sm:$0xf]
  %v2515 = vld [vmem:[%s2511 + $0xc] sm:$0xf]
  %s2516 = scalar_lea.vmem %s10, 1
  %v2517 = vld [vmem:[%s2516] sm:$0x1]
  %v2519 = vlaneseq
  %v2520 = vshrl.u32 %v2519, 7
  %v2521 = vsub.s32 0, %v2520
  %v2522 = vrot.slane %v2517, %v2521
  %v2528 = vunpack.c.l.b16 %v2512
  %v2529 = vunpack.c.l.b16 %v2513
  %v2530 = vunpack.c.l.b16 %v2514
  %v2531 = vunpack.c.l.b16 %v2515
  %v2532 = vpack.c.b16 %v2529, %v2528
  %v2533 = vpack.c.b16 %v2531, %v2530
  %v2537 = vsel %vm613, %v2510, 0
  %2539 = vmatprep.subr.bf16.mxu0 0
  %2540 = vmatpush1.bf16.msra.mxu0 %v2532
  %2541 = vmatprep.subr.bf16.mxu0 0
  %2542 = vmatpush1.bf16.msra.mxu0 %v2533
  %2543 = vmatprep.subr.bf16.mxu0 0
  %2544 = vmatpush1.bf16.msra.mxu0 0
  %2545 = vmatprep.subr.bf16.mxu0 0
  %2546 = vmatpush1.bf16.msra.mxu0 0
  %2547 = vmatprep.subr.bf16.mxu0 0
  %2548 = vmatpush1.bf16.msra.mxu0 0
  %2549 = vmatprep.subr.bf16.mxu0 0
  %2550 = vmatpush1.bf16.msra.mxu0 0
  %2551 = vmatprep.subr.bf16.mxu0 0
  %2552 = vmatpush1.bf16.msra.mxu0 0
  %2553 = vmatprep.subr.bf16.mxu0 0
  %2554 = vmatpush1.bf16.msra.mxu0 0
  %2555 = vmatprep.subr.bf16.mxu0 0
  %2556 = vmatpush1.bf16.msra.mxu0 0
  %2557 = vmatprep.subr.bf16.mxu0 0
  %2558 = vmatpush1.bf16.msra.mxu0 0
  %2559 = vmatprep.subr.bf16.mxu0 0
  %2560 = vmatpush1.bf16.msra.mxu0 0
  %2561 = vmatprep.subr.bf16.mxu0 0
  %2562 = vmatpush1.bf16.msra.mxu0 0
  %2563 = vmatprep.subr.bf16.mxu0 0
  %2564 = vmatpush1.bf16.msra.mxu0 0
  %2565 = vmatprep.subr.bf16.mxu0 0
  %2566 = vmatpush1.bf16.msra.mxu0 0
  %2567 = vmatprep.subr.bf16.mxu0 0
  %2568 = vmatpush1.bf16.msra.mxu0 0
  %2569 = vmatprep.subr.bf16.mxu0 0
  %2570 = vmatpush1.bf16.msra.mxu0 0
  %2571 = vmatprep.mubr.bf16.mxu0 0
  %2572 = vmatmul.mubr.bf16.gmra.mrb[0].mxu0 %v2537
  %v2573 = vpop.f32.mrb[0].mxu0
  %v2574 = vadd.f32 %v2522, %v2573
  %v2575 = vpop.f32.mrb[0].mxu0
  %v2576 = vpop.f32.mrb[0].mxu0
  %v2577 = vadd.f32 %v2522, %v2576
  %v2578 = vpop.f32.mrb[0].mxu0
  %2579 = vdwg.mxu0
  %v2580 = vadd.f32 %v1716, %v2574
  %v2581 = vadd.f32 %v1717, %v2577
  %s2582 = scalar_lea.vmem %s11, 1
  %v2583 = vld [vmem:[%s2582] sm:$0x1]
  %s2584 = scalar_lea.vmem %s12, 1
  %v2585 = vld [vmem:[%s2584] sm:$0x1]
  %v2586 = vsel %vm613, %v2580, 0.0
  %2587 = vadd.xlane.f32.xlu0 %v2586
  %v2588 = vpop.xlane.xlu0 %2587
  %v2589 = vsel %vm613, %v2581, 0.0
  %2590 = vadd.xlane.f32.xlu0 %v2589
  %v2591 = vpop.xlane.xlu0 %2590
  %v2592 = vmul.f32 %v2588, %v620
  %v2593 = vmul.f32 %v2591, %v620
  %v2594 = vsub.f32 %v2580, %v2592
  %v2595 = vsub.f32 %v2581, %v2593
  %v2596 = vmul.f32 %v2594, %v2594
  %v2597 = vmul.f32 %v2595, %v2595
  %v2598 = vsel %vm613, %v2596, 0.0
  %2599 = vadd.xlane.f32.xlu0 %v2598
  %v2600 = vpop.xlane.xlu0 %2599
  %v2601 = vsel %vm613, %v2597, 0.0
  %2602 = vadd.xlane.f32.xlu0 %v2601
  %v2603 = vpop.xlane.xlu0 %2602
  %v2604 = vmul.f32 %v2600, %v620
  %v2605 = vmul.f32 %v2603, %v620
  %v2606 = vadd.f32 %v2604, 1e-12
  %v2607 = vadd.f32 %v2605, 1e-12
  %v2608 = vrsqrt.pop %v2606
  %v2609 = vrsqrt.pop %v2607
  %v2610 = vmul.f32 %v2594, %v2608
  %v2611 = vmul.f32 %v2595, %v2609
  %v2613 = vlaneseq
  %v2614 = vshrl.u32 %v2613, 7
  %v2615 = vsub.s32 0, %v2614
  %v2616 = vrot.slane %v2583, %v2615
  %v2618 = vmul.f32 %v2610, %v2616
  %v2619 = vmul.f32 %v2611, %v2616
  %v2621 = vlaneseq
  %v2622 = vshrl.u32 %v2621, 7
  %v2623 = vsub.s32 0, %v2622
  %v2624 = vrot.slane %v2585, %v2623
  %v2626 = vadd.f32 %v2618, %v2624
  %v2627 = vadd.f32 %v2619, %v2624
  %v2628 = vpack.c.bf16 %v2627, %v2626
  %s2629 = scalar_lea.vmem %s13, 16
  %v2630 = vld [vmem:[%s2629] sm:$0xf]
  %v2631 = vld [vmem:[%s2629 + $0x4] sm:$0xf]
  %v2632 = vld [vmem:[%s2629 + $0x8] sm:$0xf]
  %v2633 = vld [vmem:[%s2629 + $0xc] sm:$0xf]
  %s2634 = scalar_lea.vmem %s14, 1
  %v2635 = vld [vmem:[%s2634] sm:$0x1]
  %v2637 = vlaneseq
  %v2638 = vshrl.u32 %v2637, 7
  %v2639 = vsub.s32 0, %v2638
  %v2640 = vrot.slane %v2635, %v2639
  %v2646 = vunpack.c.l.b16 %v2630
  %v2647 = vunpack.c.l.b16 %v2631
  %v2648 = vunpack.c.l.b16 %v2632
  %v2649 = vunpack.c.l.b16 %v2633
  %v2650 = vpack.c.b16 %v2647, %v2646
  %v2651 = vpack.c.b16 %v2649, %v2648
  %v2655 = vsel %vm613, %v2628, 0
  %2657 = vmatprep.subr.bf16.mxu0 0
  %2658 = vmatpush1.bf16.msra.mxu0 %v2650
  %2659 = vmatprep.subr.bf16.mxu0 0
  %2660 = vmatpush1.bf16.msra.mxu0 %v2651
  %2661 = vmatprep.subr.bf16.mxu0 0
  %2662 = vmatpush1.bf16.msra.mxu0 0
  %2663 = vmatprep.subr.bf16.mxu0 0
  %2664 = vmatpush1.bf16.msra.mxu0 0
  %2665 = vmatprep.subr.bf16.mxu0 0
  %2666 = vmatpush1.bf16.msra.mxu0 0
  %2667 = vmatprep.subr.bf16.mxu0 0
  %2668 = vmatpush1.bf16.msra.mxu0 0
  %2669 = vmatprep.subr.bf16.mxu0 0
  %2670 = vmatpush1.bf16.msra.mxu0 0
  %2671 = vmatprep.subr.bf16.mxu0 0
  %2672 = vmatpush1.bf16.msra.mxu0 0
  %2673 = vmatprep.subr.bf16.mxu0 0
  %2674 = vmatpush1.bf16.msra.mxu0 0
  %2675 = vmatprep.subr.bf16.mxu0 0
  %2676 = vmatpush1.bf16.msra.mxu0 0
  %2677 = vmatprep.subr.bf16.mxu0 0
  %2678 = vmatpush1.bf16.msra.mxu0 0
  %2679 = vmatprep.subr.bf16.mxu0 0
  %2680 = vmatpush1.bf16.msra.mxu0 0
  %2681 = vmatprep.subr.bf16.mxu0 0
  %2682 = vmatpush1.bf16.msra.mxu0 0
  %2683 = vmatprep.subr.bf16.mxu0 0
  %2684 = vmatpush1.bf16.msra.mxu0 0
  %2685 = vmatprep.subr.bf16.mxu0 0
  %2686 = vmatpush1.bf16.msra.mxu0 0
  %2687 = vmatprep.subr.bf16.mxu0 0
  %2688 = vmatpush1.bf16.msra.mxu0 0
  %2689 = vmatprep.mubr.bf16.mxu0 0
  %2690 = vmatmul.mubr.bf16.gmra.mrb[0].mxu0 %v2655
  %v2691 = vpop.f32.mrb[0].mxu0
  %v2692 = vadd.f32 %v2640, %v2691
  %v2693 = vpop.f32.mrb[0].mxu0
  %v2694 = vpop.f32.mrb[0].mxu0
  %v2695 = vadd.f32 %v2640, %v2694
  %v2696 = vpop.f32.mrb[0].mxu0
  %2697 = vdwg.mxu0
  %v2698 = vmul.f32 %v2692, 0.5
  %v2699 = vmul.f32 %v2695, 0.5
  %v2700 = vmul.f32 %v2692, 0.044715
  %v2701 = vmul.f32 %v2695, 0.044715
  %v2702 = vmul.f32 %v2700, %v2692
  %v2703 = vmul.f32 %v2701, %v2695
  %v2704 = vmul.f32 %v2702, %v2692
  %v2705 = vmul.f32 %v2703, %v2695
  %v2706 = vadd.f32 %v2692, %v2704
  %v2707 = vadd.f32 %v2695, %v2705
  %v2708 = vmul.f32 %v2706, 0.7978846
  %v2709 = vmul.f32 %v2707, 0.7978846
  %v2710 = vtanh.pop %v2708
  %v2711 = vtanh.pop %v2709
  %v2712 = vadd.f32 %v2710, 1.0
  %v2713 = vadd.f32 %v2711, 1.0
  %v2714 = vmul.f32 %v2698, %v2712
  %v2715 = vmul.f32 %v2699, %v2713
  %v2716 = vpack.c.bf16 %v2715, %v2714
  %s2717 = scalar_lea.vmem %s15, 64
  %v2718 = vld [vmem:[%s2717] sm:$0xf]
  %v2719 = vld [vmem:[%s2717 + $0x4] sm:$0xf]
  %v2720 = vld [vmem:[%s2717 + $0x8] sm:$0xf]
  %v2721 = vld [vmem:[%s2717 + $0xc] sm:$0xf]
  %v2722 = vld [vmem:[%s2717 + $0x10] sm:$0xf]
  %v2723 = vld [vmem:[%s2717 + $0x14] sm:$0xf]
  %v2724 = vld [vmem:[%s2717 + $0x18] sm:$0xf]
  %v2725 = vld [vmem:[%s2717 + $0x1c] sm:$0xf]
  %v2726 = vld [vmem:[%s2717 + $0x20] sm:$0xf]
  %v2727 = vld [vmem:[%s2717 + $0x24] sm:$0xf]
  %v2728 = vld [vmem:[%s2717 + $0x28] sm:$0xf]
  %v2729 = vld [vmem:[%s2717 + $0x2c] sm:$0xf]
  %v2730 = vld [vmem:[%s2717 + $0x30] sm:$0xf]
  %v2731 = vld [vmem:[%s2717 + $0x34] sm:$0xf]
  %v2732 = vld [vmem:[%s2717 + $0x38] sm:$0xf]
  %v2733 = vld [vmem:[%s2717 + $0x3c] sm:$0xf]
  %s2734 = scalar_lea.vmem %s16, 1
  %v2735 = vld [vmem:[%s2734] sm:$0x1]
  %v2737 = vlaneseq
  %v2738 = vshrl.u32 %v2737, 7
  %v2739 = vsub.s32 0, %v2738
  %v2740 = vrot.slane %v2735, %v2739
  %v2758 = vunpack.c.l.b16 %v2718
  %v2759 = vunpack.c.l.b16 %v2719
  %v2760 = vunpack.c.l.b16 %v2720
  %v2761 = vunpack.c.l.b16 %v2721
  %v2762 = vunpack.c.l.b16 %v2722
  %v2763 = vunpack.c.l.b16 %v2723
  %v2764 = vunpack.c.l.b16 %v2724
  %v2765 = vunpack.c.l.b16 %v2725
  %v2766 = vunpack.c.l.b16 %v2726
  %v2767 = vunpack.c.l.b16 %v2727
  %v2768 = vunpack.c.l.b16 %v2728
  %v2769 = vunpack.c.l.b16 %v2729
  %v2770 = vunpack.c.l.b16 %v2730
  %v2771 = vunpack.c.l.b16 %v2731
  %v2772 = vunpack.c.l.b16 %v2732
  %v2773 = vunpack.c.l.b16 %v2733
  %v2774 = vpack.c.b16 %v2759, %v2758
  %v2775 = vpack.c.b16 %v2761, %v2760
  %v2776 = vpack.c.b16 %v2763, %v2762
  %v2777 = vpack.c.b16 %v2765, %v2764
  %v2778 = vpack.c.b16 %v2767, %v2766
  %v2779 = vpack.c.b16 %v2769, %v2768
  %v2780 = vpack.c.b16 %v2771, %v2770
  %v2781 = vpack.c.b16 %v2773, %v2772
  %2790 = vmatprep.subr.bf16.mxu0 0
  %2791 = vmatpush1.bf16.msra.mxu0 %v2774
  %2792 = vmatprep.subr.bf16.mxu0 0
  %2793 = vmatpush1.bf16.msra.mxu0 %v2775
  %2794 = vmatprep.subr.bf16.mxu0 0
  %2795 = vmatpush1.bf16.msra.mxu0 %v2776
  %2796 = vmatprep.subr.bf16.mxu0 0
  %2797 = vmatpush1.bf16.msra.mxu0 %v2777
  %2798 = vmatprep.subr.bf16.mxu0 0
  %2799 = vmatpush1.bf16.msra.mxu0 %v2778
  %2800 = vmatprep.subr.bf16.mxu0 0
  %2801 = vmatpush1.bf16.msra.mxu0 %v2779
  %2802 = vmatprep.subr.bf16.mxu0 0
  %2803 = vmatpush1.bf16.msra.mxu0 %v2780
  %2804 = vmatprep.subr.bf16.mxu0 0
  %2805 = vmatpush1.bf16.msra.mxu0 %v2781
  %2806 = vmatprep.subr.bf16.mxu0 0
  %2807 = vmatpush1.bf16.msra.mxu0 0
  %2808 = vmatprep.subr.bf16.mxu0 0
  %2809 = vmatpush1.bf16.msra.mxu0 0
  %2810 = vmatprep.subr.bf16.mxu0 0
  %2811 = vmatpush1.bf16.msra.mxu0 0
  %2812 = vmatprep.subr.bf16.mxu0 0
  %2813 = vmatpush1.bf16.msra.mxu0 0
  %2814 = vmatprep.subr.bf16.mxu0 0
  %2815 = vmatpush1.bf16.msra.mxu0 0
  %2816 = vmatprep.subr.bf16.mxu0 0
  %2817 = vmatpush1.bf16.msra.mxu0 0
  %2818 = vmatprep.subr.bf16.mxu0 0
  %2819 = vmatpush1.bf16.msra.mxu0 0
  %2820 = vmatprep.subr.bf16.mxu0 0
  %2821 = vmatpush1.bf16.msra.mxu0 0
  %2822 = vmatprep.mubr.bf16.mxu0 0
  %2823 = vmatmul.mubr.bf16.gmra.mrb[0].mxu0 %v2716
  %v2824 = vpop.f32.mrb[0].mxu0
  %v2825 = vadd.f32 %v2740, %v2824
  %v2826 = vpop.f32.mrb[0].mxu0
  %v2827 = vpop.f32.mrb[0].mxu0
  %v2828 = vadd.f32 %v2740, %v2827
  %v2829 = vpop.f32.mrb[0].mxu0
  %2830 = vdwg.mxu0
  %v2831 = vadd.f32 %v2580, %v2825
  %v2832 = vadd.f32 %v2581, %v2828
  %v2834 = vrot.slane %v2832, 7
  %v2836 = vsel %vm594, %v2831, %v2834
  %v2837 = vld [vmem:[%s17] sm:$0x1]
  %v2838 = vld [vmem:[%s18] sm:$0x1]
  %vm2839 = vcmask 254976
  %v2840 = vsel %vm2839, %v2836, 0.0
  %2841 = vadd.xlane.f32.xlu0 %v2840
  %v2842 = vpop.xlane.xlu0 %2841
  %v2843 = vmul.f32 %v2842, %v620
  %v2844 = vsub.f32 %v2836, %v2843
  %v2845 = vmul.f32 %v2844, %v2844
  %v2846 = vsel %vm2839, %v2845, 0.0
  %2847 = vadd.xlane.f32.xlu0 %v2846
  %v2848 = vpop.xlane.xlu0 %2847
  %v2849 = vmul.f32 %v2848, %v620
  %v2850 = vadd.f32 %v2849, 1e-12
  %v2851 = vrsqrt.pop %v2850
  %v2852 = vmul.f32 %v2844, %v2851
  %v2854 = vlaneseq
  %v2855 = vshrl.u32 %v2854, 7
  %v2856 = vsub.s32 0, %v2855
  %v2857 = vrot.slane %v2837, %v2856
  %v2859 = vmul.f32 %v2852, %v2857
  %v2861 = vlaneseq
  %v2862 = vshrl.u32 %v2861, 7
  %v2863 = vsub.s32 0, %v2862
  %v2864 = vrot.slane %v2838, %v2863
  %v2866 = vadd.f32 %v2859, %v2864
  %2867 = vst.msk [vmem:[%s19] sm:$0x3] %vm2839, %v2866
  // Predicated region
  $region78: #{forward.2} parent=0 // pred_check
    _
  $region79: #{forward.2} parent=0 // pred_check_branch
    %2869 = sbr.rel (0) target = $region81
  $region80: #{forward.2} parent=0 // pred_region
    _
  $region81: #{forward.2} parent=0 // pred_fallthru
    _
  // Predicated region
  $region82: #{forward.2} parent=0 // pred_check
    _
  $region83: #{forward.2} parent=0 // pred_check_branch
    %2871 = sbr.rel (0) target = $region85
  $region84: #{forward.2} parent=0 // pred_region
    _
  $region85: #{forward.2} parent=0 // pred_fallthru
    _

</llo_original>
